<compile_context>
chip_gen: v7x
topology: tpu7x:2x2x1
jax: 0.10.0
libtpu: 0.0.40
codegen_flags: <defaults>
</compile_context>

<pallas_src>
import functools

import jax
import jax.numpy as jnp
from jax.experimental import pallas as pl
from jax.experimental.pallas import tpu as pltpu

LANE = 128
F32 = jnp.float32
BF16 = jnp.bfloat16
VMEM_LIMIT = 48 * 1024 * 1024   # fits v5e/v6e (128 MiB phys) and v7x (64 MiB phys)


def _pad2(a, rows, cols):
    r, c = a.shape
    return jnp.pad(a, ((0, rows - r), (0, cols - c)))


def _gae_kernel(src_ref, tgtrow_ref, tgtcol_ref, ea_ref, x_ref, expand_ref,
                w1_ref, b1_ref, w2_ref, b2_ref, wroot_ref, broot_ref, sel_ref,
                w3s_ref, w3t_ref, b3_ref, w4_ref, b4_ref,
                out_ref, lat_ref, us_ref, ut_ref, *, L):
    """Fused GAE forward.

    Phase 0 (encoder): per edge-tile, edge MLP -> NNConv message -> scatter-(sum,count)
    into the persistent VMEM accumulator lat_ref (Np, 128).  Lane L carries the degree
    count.  The last encoder tile finalizes the mean aggregation + root linear and hoists
    the decoder's first layer: us_ref = latent @ w3_src, ut_ref = latent @ w3_tgt.

    Phase 1 (decoder): per edge-tile, gather the hoisted activations with one-hot matmuls
    and finish the edge-predictor MLP.  Padded edges carry src/tgt = -1 so their one-hot
    rows/columns are all zero and they contribute nothing to the accumulator.
    """
    phase = pl.program_id(0)
    i = pl.program_id(1)
    TE = src_ref.shape[0]
    Np = x_ref.shape[0]

    @pl.when((phase == 0) & (i == 0))
    def _init():
        lat_ref[...] = jnp.zeros_like(lat_ref)

    @pl.when(phase == 0)
    def _encode():
        # ---- edge_weight_encoder: Linear(edge_dim,64) -> ReLU -> Linear(64, D*L) ----
        h = jnp.dot(ea_ref[...], w1_ref[...], preferred_element_type=F32) + b1_ref[...]
        h = jnp.maximum(h, 0.0)
        W_e = jnp.dot(h.astype(BF16), w2_ref[...],
                      preferred_element_type=F32) + b2_ref[...]            # (TE, DLp)

        # ---- gather x[src] via one-hot matmul, then expand to (TE, D*L) ----
        n_iota = jax.lax.broadcasted_iota(jnp.int32, (TE, Np), 1)
        oh_src = (n_iota == src_ref[...]).astype(BF16)                     # (TE, Np)
        x_g = jnp.dot(oh_src, x_ref[...], preferred_element_type=F32)      # (TE, Dp)
        x_exp = jnp.dot(x_g.astype(BF16), expand_ref[...],
                        preferred_element_type=F32)                        # (TE, DLp)

        # ---- NNConv message as one MXU contraction: msg = (x_exp * W_e) @ S ----
        msg = jnp.dot((x_exp * W_e).astype(BF16), sel_ref[...],
                      preferred_element_type=F32)                          # (TE, 128)
        # degree count rides in lane L (padded edges masked out by the scatter one-hot)
        cnt_row = (jax.lax.broadcasted_iota(jnp.int32, (1, LANE), 1) == L).astype(F32)
        msg = msg + cnt_row

        # ---- scatter-(sum,count): transposed one-hot built directly (no XLU transpose) ----
        node_rows = jax.lax.broadcasted_iota(jnp.int32, (Np, TE), 0)
        oh_tgt_T = (node_rows == tgtrow_ref[...]).astype(BF16)             # (Np, TE)
        lat_ref[...] += jnp.dot(oh_tgt_T, msg.astype(BF16),
                                preferred_element_type=F32)

        # ---- finalize: mean aggregation + root linear, then hoist latent @ w3_{src,tgt} ----
        @pl.when(i == pl.num_programs(1) - 1)
        def _finalize():
            acc = lat_ref[...]
            cnt = jnp.maximum(acc[:, L:L + 1], 1.0)   # isolated nodes -> mean 0, as in ref
            lane_mask = (jax.lax.broadcasted_iota(jnp.int32, (1, LANE), 1) < L).astype(F32)
            mean_agg = acc * lane_mask * pl.reciprocal(cnt, approx=True)
            root = jnp.dot(x_ref[...], wroot_ref[...], preferred_element_type=F32)
            latent = (mean_agg + root + broot_ref[...]).astype(BF16)       # (Np, 128)
            # (oh @ latent) @ w3 == oh @ (latent @ w3): do the node-sized matmuls once
            us_ref[...] = jnp.dot(latent, w3s_ref[...],
                                  preferred_element_type=F32).astype(BF16)
            ut_ref[...] = jnp.dot(latent, w3t_ref[...],
                                  preferred_element_type=F32).astype(BF16)

    @pl.when(phase == 1)
    def _decode():
        n_iota = jax.lax.broadcasted_iota(jnp.int32, (TE, Np), 1)
        oh_src = (n_iota == src_ref[...]).astype(BF16)
        oh_tgt = (n_iota == tgtcol_ref[...]).astype(BF16)
        h2 = (jnp.dot(oh_src, us_ref[...], preferred_element_type=F32)
              + jnp.dot(oh_tgt, ut_ref[...], preferred_element_type=F32)
              + b3_ref[...])
        h2 = jnp.maximum(h2, 0.0)
        out_ref[...] = jnp.dot(h2.astype(BF16), w4_ref[...],
                               preferred_element_type=F32) + b4_ref[...]


def _vmem_estimate_bytes(TE, Np, Dp, DLp, EDp, Hp):
    """Rough upper bound of the kernel's VMEM working set (bytes)."""
    bf, f4 = 2, 4
    resident = ((Np * Dp + Dp * DLp + EDp * Hp + Hp * DLp + Dp * LANE + DLp * LANE
                 + 2 * LANE * Hp + Hp * EDp) * bf
                + (Hp + DLp + LANE + Hp + EDp) * f4)
    streams = 2 * (TE * f4 + TE * f4 + TE * EDp * bf + TE * f4 + TE * EDp * f4)
    scratch = Np * LANE * f4 + 2 * Np * Hp * bf
    live = 3 * TE * Np * bf + 2 * TE * DLp * f4 + 2 * TE * Hp * f4
    return 2 * resident + streams + scratch + live


def graph_autoencoder_forward(edge_index, edge_attr, params):
    """edge_index: (2, E) int, edge_attr: (E, edge_dim) f32 -> reconstructed (E, edge_dim)."""
    E, edge_dim = edge_attr.shape
    x = params["x"]
    N, D = x.shape
    L = params["wroot"].shape[1]
    H = params["w1"].shape[1]
    DL = D * L
    assert L < LANE, "latent_dim + count lane must fit one 128-lane vreg"

    # ---- tile / padding geometry (lane-dense, MXU-friendly 128-aligned) ----
    TE = int(min(1024, max(LANE, pl.next_power_of_2(E))))   # E-dependent edge tile
    Ep = pl.cdiv(E, TE) * TE
    nT = Ep // TE
    Np = pl.cdiv(N, LANE) * LANE        # 128-aligned contraction dim for gather/scatter
    Dp = pl.cdiv(D, LANE) * LANE
    EDp = pl.cdiv(edge_dim, LANE) * LANE
    Hp = pl.cdiv(H, LANE) * LANE
    DLp = pl.cdiv(DL, LANE) * LANE

    # resident-state VMEM budget guard (v7x has only 64 MiB physical VMEM)
    est = _vmem_estimate_bytes(TE, Np, Dp, DLp, EDp, Hp)
    if est > VMEM_LIMIT - 8 * 1024 * 1024:
        # TODO(synk): large-N fallback: node-tiled latent + scalar-prefetch DMA row gather.
        raise NotImplementedError(
            f"resident working set ~{est >> 20} MiB exceeds the VMEM budget; "
            "large-N fallback path not implemented")

    # ---- edge indices: sentinel -1 padding => padded edges match no node ----
    src = edge_index[0].astype(jnp.int32)
    tgt = edge_index[1].astype(jnp.int32)
    src_col = jnp.pad(src, (0, Ep - E), constant_values=-1).reshape(Ep, 1)
    tgt_pad = jnp.pad(tgt, (0, Ep - E), constant_values=-1)
    tgt_col = tgt_pad.reshape(Ep, 1)
    tgt_row = tgt_pad.reshape(1, Ep)    # row layout for the directly-built transposed one-hot

    # ---- streamed edge features: pre-cast to bf16 (halves DMA, removes in-kernel cast) ----
    ea_b = _pad2(edge_attr.astype(F32), Ep, EDp).astype(BF16)

    # ---- node features + expansion matrix (padded, pre-cast to bf16 for the MXU) ----
    x_b = _pad2(x.astype(F32), Np, Dp).astype(BF16)
    # expand[k, k*L + l] = 1 : (TE, D) gathered x -> (TE, D*L) repeated layout, on the MXU
    expand = jnp.zeros((D, DL), F32).at[jnp.arange(DL) // L, jnp.arange(DL)].set(1.0)
    expand_b = _pad2(expand, Dp, DLp).astype(BF16)

    # ---- padded / pre-cast weights (zero padding keeps numerics identical) ----
    w1_b = _pad2(params["w1"], EDp, Hp).astype(BF16)
    b1_p = _pad2(params["b1"], 1, Hp)
    w2_b = _pad2(params["w2"], Hp, DLp).astype(BF16)
    b2_p = _pad2(params["b2"], 1, DLp)
    wroot_b = _pad2(params["wroot"], Dp, LANE).astype(BF16)
    broot_p = _pad2(params["broot"], 1, LANE)
    # selection matrix S[k*L + l, l] = 1 turns the per-edge contraction over D into one matmul
    sel = jnp.zeros((DL, L), F32).at[jnp.arange(DL), jnp.arange(DL) % L].set(1.0)
    sel_b = _pad2(sel, DLp, LANE).astype(BF16)
    w3 = params["w3"]
    w3s_b = _pad2(w3[:L], LANE, Hp).astype(BF16)
    w3t_b = _pad2(w3[L:], LANE, Hp).astype(BF16)
    b3_p = _pad2(params["b3"], 1, Hp)
    w4_b = _pad2(params["w4"], Hp, EDp).astype(BF16)
    b4_p = _pad2(params["b4"], 1, EDp)

    resident = lambda shape: pl.BlockSpec(shape, lambda p, i: (0, 0))

    # -------- single fused kernel: phase 0 = encoder reduction, phase 1 = decoder --------
    out_pad = pl.pallas_call(
        functools.partial(_gae_kernel, L=L),
        out_shape=jax.ShapeDtypeStruct((Ep, EDp), F32),
        grid=(2, nT),
        in_specs=[
            pl.BlockSpec((TE, 1), lambda p, i: (i, 0)),               # src (both phases)
            pl.BlockSpec((1, TE), lambda p, i: (0, i * (1 - p))),     # tgt row (encode only)
            pl.BlockSpec((TE, 1), lambda p, i: (i * p, 0)),           # tgt col (decode only)
            pl.BlockSpec((TE, EDp), lambda p, i: (i * (1 - p), 0)),   # edge_attr (encode only)
            resident((Np, Dp)),                                       # x
            resident((Dp, DLp)),                                      # expansion matrix
            resident((EDp, Hp)), resident((1, Hp)),                   # w1, b1
            resident((Hp, DLp)), resident((1, DLp)),                  # w2, b2
            resident((Dp, LANE)), resident((1, LANE)),                # wroot, broot
            resident((DLp, LANE)),                                    # selection matrix
            resident((LANE, Hp)), resident((LANE, Hp)),               # w3_src, w3_tgt
            resident((1, Hp)),                                        # b3
            resident((Hp, EDp)), resident((1, EDp)),                  # w4, b4
        ],
        out_specs=pl.BlockSpec((TE, EDp), lambda p, i: (i * p, 0)),   # lane-dense output tile
        scratch_shapes=[
            pltpu.VMEM((Np, LANE), F32),    # latent / (sum, count) accumulator
            pltpu.VMEM((Np, Hp), BF16),     # hoisted latent @ w3_src
            pltpu.VMEM((Np, Hp), BF16),     # hoisted latent @ w3_tgt
        ],
        compiler_params=pltpu.CompilerParams(
            dimension_semantics=("arbitrary", "arbitrary"),   # phase + reduction-over-tiles
            vmem_limit_bytes=VMEM_LIMIT),
    )(src_col, tgt_row, tgt_col, ea_b, x_b, expand_b,
      w1_b, b1_p, w2_b, b2_p, wroot_b, broot_p, sel_b,
      w3s_b, w3t_b, b3_p, w4_b, b4_p)

    return out_pad[:E, :edge_dim]


def reference_forward(edge_index, edge_attr, params):
    """Pure-JAX f32 reference mirroring PyG NNConv(aggr='mean') + MLP decoder."""
    src, tgt = edge_index[0], edge_index[1]
    x = params["x"]
    N, D = x.shape
    L = params["wroot"].shape[1]
    h = jax.nn.relu(edge_attr @ params["w1"] + params["b1"][0])
    W_e = (h @ params["w2"] + params["b2"][0]).reshape(-1, D, L)
    msg = jnp.einsum("ek,ekl->el", x[src], W_e)
    agg = jax.ops.segment_sum(msg, tgt, num_segments=N)
    cnt = jax.ops.segment_sum(jnp.ones((msg.shape[0],)), tgt, num_segments=N)
    mean_agg = agg / jnp.maximum(cnt, 1.0)[:, None]
    latent = mean_agg + x @ params["wroot"] + params["broot"][0]
    z = jnp.concatenate([latent[src], latent[tgt]], axis=1)
    h2 = jax.nn.relu(z @ params["w3"] + params["b3"][0])
    return h2 @ params["w4"] + params["b4"][0]


def make_params(key, num_nodes, embedding_dim, latent_dim, edge_dim):
    ks = jax.random.split(key, 10)
    s = 0.1
    return {
        # nn.Embedding weight -> dense node features
        "x": jax.random.normal(ks[0], (num_nodes, embedding_dim), jnp.float32),
        # edge_weight_encoder: Linear(edge_dim,64) -> ReLU -> Linear(64, emb*latent)
        "w1": s * jax.random.normal(ks[1], (edge_dim, 64), jnp.float32),
        "b1": s * jax.random.normal(ks[2], (1, 64), jnp.float32),
        "w2": s * jax.random.normal(ks[3], (64, embedding_dim * latent_dim), jnp.float32),
        "b2": s * jax.random.normal(ks[4], (1, embedding_dim * latent_dim), jnp.float32),
        # NNConv root linear (bias=False) and NNConv bias
        "wroot": s * jax.random.normal(ks[5], (embedding_dim, latent_dim), jnp.float32),
        "broot": s * jax.random.normal(ks[6], (1, latent_dim), jnp.float32),
        # edge_predictor: Linear(2*latent,64) -> ReLU -> Linear(64, edge_dim)
        "w3": s * jax.random.normal(ks[7], (2 * latent_dim, 64), jnp.float32),
        "b3": s * jax.random.normal(ks[8], (1, 64), jnp.float32),
        "w4": s * jax.random.normal(ks[9], (64, edge_dim), jnp.float32),
        "b4": jnp.zeros((1, edge_dim), jnp.float32),
    }


if __name__ == "__main__":
    num_nodes = 8
    embedding_dim = 16
    latent_dim = 8
    edge_dim = 4
    num_edges = 16

    key = jax.random.PRNGKey(0)
    k_p, k_src, k_tgt, k_ea = jax.random.split(key, 4)
    params = make_params(k_p, num_nodes, embedding_dim, latent_dim, edge_dim)

    edge_index = jnp.stack([
        jax.random.randint(k_src, (num_edges,), 0, num_nodes),
        jax.random.randint(k_tgt, (num_edges,), 0, num_nodes),
    ]).astype(jnp.int32)                                     # (2, E)
    edge_attr = jax.random.normal(k_ea, (num_edges, edge_dim), jnp.float32)

    out = graph_autoencoder_forward(edge_index, edge_attr, params)
    out = jax.block_until_ready(out)

    ref = reference_forward(edge_index, edge_attr, params)
    assert out.shape == (num_edges, edge_dim)
    # bf16 MXU operands with f32 accumulation: expected error well below 2e-2
    assert jnp.allclose(out, ref, atol=2e-2, rtol=2e-2), (
        "mismatch vs reference, max abs err = "
        f"{float(jnp.max(jnp.abs(out - ref)))}")
    print("KERNEL_OK")
</pallas_src>

<mosaic_0001>
module attributes {stable_mosaic.version = 11 : i64} {
  func.func @_gae_kernel(%arg0: i32, %arg1: i32, %arg2: memref<128x1xi32, #tpu.memory_space<vmem>>, %arg3: memref<1x128xi32, #tpu.memory_space<vmem>>, %arg4: memref<128x1xi32, #tpu.memory_space<vmem>>, %arg5: memref<128x128xbf16, #tpu.memory_space<vmem>>, %arg6: memref<128x128xbf16, #tpu.memory_space<vmem>>, %arg7: memref<128x128xbf16, #tpu.memory_space<vmem>>, %arg8: memref<128x128xbf16, #tpu.memory_space<vmem>>, %arg9: memref<1x128xf32, #tpu.memory_space<vmem>>, %arg10: memref<128x128xbf16, #tpu.memory_space<vmem>>, %arg11: memref<1x128xf32, #tpu.memory_space<vmem>>, %arg12: memref<128x128xbf16, #tpu.memory_space<vmem>>, %arg13: memref<1x128xf32, #tpu.memory_space<vmem>>, %arg14: memref<128x128xbf16, #tpu.memory_space<vmem>>, %arg15: memref<128x128xbf16, #tpu.memory_space<vmem>>, %arg16: memref<128x128xbf16, #tpu.memory_space<vmem>>, %arg17: memref<1x128xf32, #tpu.memory_space<vmem>>, %arg18: memref<128x128xbf16, #tpu.memory_space<vmem>>, %arg19: memref<1x128xf32, #tpu.memory_space<vmem>>, %arg20: memref<128x128xf32, #tpu.memory_space<vmem>>, %arg21: memref<128x128xf32, #tpu.memory_space<vmem>>, %arg22: memref<128x128xbf16, #tpu.memory_space<vmem>>, %arg23: memref<128x128xbf16, #tpu.memory_space<vmem>>) attributes {dimension_semantics = [#tpu.dimension_semantics<arbitrary>, #tpu.dimension_semantics<arbitrary>], iteration_bounds = array<i64: 2, 1>, scalar_prefetch = 0 : i64, scratch_operands = 3 : i64, tpu.core_type = #tpu.core_type<tc>, window_params = [{transform_indices = @transform_0, window_bounds = array<i64: 128, 1>}, {transform_indices = @transform_1, window_bounds = array<i64: 1, 128>}, {transform_indices = @transform_2, window_bounds = array<i64: 128, 1>}, {transform_indices = @transform_3, window_bounds = array<i64: 128, 128>}, {pipeline_mode = #tpu.pipeline_mode<synchronous>, transform_indices = @transform_4, window_bounds = array<i64: 128, 128>}, {pipeline_mode = #tpu.pipeline_mode<synchronous>, transform_indices = @transform_5, window_bounds = array<i64: 128, 128>}, {pipeline_mode = #tpu.pipeline_mode<synchronous>, transform_indices = @transform_6, window_bounds = array<i64: 128, 128>}, {pipeline_mode = #tpu.pipeline_mode<synchronous>, transform_indices = @transform_7, window_bounds = array<i64: 1, 128>}, {pipeline_mode = #tpu.pipeline_mode<synchronous>, transform_indices = @transform_8, window_bounds = array<i64: 128, 128>}, {pipeline_mode = #tpu.pipeline_mode<synchronous>, transform_indices = @transform_9, window_bounds = array<i64: 1, 128>}, {pipeline_mode = #tpu.pipeline_mode<synchronous>, transform_indices = @transform_10, window_bounds = array<i64: 128, 128>}, {pipeline_mode = #tpu.pipeline_mode<synchronous>, transform_indices = @transform_11, window_bounds = array<i64: 1, 128>}, {pipeline_mode = #tpu.pipeline_mode<synchronous>, transform_indices = @transform_12, window_bounds = array<i64: 128, 128>}, {pipeline_mode = #tpu.pipeline_mode<synchronous>, transform_indices = @transform_13, window_bounds = array<i64: 128, 128>}, {pipeline_mode = #tpu.pipeline_mode<synchronous>, transform_indices = @transform_14, window_bounds = array<i64: 128, 128>}, {pipeline_mode = #tpu.pipeline_mode<synchronous>, transform_indices = @transform_15, window_bounds = array<i64: 1, 128>}, {pipeline_mode = #tpu.pipeline_mode<synchronous>, transform_indices = @transform_16, window_bounds = array<i64: 128, 128>}, {pipeline_mode = #tpu.pipeline_mode<synchronous>, transform_indices = @transform_17, window_bounds = array<i64: 1, 128>}, {transform_indices = @transform_18, window_bounds = array<i64: 128, 128>}]} {
    %c0_i32 = arith.constant 0 : i32
    %0 = arith.cmpi eq, %arg0, %c0_i32 : i32
    %c0_i32_0 = arith.constant 0 : i32
    %1 = arith.cmpi eq, %arg1, %c0_i32_0 : i32
    %2 = arith.andi %0, %1 : i1
    %3 = arith.extui %2 : i1 to i32
    %c0_i32_1 = arith.constant 0 : i32
    %4 = arith.cmpi ne, %3, %c0_i32_1 : i32
    scf.if %4 {
      %cst = arith.constant 0.000000e+00 : f32
      %11 = vector.broadcast %cst : f32 to vector<128x128xf32>
      %c0 = arith.constant 0 : index
      %c0_5 = arith.constant 0 : index
      %12 = vector.load %arg21[%c0, %c0_5] : memref<128x128xf32, #tpu.memory_space<vmem>>, vector<128x128xf32>
      tpu.vector_store %arg21[%c0, %c0_5], %11 {strides = array<i32>} : memref<128x128xf32, #tpu.memory_space<vmem>>, vector<128x128xf32>,
    } else {
    }
    %c0_i32_2 = arith.constant 0 : i32
    %5 = arith.cmpi eq, %arg0, %c0_i32_2 : i32
    %6 = arith.extui %5 : i1 to i32
    %c0_i32_3 = arith.constant 0 : i32
    %7 = arith.cmpi ne, %6, %c0_i32_3 : i32
    scf.if %7 {
      %c0 = arith.constant 0 : index
      %c0_5 = arith.constant 0 : index
      %11 = vector.load %arg5[%c0, %c0_5] : memref<128x128xbf16, #tpu.memory_space<vmem>>, vector<128x128xbf16>
      %c0_6 = arith.constant 0 : index
      %c0_7 = arith.constant 0 : index
      %12 = vector.load %arg8[%c0_6, %c0_7] : memref<128x128xbf16, #tpu.memory_space<vmem>>, vector<128x128xbf16>
      %cst = arith.constant dense<0.000000e+00> : vector<128x128xf32>
      %13 = tpu.matmul %11, %12, %cst {dimension_numbers = #tpu.dot_dimension_numbers<[1], [0], [0], [1], [0, 0, 1, 1], [], []>} : vector<128x128xbf16>, vector<128x128xbf16>, vector<128x128xf32> -> vector<128x128xf32>
      %c0_8 = arith.constant 0 : index
      %c0_9 = arith.constant 0 : index
      %14 = vector.load %arg9[%c0_8, %c0_9] : memref<1x128xf32, #tpu.memory_space<vmem>>, vector<1x128xf32>
      %15 = vector.broadcast %14 : vector<1x128xf32> to vector<128x128xf32>
      %16 = arith.addf %13, %15 : vector<128x128xf32>
      %cst_10 = arith.constant 0.000000e+00 : f32
      %17 = vector.broadcast %cst_10 : f32 to vector<128x128xf32>
      %18 = arith.maximumf %16, %17 : vector<128x128xf32>
      %19 = arith.truncf %18 : vector<128x128xf32> to vector<128x128xbf16>
      %c0_11 = arith.constant 0 : index
      %c0_12 = arith.constant 0 : index
      %20 = vector.load %arg10[%c0_11, %c0_12] : memref<128x128xbf16, #tpu.memory_space<vmem>>, vector<128x128xbf16>
      %cst_13 = arith.constant dense<0.000000e+00> : vector<128x128xf32>
      %21 = tpu.matmul %19, %20, %cst_13 {dimension_numbers = #tpu.dot_dimension_numbers<[1], [0], [0], [1], [0, 0, 1, 1], [], []>} : vector<128x128xbf16>, vector<128x128xbf16>, vector<128x128xf32> -> vector<128x128xf32>
      %c0_14 = arith.constant 0 : index
      %c0_15 = arith.constant 0 : index
      %22 = vector.load %arg11[%c0_14, %c0_15] : memref<1x128xf32, #tpu.memory_space<vmem>>, vector<1x128xf32>
      %23 = vector.broadcast %22 : vector<1x128xf32> to vector<128x128xf32>
      %24 = arith.addf %21, %23 : vector<128x128xf32>
      %25 = tpu.iota {dimensions = array<i32: 1>} : vector<128x128xi32>
      %c0_16 = arith.constant 0 : index
      %c0_17 = arith.constant 0 : index
      %26 = vector.load %arg2[%c0_16, %c0_17] : memref<128x1xi32, #tpu.memory_space<vmem>>, vector<128x1xi32>
      %27 = vector.broadcast %26 : vector<128x1xi32> to vector<128x128xi32>
      %28 = arith.cmpi eq, %25, %27 : vector<128x128xi32>
      %29 = arith.extui %28 : vector<128x128xi1> to vector<128x128xi32>
      %30 = arith.sitofp %29 : vector<128x128xi32> to vector<128x128xf32>
      %31 = arith.truncf %30 : vector<128x128xf32> to vector<128x128xbf16>
      %c0_18 = arith.constant 0 : index
      %c0_19 = arith.constant 0 : index
      %32 = vector.load %arg6[%c0_18, %c0_19] : memref<128x128xbf16, #tpu.memory_space<vmem>>, vector<128x128xbf16>
      %cst_20 = arith.constant dense<0.000000e+00> : vector<128x128xf32>
      %33 = tpu.matmul %31, %32, %cst_20 {dimension_numbers = #tpu.dot_dimension_numbers<[1], [0], [0], [1], [0, 0, 1, 1], [], []>} : vector<128x128xbf16>, vector<128x128xbf16>, vector<128x128xf32> -> vector<128x128xf32>
      %34 = arith.truncf %33 : vector<128x128xf32> to vector<128x128xbf16>
      %c0_21 = arith.constant 0 : index
      %c0_22 = arith.constant 0 : index
      %35 = vector.load %arg7[%c0_21, %c0_22] : memref<128x128xbf16, #tpu.memory_space<vmem>>, vector<128x128xbf16>
      %cst_23 = arith.constant dense<0.000000e+00> : vector<128x128xf32>
      %36 = tpu.matmul %34, %35, %cst_23 {dimension_numbers = #tpu.dot_dimension_numbers<[1], [0], [0], [1], [0, 0, 1, 1], [], []>} : vector<128x128xbf16>, vector<128x128xbf16>, vector<128x128xf32> -> vector<128x128xf32>
      %37 = arith.mulf %36, %24 : vector<128x128xf32>
      %38 = arith.truncf %37 : vector<128x128xf32> to vector<128x128xbf16>
      %c0_24 = arith.constant 0 : index
      %c0_25 = arith.constant 0 : index
      %39 = vector.load %arg14[%c0_24, %c0_25] : memref<128x128xbf16, #tpu.memory_space<vmem>>, vector<128x128xbf16>
      %cst_26 = arith.constant dense<0.000000e+00> : vector<128x128xf32>
      %40 = tpu.matmul %38, %39, %cst_26 {dimension_numbers = #tpu.dot_dimension_numbers<[1], [0], [0], [1], [0, 0, 1, 1], [], []>} : vector<128x128xbf16>, vector<128x128xbf16>, vector<128x128xf32> -> vector<128x128xf32>
      %41 = tpu.iota {dimensions = array<i32: 1>} : vector<1x128xi32>
      %c8_i32 = arith.constant 8 : i32
      %42 = vector.broadcast %c8_i32 : i32 to vector<1x128xi32>
      %43 = arith.cmpi eq, %41, %42 : vector<1x128xi32>
      %44 = arith.extui %43 : vector<1x128xi1> to vector<1x128xi32>
      %45 = arith.sitofp %44 : vector<1x128xi32> to vector<1x128xf32>
      %46 = vector.broadcast %45 : vector<1x128xf32> to vector<128x128xf32>
      %47 = arith.addf %40, %46 : vector<128x128xf32>
      %48 = tpu.iota {dimensions = array<i32: 0>} : vector<128x128xi32>
      %c0_27 = arith.constant 0 : index
      %c0_28 = arith.constant 0 : index
      %49 = vector.load %arg3[%c0_27, %c0_28] : memref<1x128xi32, #tpu.memory_space<vmem>>, vector<1x128xi32>
      %50 = vector.broadcast %49 : vector<1x128xi32> to vector<128x128xi32>
      %51 = arith.cmpi eq, %48, %50 : vector<128x128xi32>
      %52 = arith.extui %51 : vector<128x128xi1> to vector<128x128xi32>
      %53 = arith.sitofp %52 : vector<128x128xi32> to vector<128x128xf32>
      %54 = arith.truncf %53 : vector<128x128xf32> to vector<128x128xbf16>
      %c0_29 = arith.constant 0 : index
      %c0_30 = arith.constant 0 : index
      %55 = vector.load %arg21[%c0_29, %c0_30] : memref<128x128xf32, #tpu.memory_space<vmem>>, vector<128x128xf32>
      %56 = arith.truncf %47 : vector<128x128xf32> to vector<128x128xbf16>
      %cst_31 = arith.constant dense<0.000000e+00> : vector<128x128xf32>
      %57 = tpu.matmul %54, %56, %cst_31 {dimension_numbers = #tpu.dot_dimension_numbers<[1], [0], [0], [1], [0, 0, 1, 1], [], []>} : vector<128x128xbf16>, vector<128x128xbf16>, vector<128x128xf32> -> vector<128x128xf32>
      %58 = arith.addf %55, %57 : vector<128x128xf32>
      %c0_32 = arith.constant 0 : index
      %c0_33 = arith.constant 0 : index
      %59 = vector.load %arg21[%c0_32, %c0_33] : memref<128x128xf32, #tpu.memory_space<vmem>>, vector<128x128xf32>
      tpu.vector_store %arg21[%c0_32, %c0_33], %58 {strides = array<i32>} : memref<128x128xf32, #tpu.memory_space<vmem>>, vector<128x128xf32>,
      %c0_i32_34 = arith.constant 0 : i32
      %60 = arith.cmpi eq, %arg1, %c0_i32_34 : i32
      %61 = arith.extui %60 : i1 to i32
      %c0_i32_35 = arith.constant 0 : i32
      %62 = arith.cmpi ne, %61, %c0_i32_35 : i32
      scf.if %62 {
        %c0_36 = arith.constant 0 : index
        %c0_37 = arith.constant 0 : index
        %63 = vector.load %arg21[%c0_36, %c0_37] : memref<128x128xf32, #tpu.memory_space<vmem>>, vector<128x128xf32>
        %64 = vector.extract_strided_slice %63 {offsets = [0, 8], sizes = [128, 1], strides = [1, 1]} : vector<128x128xf32> to vector<128x1xf32>
        %cst_38 = arith.constant 1.000000e+00 : f32
        %65 = vector.broadcast %cst_38 : f32 to vector<128x1xf32>
        %66 = arith.maximumf %64, %65 : vector<128x1xf32>
        %67 = tpu.iota {dimensions = array<i32: 1>} : vector<1x128xi32>
        %c8_i32_39 = arith.constant 8 : i32
        %68 = vector.broadcast %c8_i32_39 : i32 to vector<1x128xi32>
        %69 = arith.cmpi slt, %67, %68 : vector<1x128xi32>
        %70 = arith.extui %69 : vector<1x128xi1> to vector<1x128xi32>
        %71 = arith.sitofp %70 : vector<1x128xi32> to vector<1x128xf32>
        %72 = vector.broadcast %71 : vector<1x128xf32> to vector<128x128xf32>
        %73 = arith.mulf %63, %72 : vector<128x128xf32>
        %74 = tpu.reciprocal %66 {approx = true} : vector<128x1xf32> -> vector<128x1xf32>
        %75 = vector.broadcast %74 : vector<128x1xf32> to vector<128x128xf32>
        %76 = arith.mulf %73, %75 : vector<128x128xf32>
        %c0_40 = arith.constant 0 : index
        %c0_41 = arith.constant 0 : index
        %77 = vector.load %arg6[%c0_40, %c0_41] : memref<128x128xbf16, #tpu.memory_space<vmem>>, vector<128x128xbf16>
        %c0_42 = arith.constant 0 : index
        %c0_43 = arith.constant 0 : index
        %78 = vector.load %arg12[%c0_42, %c0_43] : memref<128x128xbf16, #tpu.memory_space<vmem>>, vector<128x128xbf16>
        %cst_44 = arith.constant dense<0.000000e+00> : vector<128x128xf32>
        %79 = tpu.matmul %77, %78, %cst_44 {dimension_numbers = #tpu.dot_dimension_numbers<[1], [0], [0], [1], [0, 0, 1, 1], [], []>} : vector<128x128xbf16>, vector<128x128xbf16>, vector<128x128xf32> -> vector<128x128xf32>
        %80 = arith.addf %76, %79 : vector<128x128xf32>
        %c0_45 = arith.constant 0 : index
        %c0_46 = arith.constant 0 : index
        %81 = vector.load %arg13[%c0_45, %c0_46] : memref<1x128xf32, #tpu.memory_space<vmem>>, vector<1x128xf32>
        %82 = vector.broadcast %81 : vector<1x128xf32> to vector<128x128xf32>
        %83 = arith.addf %80, %82 : vector<128x128xf32>
        %84 = arith.truncf %83 : vector<128x128xf32> to vector<128x128xbf16>
        %c0_47 = arith.constant 0 : index
        %c0_48 = arith.constant 0 : index
        %85 = vector.load %arg15[%c0_47, %c0_48] : memref<128x128xbf16, #tpu.memory_space<vmem>>, vector<128x128xbf16>
        %cst_49 = arith.constant dense<0.000000e+00> : vector<128x128xf32>
        %86 = tpu.matmul %84, %85, %cst_49 {dimension_numbers = #tpu.dot_dimension_numbers<[1], [0], [0], [1], [0, 0, 1, 1], [], []>} : vector<128x128xbf16>, vector<128x128xbf16>, vector<128x128xf32> -> vector<128x128xf32>
        %87 = arith.truncf %86 : vector<128x128xf32> to vector<128x128xbf16>
        %c0_50 = arith.constant 0 : index
        %c0_51 = arith.constant 0 : index
        %88 = vector.load %arg22[%c0_50, %c0_51] : memref<128x128xbf16, #tpu.memory_space<vmem>>, vector<128x128xbf16>
        tpu.vector_store %arg22[%c0_50, %c0_51], %87 {strides = array<i32>} : memref<128x128xbf16, #tpu.memory_space<vmem>>, vector<128x128xbf16>,
        %c0_52 = arith.constant 0 : index
        %c0_53 = arith.constant 0 : index
        %89 = vector.load %arg16[%c0_52, %c0_53] : memref<128x128xbf16, #tpu.memory_space<vmem>>, vector<128x128xbf16>
        %cst_54 = arith.constant dense<0.000000e+00> : vector<128x128xf32>
        %90 = tpu.matmul %84, %89, %cst_54 {dimension_numbers = #tpu.dot_dimension_numbers<[1], [0], [0], [1], [0, 0, 1, 1], [], []>} : vector<128x128xbf16>, vector<128x128xbf16>, vector<128x128xf32> -> vector<128x128xf32>
        %91 = arith.truncf %90 : vector<128x128xf32> to vector<128x128xbf16>
        %c0_55 = arith.constant 0 : index
        %c0_56 = arith.constant 0 : index
        %92 = vector.load %arg23[%c0_55, %c0_56] : memref<128x128xbf16, #tpu.memory_space<vmem>>, vector<128x128xbf16>
        tpu.vector_store %arg23[%c0_55, %c0_56], %91 {strides = array<i32>} : memref<128x128xbf16, #tpu.memory_space<vmem>>, vector<128x128xbf16>,
      } else {
      }
    } else {
    }
    %c1_i32 = arith.constant 1 : i32
    %8 = arith.cmpi eq, %arg0, %c1_i32 : i32
    %9 = arith.extui %8 : i1 to i32
    %c0_i32_4 = arith.constant 0 : i32
    %10 = arith.cmpi ne, %9, %c0_i32_4 : i32
    scf.if %10 {
      %11 = tpu.iota {dimensions = array<i32: 1>} : vector<128x128xi32>
      %c0 = arith.constant 0 : index
      %c0_5 = arith.constant 0 : index
      %12 = vector.load %arg2[%c0, %c0_5] : memref<128x1xi32, #tpu.memory_space<vmem>>, vector<128x1xi32>
      %13 = vector.broadcast %12 : vector<128x1xi32> to vector<128x128xi32>
      %14 = arith.cmpi eq, %11, %13 : vector<128x128xi32>
      %15 = arith.extui %14 : vector<128x128xi1> to vector<128x128xi32>
      %16 = arith.sitofp %15 : vector<128x128xi32> to vector<128x128xf32>
      %17 = arith.truncf %16 : vector<128x128xf32> to vector<128x128xbf16>
      %c0_6 = arith.constant 0 : index
      %c0_7 = arith.constant 0 : index
      %18 = vector.load %arg4[%c0_6, %c0_7] : memref<128x1xi32, #tpu.memory_space<vmem>>, vector<128x1xi32>
      %19 = vector.broadcast %18 : vector<128x1xi32> to vector<128x128xi32>
      %20 = arith.cmpi eq, %11, %19 : vector<128x128xi32>
      %21 = arith.extui %20 : vector<128x128xi1> to vector<128x128xi32>
      %22 = arith.sitofp %21 : vector<128x128xi32> to vector<128x128xf32>
      %23 = arith.truncf %22 : vector<128x128xf32> to vector<128x128xbf16>
      %c0_8 = arith.constant 0 : index
      %c0_9 = arith.constant 0 : index
      %24 = vector.load %arg22[%c0_8, %c0_9] : memref<128x128xbf16, #tpu.memory_space<vmem>>, vector<128x128xbf16>
      %cst = arith.constant dense<0.000000e+00> : vector<128x128xf32>
      %25 = tpu.matmul %17, %24, %cst {dimension_numbers = #tpu.dot_dimension_numbers<[1], [0], [0], [1], [0, 0, 1, 1], [], []>} : vector<128x128xbf16>, vector<128x128xbf16>, vector<128x128xf32> -> vector<128x128xf32>
      %c0_10 = arith.constant 0 : index
      %c0_11 = arith.constant 0 : index
      %26 = vector.load %arg23[%c0_10, %c0_11] : memref<128x128xbf16, #tpu.memory_space<vmem>>, vector<128x128xbf16>
      %cst_12 = arith.constant dense<0.000000e+00> : vector<128x128xf32>
      %27 = tpu.matmul %23, %26, %cst_12 {dimension_numbers = #tpu.dot_dimension_numbers<[1], [0], [0], [1], [0, 0, 1, 1], [], []>} : vector<128x128xbf16>, vector<128x128xbf16>, vector<128x128xf32> -> vector<128x128xf32>
      %28 = arith.addf %25, %27 : vector<128x128xf32>
      %c0_13 = arith.constant 0 : index
      %c0_14 = arith.constant 0 : index
      %29 = vector.load %arg17[%c0_13, %c0_14] : memref<1x128xf32, #tpu.memory_space<vmem>>, vector<1x128xf32>
      %30 = vector.broadcast %29 : vector<1x128xf32> to vector<128x128xf32>
      %31 = arith.addf %28, %30 : vector<128x128xf32>
      %cst_15 = arith.constant 0.000000e+00 : f32
      %32 = vector.broadcast %cst_15 : f32 to vector<128x128xf32>
      %33 = arith.maximumf %31, %32 : vector<128x128xf32>
      %34 = arith.truncf %33 : vector<128x128xf32> to vector<128x128xbf16>
      %c0_16 = arith.constant 0 : index
      %c0_17 = arith.constant 0 : index
      %35 = vector.load %arg18[%c0_16, %c0_17] : memref<128x128xbf16, #tpu.memory_space<vmem>>, vector<128x128xbf16>
      %cst_18 = arith.constant dense<0.000000e+00> : vector<128x128xf32>
      %36 = tpu.matmul %34, %35, %cst_18 {dimension_numbers = #tpu.dot_dimension_numbers<[1], [0], [0], [1], [0, 0, 1, 1], [], []>} : vector<128x128xbf16>, vector<128x128xbf16>, vector<128x128xf32> -> vector<128x128xf32>
      %c0_19 = arith.constant 0 : index
      %c0_20 = arith.constant 0 : index
      %37 = vector.load %arg19[%c0_19, %c0_20] : memref<1x128xf32, #tpu.memory_space<vmem>>, vector<1x128xf32>
      %38 = vector.broadcast %37 : vector<1x128xf32> to vector<128x128xf32>
      %39 = arith.addf %36, %38 : vector<128x128xf32>
      %c0_21 = arith.constant 0 : index
      %c0_22 = arith.constant 0 : index
      %40 = vector.load %arg20[%c0_21, %c0_22] : memref<128x128xf32, #tpu.memory_space<vmem>>, vector<128x128xf32>
      tpu.vector_store %arg20[%c0_21, %c0_22], %39 {strides = array<i32>} : memref<128x128xf32, #tpu.memory_space<vmem>>, vector<128x128xf32>,
    } else {
    }
    return
  }
  func.func @transform_0(%arg0: i32, %arg1: i32) -> (i32, i32) {
    %c0_i32 = arith.constant 0 : i32
    %c0_i32_0 = arith.constant 0 : i32
    return %arg1, %c0_i32 : i32, i32
  }
  func.func @transform_1(%arg0: i32, %arg1: i32) -> (i32, i32) {
    %c1_i32 = arith.constant 1 : i32
    %0 = arith.subi %c1_i32, %arg0 : i32
    %1 = arith.muli %arg1, %0 : i32
    %c0_i32 = arith.constant 0 : i32
    %c0_i32_0 = arith.constant 0 : i32
    return %c0_i32, %1 : i32, i32
  }
  func.func @transform_2(%arg0: i32, %arg1: i32) -> (i32, i32) {
    %0 = arith.muli %arg1, %arg0 : i32
    %c0_i32 = arith.constant 0 : i32
    %c0_i32_0 = arith.constant 0 : i32
    return %0, %c0_i32 : i32, i32
  }
  func.func @transform_3(%arg0: i32, %arg1: i32) -> (i32, i32) {
    %c1_i32 = arith.constant 1 : i32
    %0 = arith.subi %c1_i32, %arg0 : i32
    %1 = arith.muli %arg1, %0 : i32
    %c0_i32 = arith.constant 0 : i32
    %c0_i32_0 = arith.constant 0 : i32
    return %1, %c0_i32 : i32, i32
  }
  func.func @transform_4(%arg0: i32, %arg1: i32) -> (i32, i32) {
    %c0_i32 = arith.constant 0 : i32
    %c0_i32_0 = arith.constant 0 : i32
    %c0_i32_1 = arith.constant 0 : i32
    return %c0_i32, %c0_i32_0 : i32, i32
  }
  func.func @transform_5(%arg0: i32, %arg1: i32) -> (i32, i32) {
    %c0_i32 = arith.constant 0 : i32
    %c0_i32_0 = arith.constant 0 : i32
    %c0_i32_1 = arith.constant 0 : i32
    return %c0_i32, %c0_i32_0 : i32, i32
  }
  func.func @transform_6(%arg0: i32, %arg1: i32) -> (i32, i32) {
    %c0_i32 = arith.constant 0 : i32
    %c0_i32_0 = arith.constant 0 : i32
    %c0_i32_1 = arith.constant 0 : i32
    return %c0_i32, %c0_i32_0 : i32, i32
  }
  func.func @transform_7(%arg0: i32, %arg1: i32) -> (i32, i32) {
    %c0_i32 = arith.constant 0 : i32
    %c0_i32_0 = arith.constant 0 : i32
    %c0_i32_1 = arith.constant 0 : i32
    return %c0_i32, %c0_i32_0 : i32, i32
  }
  func.func @transform_8(%arg0: i32, %arg1: i32) -> (i32, i32) {
    %c0_i32 = arith.constant 0 : i32
    %c0_i32_0 = arith.constant 0 : i32
    %c0_i32_1 = arith.constant 0 : i32
    return %c0_i32, %c0_i32_0 : i32, i32
  }
  func.func @transform_9(%arg0: i32, %arg1: i32) -> (i32, i32) {
    %c0_i32 = arith.constant 0 : i32
    %c0_i32_0 = arith.constant 0 : i32
    %c0_i32_1 = arith.constant 0 : i32
    return %c0_i32, %c0_i32_0 : i32, i32
  }
  func.func @transform_10(%arg0: i32, %arg1: i32) -> (i32, i32) {
    %c0_i32 = arith.constant 0 : i32
    %c0_i32_0 = arith.constant 0 : i32
    %c0_i32_1 = arith.constant 0 : i32
    return %c0_i32, %c0_i32_0 : i32, i32
  }
  func.func @transform_11(%arg0: i32, %arg1: i32) -> (i32, i32) {
    %c0_i32 = arith.constant 0 : i32
    %c0_i32_0 = arith.constant 0 : i32
    %c0_i32_1 = arith.constant 0 : i32
    return %c0_i32, %c0_i32_0 : i32, i32
  }
  func.func @transform_12(%arg0: i32, %arg1: i32) -> (i32, i32) {
    %c0_i32 = arith.constant 0 : i32
    %c0_i32_0 = arith.constant 0 : i32
    %c0_i32_1 = arith.constant 0 : i32
    return %c0_i32, %c0_i32_0 : i32, i32
  }
  func.func @transform_13(%arg0: i32, %arg1: i32) -> (i32, i32) {
    %c0_i32 = arith.constant 0 : i32
    %c0_i32_0 = arith.constant 0 : i32
    %c0_i32_1 = arith.constant 0 : i32
    return %c0_i32, %c0_i32_0 : i32, i32
  }
  func.func @transform_14(%arg0: i32, %arg1: i32) -> (i32, i32) {
    %c0_i32 = arith.constant 0 : i32
    %c0_i32_0 = arith.constant 0 : i32
    %c0_i32_1 = arith.constant 0 : i32
    return %c0_i32, %c0_i32_0 : i32, i32
  }
  func.func @transform_15(%arg0: i32, %arg1: i32) -> (i32, i32) {
    %c0_i32 = arith.constant 0 : i32
    %c0_i32_0 = arith.constant 0 : i32
    %c0_i32_1 = arith.constant 0 : i32
    return %c0_i32, %c0_i32_0 : i32, i32
  }
  func.func @transform_16(%arg0: i32, %arg1: i32) -> (i32, i32) {
    %c0_i32 = arith.constant 0 : i32
    %c0_i32_0 = arith.constant 0 : i32
    %c0_i32_1 = arith.constant 0 : i32
    return %c0_i32, %c0_i32_0 : i32, i32
  }
  func.func @transform_17(%arg0: i32, %arg1: i32) -> (i32, i32) {
    %c0_i32 = arith.constant 0 : i32
    %c0_i32_0 = arith.constant 0 : i32
    %c0_i32_1 = arith.constant 0 : i32
    return %c0_i32, %c0_i32_0 : i32, i32
  }
  func.func @transform_18(%arg0: i32, %arg1: i32) -> (i32, i32) {
    %0 = arith.muli %arg1, %arg0 : i32
    %c0_i32 = arith.constant 0 : i32
    %c0_i32_0 = arith.constant 0 : i32
    return %0, %c0_i32 : i32, i32
  }
}

</mosaic_0001>

<llo_original>
// kernel: tpu_custom_call.1
$region0: #{tpu_custom_call.1}
  #allocation0 [shape = 'u32[]', space=smem, size = 0x4, offset = 0x4, fixed_abs, tag = 'smem constant byte address 0x4 - core index']
  #allocation1 [shape = 'u32[144,128]{1,0:T(1,128)}', space=vmem, size = 0x12000, scoped, tag = 'internal scratch']
  #allocation2 [shape = 'f32[128,128]{1,0:T(8,128)}', space=vmem, size = 0x10000, scoped, tag = 'scratch operand']
  #allocation3 [shape = 'bf16[128,128]{1,0:T(16,128)(2,1)}', space=vmem, size = 0x8000, scoped, tag = 'scratch operand']
  #allocation4 [shape = 'bf16[128,128]{1,0:T(16,128)(2,1)}', space=vmem, size = 0x8000, scoped, tag = 'scratch operand']
  %s0 = inlined_call_operand.vmem [shape: s32[128,1], index: 0, kind: input, shape index: {}]
  %s1 = inlined_call_operand.vmem [shape: s32[1,128], index: 1, kind: input, shape index: {}]
  %s2 = inlined_call_operand.vmem [shape: s32[128,1], index: 2, kind: input, shape index: {}]
  %s3 = inlined_call_operand.vmem [shape: bf16[128,128], index: 3, kind: input, shape index: {}]
  %s4 = inlined_call_operand.vmem [shape: bf16[128,128], index: 4, kind: input, shape index: {}]
  %s5 = inlined_call_operand.vmem [shape: bf16[128,128], index: 5, kind: input, shape index: {}]
  %s6 = inlined_call_operand.vmem [shape: bf16[128,128], index: 6, kind: input, shape index: {}]
  %s7 = inlined_call_operand.vmem [shape: f32[1,128], index: 7, kind: input, shape index: {}]
  %s8 = inlined_call_operand.hbm [shape: bf16[128,128], index: 8, kind: input, shape index: {}]
  %s9 = inlined_call_operand.vmem [shape: f32[1,128], index: 9, kind: input, shape index: {}]
  %s10 = inlined_call_operand.hbm [shape: bf16[128,128], index: 10, kind: input, shape index: {}]
  %s11 = inlined_call_operand.vmem [shape: f32[1,128], index: 11, kind: input, shape index: {}]
  %s12 = inlined_call_operand.hbm [shape: bf16[128,128], index: 12, kind: input, shape index: {}]
  %s13 = inlined_call_operand.hbm [shape: bf16[128,128], index: 13, kind: input, shape index: {}]
  %s14 = inlined_call_operand.hbm [shape: bf16[128,128], index: 14, kind: input, shape index: {}]
  %s15 = inlined_call_operand.vmem [shape: f32[1,128], index: 15, kind: input, shape index: {}]
  %s16 = inlined_call_operand.hbm [shape: bf16[128,128], index: 16, kind: input, shape index: {}]
  %s17 = inlined_call_operand.vmem [shape: f32[1,128], index: 17, kind: input, shape index: {}]
  %s18 = inlined_call_operand.hbm [shape: f32[128,128], index: 18, kind: output, shape index: {}]
  %s19 = sld [smem:[#allocation0]]
  $region145: #{tpu_custom_call.1} parent=0
    _
  %s21 = ssub.s32 1, %s19
  %s22 = scalar_select 0, %s21, %s19
  $region1: #{tpu_custom_call.1} parent=0
    #allocation5 [shape = 'u8[32768]{0}', space=vmem, size = 0x8000, scoped, tag = 'input window, operand 8, single buffered']
    #allocation6 [shape = 's32[2]{0}', space=sflag, size = 0x8, scoped, tag = 'scoped memory for tpu_custom_call.1']
    #allocation7 [shape = 's32[2]{0}', space=sflag, size = 0x8, scoped, tag = 'scoped memory for tpu_custom_call.1']
    #allocation8 [shape = 'u8[32768]{0}', space=vmem, size = 0x8000, scoped, tag = 'input window, operand 10, single buffered']
    #allocation9 [shape = 's32[1]{0}', space=sflag, size = 0x4, scoped, tag = 'scoped memory for tpu_custom_call.1']
    #allocation10 [shape = 'u8[32768]{0}', space=vmem, size = 0x8000, scoped, tag = 'input window, operand 12, single buffered']
    #allocation11 [shape = 'u8[32768]{0}', space=vmem, size = 0x8000, scoped, tag = 'input window, operand 13, single buffered']
    #allocation12 [shape = 's32[1]{0}', space=sflag, size = 0x4, scoped, tag = 'scoped memory for tpu_custom_call.1']
    #allocation13 [shape = 'u8[32768]{0}', space=vmem, size = 0x8000, scoped, tag = 'input window, operand 14, single buffered']
    #allocation14 [shape = 'u8[32768]{0}', space=vmem, size = 0x8000, scoped, tag = 'input window, operand 16, single buffered']
    #allocation15 [shape = 's32[1]{0}', space=sflag, size = 0x4, scoped, tag = 'scoped memory for tpu_custom_call.1']
    #allocation16 [shape = 'u8[131072]{0}', space=vmem, size = 0x20000, scoped, tag = 'output window, operand 0']
    %23 = vsyncpa [#allocation6], 0
    %24 = vsyncpa [#allocation9], 0
    %25 = vsyncpa [#allocation12], 0
    %26 = vsyncpa [#allocation15], 0
    %27 = vsyncpa [#allocation7], 0
    %s28 = scalar_lea.sflag [#allocation7], 1
    %29 = vsyncpa %s28, 0
    loop: start=0, step=1, limit=4
    $region2: #{tpu_custom_call.1} parent=1 // loop_pre_header
      _
    $region3: #{tpu_custom_call.1} parent=1 // loop_header
      %s31 = sphi 0, %s35
      %p32 = scmp.ge.s32.totalorder %s31, 4
      %s38 = sphi 0, %s50
      %s39 = sphi 0, %s46
      %s40 = sphi 0, %s38
      %s41 = sphi 0, %s39
      %s42 = sphi 0, %s40
      %s43 = sphi 0, %s41
      %s53 = sphi 0, %s55
      %s56 = sphi 0, %s53
      %s57 = sphi 0, %s56
      %s73 = sphi 0, %s57
      %s83 = sphi 0, %s85
      %s86 = sphi 0, %s83
      %s87 = sphi 0, %s86
      %s103 = sphi 0, %s87
      %s111 = sphi 0, %s113
      %s114 = sphi 0, %s111
      %s115 = sphi 0, %s114
      %s131 = sphi 0, %s115
      %s141 = sphi 0, %s143
      %s144 = sphi 0, %s141
      %s145 = sphi 0, %s144
      %s161 = sphi 0, %s145
      %s165 = sphi 0, %s165
      %s167 = sphi 0, %s165
      %s168 = sphi 0, %s167
      %s182 = sphi 0, %s168
      %s186 = sphi 0, %s186
      %s188 = sphi 0, %s186
      %s189 = sphi 0, %s188
      %s203 = sphi 0, %s189
      %s207 = sphi 0, %s207
      %s209 = sphi 0, %s207
      %s210 = sphi 0, %s209
      %s224 = sphi 0, %s210
      %s228 = sphi 0, %s228
      %s230 = sphi 0, %s228
      %s231 = sphi 0, %s230
      %s245 = sphi 0, %s231
      %s249 = sphi 0, %s249
      %s251 = sphi 0, %s249
      %s252 = sphi 0, %s251
      %s266 = sphi 0, %s252
      %s270 = sphi 0, %s270
      %s272 = sphi 0, %s270
      %s273 = sphi 0, %s272
      %s287 = sphi 0, %s273
      %s291 = sphi 0, %s291
      %s293 = sphi 0, %s291
      %s294 = sphi 0, %s293
      %s308 = sphi 0, %s294
      %s312 = sphi 0, %s312
      %s314 = sphi 0, %s312
      %s315 = sphi 0, %s314
      %s329 = sphi 0, %s315
      %s333 = sphi 0, %s333
      %s335 = sphi 0, %s333
      %s336 = sphi 0, %s335
      %s350 = sphi 0, %s336
      %s354 = sphi 0, %s354
      %s356 = sphi 0, %s354
      %s357 = sphi 0, %s356
      %s371 = sphi 0, %s357
      %s375 = sphi 0, %s375
      %s377 = sphi 0, %s375
      %s378 = sphi 0, %s377
      %s392 = sphi 0, %s378
      %s396 = sphi 0, %s396
      %s398 = sphi 0, %s396
      %s399 = sphi 0, %s398
      %s413 = sphi 0, %s399
      %s417 = sphi 0, %s417
      %s419 = sphi 0, %s417
      %s420 = sphi 0, %s419
      %s434 = sphi 0, %s420
      %s438 = sphi 0, %s438
      %s440 = sphi 0, %s438
      %s441 = sphi 0, %s440
      %s455 = sphi 0, %s441
      %s463 = sphi 0, %s465
      %s466 = sphi 0, %s463
      %s467 = sphi 0, %s466
      %s483 = sphi 0, %s467
    $region4: #{tpu_custom_call.1} parent=1 // loop_header_branch
      %34 = sbr.rel (%p32) target = $region8
    $region5: #{tpu_custom_call.1} parent=1 // loop_body
      %s36 = ssub.s32 %s31, 1
      %s37 = ssub.s32 %s31, 2
      %s44 = sadd.s32 1, %s39
      %p45 = scmp.ge.s32.totalorder %s44, 1
      %s46 = scalar_select %p45, 0, %s44
      %s47 = sadd.s32 1, %s38
      %s48 = scalar_select %p45, %s47, %s38
      %p49 = scmp.ge.s32.totalorder %s48, 2
      %s50 = scalar_select %p49, 0, %s48
      %s51 = ssub.s32 %s39, %s46
      %p52 = scmp.eq.s32.totalorder %s51, 0
      %s54 = sadd.s32 %s53, 1
      %s55 = scalar_select %p52, %s53, %s54
      %p58 = pneg %p52
      %p59 = scmp.eq.s32.totalorder %s31, 1
      %p60 = por %p58, %p59
      %p61 = scmp.ne.s32.totalorder %s53, %s56
      %p62 = scmp.eq.s32.totalorder %s31, 0
      %p63 = por %p61, %p62
      %p64 = scmp.ne.s32.totalorder %s53, %s56
      %p65 = scmp.eq.s32.totalorder %s36, 1
      %p66 = por %p64, %p65
      %p67 = scmp.ne.s32.totalorder %s56, %s57
      %p68 = scmp.eq.s32.totalorder %s36, 0
      %p69 = por %p67, %p68
      %p70 = scmp.ne.s32.totalorder %s56, %s57
      %p71 = scmp.eq.s32.totalorder %s37, 1
      %p72 = por %p70, %p71
      %p74 = scmp.ne.s32.totalorder %s57, %s73
      %p75 = scmp.eq.s32.totalorder %s37, 0
      %p76 = por %p74, %p75
      %s77 = ssub.s32 1, %s38
      %s78 = smul.u32 %s39, %s77
      %s79 = ssub.s32 1, %s50
      %s80 = smul.u32 %s46, %s79
      %s81 = ssub.s32 %s78, %s80
      %p82 = scmp.eq.s32.totalorder %s81, 0
      %s84 = sadd.s32 %s83, 1
      %s85 = scalar_select %p82, %s83, %s84
      %p88 = pneg %p82
      %p89 = scmp.eq.s32.totalorder %s31, 1
      %p90 = por %p88, %p89
      %p91 = scmp.ne.s32.totalorder %s83, %s86
      %p92 = scmp.eq.s32.totalorder %s31, 0
      %p93 = por %p91, %p92
      %p94 = scmp.ne.s32.totalorder %s83, %s86
      %p95 = scmp.eq.s32.totalorder %s36, 1
      %p96 = por %p94, %p95
      %p97 = scmp.ne.s32.totalorder %s86, %s87
      %p98 = scmp.eq.s32.totalorder %s36, 0
      %p99 = por %p97, %p98
      %p100 = scmp.ne.s32.totalorder %s86, %s87
      %p101 = scmp.eq.s32.totalorder %s37, 1
      %p102 = por %p100, %p101
      %p104 = scmp.ne.s32.totalorder %s87, %s103
      %p105 = scmp.eq.s32.totalorder %s37, 0
      %p106 = por %p104, %p105
      %s107 = smul.u32 %s39, %s38
      %s108 = smul.u32 %s46, %s50
      %s109 = ssub.s32 %s107, %s108
      %p110 = scmp.eq.s32.totalorder %s109, 0
      %s112 = sadd.s32 %s111, 1
      %s113 = scalar_select %p110, %s111, %s112
      %p116 = pneg %p110
      %p117 = scmp.eq.s32.totalorder %s31, 1
      %p118 = por %p116, %p117
      %p119 = scmp.ne.s32.totalorder %s111, %s114
      %p120 = scmp.eq.s32.totalorder %s31, 0
      %p121 = por %p119, %p120
      %p122 = scmp.ne.s32.totalorder %s111, %s114
      %p123 = scmp.eq.s32.totalorder %s36, 1
      %p124 = por %p122, %p123
      %p125 = scmp.ne.s32.totalorder %s114, %s115
      %p126 = scmp.eq.s32.totalorder %s36, 0
      %p127 = por %p125, %p126
      %p128 = scmp.ne.s32.totalorder %s114, %s115
      %p129 = scmp.eq.s32.totalorder %s37, 1
      %p130 = por %p128, %p129
      %p132 = scmp.ne.s32.totalorder %s115, %s131
      %p133 = scmp.eq.s32.totalorder %s37, 0
      %p134 = por %p132, %p133
      %s135 = ssub.s32 1, %s38
      %s136 = smul.u32 %s39, %s135
      %s137 = ssub.s32 1, %s50
      %s138 = smul.u32 %s46, %s137
      %s139 = ssub.s32 %s136, %s138
      %p140 = scmp.eq.s32.totalorder %s139, 0
      %s142 = sadd.s32 %s141, 1
      %s143 = scalar_select %p140, %s141, %s142
      %p146 = pneg %p140
      %p147 = scmp.eq.s32.totalorder %s31, 1
      %p148 = por %p146, %p147
      %p149 = scmp.ne.s32.totalorder %s141, %s144
      %p150 = scmp.eq.s32.totalorder %s31, 0
      %p151 = por %p149, %p150
      %p152 = scmp.ne.s32.totalorder %s141, %s144
      %p153 = scmp.eq.s32.totalorder %s36, 1
      %p154 = por %p152, %p153
      %p155 = scmp.ne.s32.totalorder %s144, %s145
      %p156 = scmp.eq.s32.totalorder %s36, 0
      %p157 = por %p155, %p156
      %p158 = scmp.ne.s32.totalorder %s144, %s145
      %p159 = scmp.eq.s32.totalorder %s37, 1
      %p160 = por %p158, %p159
      %p162 = scmp.ne.s32.totalorder %s145, %s161
      %p163 = scmp.eq.s32.totalorder %s37, 0
      %p164 = por %p162, %p163
      %s166 = sadd.s32 %s165, 1
      %p169 = scmp.eq.s32.totalorder %s31, 1
      %p170 = scmp.ne.s32.totalorder %s165, %s167
      %p171 = scmp.eq.s32.totalorder %s31, 0
      %p172 = por %p170, %p171
      %p173 = scmp.ne.s32.totalorder %s165, %s167
      %p174 = scmp.eq.s32.totalorder %s36, 1
      %p175 = por %p173, %p174
      %p176 = scmp.ne.s32.totalorder %s167, %s168
      %p177 = scmp.eq.s32.totalorder %s36, 0
      %p178 = por %p176, %p177
      %p179 = scmp.ne.s32.totalorder %s167, %s168
      %p180 = scmp.eq.s32.totalorder %s37, 1
      %p181 = por %p179, %p180
      %p183 = scmp.ne.s32.totalorder %s168, %s182
      %p184 = scmp.eq.s32.totalorder %s37, 0
      %p185 = por %p183, %p184
      %s187 = sadd.s32 %s186, 1
      %p190 = scmp.eq.s32.totalorder %s31, 1
      %p191 = scmp.ne.s32.totalorder %s186, %s188
      %p192 = scmp.eq.s32.totalorder %s31, 0
      %p193 = por %p191, %p192
      %p194 = scmp.ne.s32.totalorder %s186, %s188
      %p195 = scmp.eq.s32.totalorder %s36, 1
      %p196 = por %p194, %p195
      %p197 = scmp.ne.s32.totalorder %s188, %s189
      %p198 = scmp.eq.s32.totalorder %s36, 0
      %p199 = por %p197, %p198
      %p200 = scmp.ne.s32.totalorder %s188, %s189
      %p201 = scmp.eq.s32.totalorder %s37, 1
      %p202 = por %p200, %p201
      %p204 = scmp.ne.s32.totalorder %s189, %s203
      %p205 = scmp.eq.s32.totalorder %s37, 0
      %p206 = por %p204, %p205
      %s208 = sadd.s32 %s207, 1
      %p211 = scmp.eq.s32.totalorder %s31, 1
      %p212 = scmp.ne.s32.totalorder %s207, %s209
      %p213 = scmp.eq.s32.totalorder %s31, 0
      %p214 = por %p212, %p213
      %p215 = scmp.ne.s32.totalorder %s207, %s209
      %p216 = scmp.eq.s32.totalorder %s36, 1
      %p217 = por %p215, %p216
      %p218 = scmp.ne.s32.totalorder %s209, %s210
      %p219 = scmp.eq.s32.totalorder %s36, 0
      %p220 = por %p218, %p219
      %p221 = scmp.ne.s32.totalorder %s209, %s210
      %p222 = scmp.eq.s32.totalorder %s37, 1
      %p223 = por %p221, %p222
      %p225 = scmp.ne.s32.totalorder %s210, %s224
      %p226 = scmp.eq.s32.totalorder %s37, 0
      %p227 = por %p225, %p226
      %s229 = sadd.s32 %s228, 1
      %p232 = scmp.eq.s32.totalorder %s31, 1
      %p233 = scmp.ne.s32.totalorder %s228, %s230
      %p234 = scmp.eq.s32.totalorder %s31, 0
      %p235 = por %p233, %p234
      %p236 = scmp.ne.s32.totalorder %s228, %s230
      %p237 = scmp.eq.s32.totalorder %s36, 1
      %p238 = por %p236, %p237
      %p239 = scmp.ne.s32.totalorder %s230, %s231
      %p240 = scmp.eq.s32.totalorder %s36, 0
      %p241 = por %p239, %p240
      %p242 = scmp.ne.s32.totalorder %s230, %s231
      %p243 = scmp.eq.s32.totalorder %s37, 1
      %p244 = por %p242, %p243
      %p246 = scmp.ne.s32.totalorder %s231, %s245
      %p247 = scmp.eq.s32.totalorder %s37, 0
      %p248 = por %p246, %p247
      %s250 = sadd.s32 %s249, 1
      %p253 = scmp.eq.s32.totalorder %s31, 1
      %p254 = scmp.ne.s32.totalorder %s249, %s251
      %p255 = scmp.eq.s32.totalorder %s31, 0
      %p256 = por %p254, %p255
      %p257 = scmp.ne.s32.totalorder %s249, %s251
      %p258 = scmp.eq.s32.totalorder %s36, 1
      %p259 = por %p257, %p258
      %p260 = scmp.ne.s32.totalorder %s251, %s252
      %p261 = scmp.eq.s32.totalorder %s36, 0
      %p262 = por %p260, %p261
      %p263 = scmp.ne.s32.totalorder %s251, %s252
      %p264 = scmp.eq.s32.totalorder %s37, 1
      %p265 = por %p263, %p264
      %p267 = scmp.ne.s32.totalorder %s252, %s266
      %p268 = scmp.eq.s32.totalorder %s37, 0
      %p269 = por %p267, %p268
      %s271 = sadd.s32 %s270, 1
      %p274 = scmp.eq.s32.totalorder %s31, 1
      %p275 = scmp.ne.s32.totalorder %s270, %s272
      %p276 = scmp.eq.s32.totalorder %s31, 0
      %p277 = por %p275, %p276
      %p278 = scmp.ne.s32.totalorder %s270, %s272
      %p279 = scmp.eq.s32.totalorder %s36, 1
      %p280 = por %p278, %p279
      %p281 = scmp.ne.s32.totalorder %s272, %s273
      %p282 = scmp.eq.s32.totalorder %s36, 0
      %p283 = por %p281, %p282
      %p284 = scmp.ne.s32.totalorder %s272, %s273
      %p285 = scmp.eq.s32.totalorder %s37, 1
      %p286 = por %p284, %p285
      %p288 = scmp.ne.s32.totalorder %s273, %s287
      %p289 = scmp.eq.s32.totalorder %s37, 0
      %p290 = por %p288, %p289
      %s292 = sadd.s32 %s291, 1
      %p295 = scmp.eq.s32.totalorder %s31, 1
      %p296 = scmp.ne.s32.totalorder %s291, %s293
      %p297 = scmp.eq.s32.totalorder %s31, 0
      %p298 = por %p296, %p297
      %p299 = scmp.ne.s32.totalorder %s291, %s293
      %p300 = scmp.eq.s32.totalorder %s36, 1
      %p301 = por %p299, %p300
      %p302 = scmp.ne.s32.totalorder %s293, %s294
      %p303 = scmp.eq.s32.totalorder %s36, 0
      %p304 = por %p302, %p303
      %p305 = scmp.ne.s32.totalorder %s293, %s294
      %p306 = scmp.eq.s32.totalorder %s37, 1
      %p307 = por %p305, %p306
      %p309 = scmp.ne.s32.totalorder %s294, %s308
      %p310 = scmp.eq.s32.totalorder %s37, 0
      %p311 = por %p309, %p310
      %s313 = sadd.s32 %s312, 1
      %p316 = scmp.eq.s32.totalorder %s31, 1
      %p317 = scmp.ne.s32.totalorder %s312, %s314
      %p318 = scmp.eq.s32.totalorder %s31, 0
      %p319 = por %p317, %p318
      %p320 = scmp.ne.s32.totalorder %s312, %s314
      %p321 = scmp.eq.s32.totalorder %s36, 1
      %p322 = por %p320, %p321
      %p323 = scmp.ne.s32.totalorder %s314, %s315
      %p324 = scmp.eq.s32.totalorder %s36, 0
      %p325 = por %p323, %p324
      %p326 = scmp.ne.s32.totalorder %s314, %s315
      %p327 = scmp.eq.s32.totalorder %s37, 1
      %p328 = por %p326, %p327
      %p330 = scmp.ne.s32.totalorder %s315, %s329
      %p331 = scmp.eq.s32.totalorder %s37, 0
      %p332 = por %p330, %p331
      %s334 = sadd.s32 %s333, 1
      %p337 = scmp.eq.s32.totalorder %s31, 1
      %p338 = scmp.ne.s32.totalorder %s333, %s335
      %p339 = scmp.eq.s32.totalorder %s31, 0
      %p340 = por %p338, %p339
      %p341 = scmp.ne.s32.totalorder %s333, %s335
      %p342 = scmp.eq.s32.totalorder %s36, 1
      %p343 = por %p341, %p342
      %p344 = scmp.ne.s32.totalorder %s335, %s336
      %p345 = scmp.eq.s32.totalorder %s36, 0
      %p346 = por %p344, %p345
      %p347 = scmp.ne.s32.totalorder %s335, %s336
      %p348 = scmp.eq.s32.totalorder %s37, 1
      %p349 = por %p347, %p348
      %p351 = scmp.ne.s32.totalorder %s336, %s350
      %p352 = scmp.eq.s32.totalorder %s37, 0
      %p353 = por %p351, %p352
      %s355 = sadd.s32 %s354, 1
      %p358 = scmp.eq.s32.totalorder %s31, 1
      %p359 = scmp.ne.s32.totalorder %s354, %s356
      %p360 = scmp.eq.s32.totalorder %s31, 0
      %p361 = por %p359, %p360
      %p362 = scmp.ne.s32.totalorder %s354, %s356
      %p363 = scmp.eq.s32.totalorder %s36, 1
      %p364 = por %p362, %p363
      %p365 = scmp.ne.s32.totalorder %s356, %s357
      %p366 = scmp.eq.s32.totalorder %s36, 0
      %p367 = por %p365, %p366
      %p368 = scmp.ne.s32.totalorder %s356, %s357
      %p369 = scmp.eq.s32.totalorder %s37, 1
      %p370 = por %p368, %p369
      %p372 = scmp.ne.s32.totalorder %s357, %s371
      %p373 = scmp.eq.s32.totalorder %s37, 0
      %p374 = por %p372, %p373
      %s376 = sadd.s32 %s375, 1
      %p379 = scmp.eq.s32.totalorder %s31, 1
      %p380 = scmp.ne.s32.totalorder %s375, %s377
      %p381 = scmp.eq.s32.totalorder %s31, 0
      %p382 = por %p380, %p381
      %p383 = scmp.ne.s32.totalorder %s375, %s377
      %p384 = scmp.eq.s32.totalorder %s36, 1
      %p385 = por %p383, %p384
      %p386 = scmp.ne.s32.totalorder %s377, %s378
      %p387 = scmp.eq.s32.totalorder %s36, 0
      %p388 = por %p386, %p387
      %p389 = scmp.ne.s32.totalorder %s377, %s378
      %p390 = scmp.eq.s32.totalorder %s37, 1
      %p391 = por %p389, %p390
      %p393 = scmp.ne.s32.totalorder %s378, %s392
      %p394 = scmp.eq.s32.totalorder %s37, 0
      %p395 = por %p393, %p394
      %s397 = sadd.s32 %s396, 1
      %p400 = scmp.eq.s32.totalorder %s31, 1
      %p401 = scmp.ne.s32.totalorder %s396, %s398
      %p402 = scmp.eq.s32.totalorder %s31, 0
      %p403 = por %p401, %p402
      %p404 = scmp.ne.s32.totalorder %s396, %s398
      %p405 = scmp.eq.s32.totalorder %s36, 1
      %p406 = por %p404, %p405
      %p407 = scmp.ne.s32.totalorder %s398, %s399
      %p408 = scmp.eq.s32.totalorder %s36, 0
      %p409 = por %p407, %p408
      %p410 = scmp.ne.s32.totalorder %s398, %s399
      %p411 = scmp.eq.s32.totalorder %s37, 1
      %p412 = por %p410, %p411
      %p414 = scmp.ne.s32.totalorder %s399, %s413
      %p415 = scmp.eq.s32.totalorder %s37, 0
      %p416 = por %p414, %p415
      %s418 = sadd.s32 %s417, 1
      %p421 = scmp.eq.s32.totalorder %s31, 1
      %p422 = scmp.ne.s32.totalorder %s417, %s419
      %p423 = scmp.eq.s32.totalorder %s31, 0
      %p424 = por %p422, %p423
      %p425 = scmp.ne.s32.totalorder %s417, %s419
      %p426 = scmp.eq.s32.totalorder %s36, 1
      %p427 = por %p425, %p426
      %p428 = scmp.ne.s32.totalorder %s419, %s420
      %p429 = scmp.eq.s32.totalorder %s36, 0
      %p430 = por %p428, %p429
      %p431 = scmp.ne.s32.totalorder %s419, %s420
      %p432 = scmp.eq.s32.totalorder %s37, 1
      %p433 = por %p431, %p432
      %p435 = scmp.ne.s32.totalorder %s420, %s434
      %p436 = scmp.eq.s32.totalorder %s37, 0
      %p437 = por %p435, %p436
      %s439 = sadd.s32 %s438, 1
      %p442 = scmp.eq.s32.totalorder %s31, 1
      %p443 = scmp.ne.s32.totalorder %s438, %s440
      %p444 = scmp.eq.s32.totalorder %s31, 0
      %p445 = por %p443, %p444
      %p446 = scmp.ne.s32.totalorder %s438, %s440
      %p447 = scmp.eq.s32.totalorder %s36, 1
      %p448 = por %p446, %p447
      %p449 = scmp.ne.s32.totalorder %s440, %s441
      %p450 = scmp.eq.s32.totalorder %s36, 0
      %p451 = por %p449, %p450
      %p452 = scmp.ne.s32.totalorder %s440, %s441
      %p453 = scmp.eq.s32.totalorder %s37, 1
      %p454 = por %p452, %p453
      %p456 = scmp.ne.s32.totalorder %s441, %s455
      %p457 = scmp.eq.s32.totalorder %s37, 0
      %p458 = por %p456, %p457
      %s459 = smul.u32 %s39, %s38
      %s460 = smul.u32 %s46, %s50
      %s461 = ssub.s32 %s459, %s460
      %p462 = scmp.eq.s32.totalorder %s461, 0
      %s464 = sadd.s32 %s463, 1
      %s465 = scalar_select %p462, %s463, %s464
      %p468 = pneg %p462
      %p469 = scmp.eq.s32.totalorder %s31, 1
      %p470 = por %p468, %p469
      %p471 = scmp.ne.s32.totalorder %s463, %s466
      %p472 = scmp.eq.s32.totalorder %s31, 0
      %p473 = por %p471, %p472
      %p474 = scmp.ne.s32.totalorder %s463, %s466
      %p475 = scmp.eq.s32.totalorder %s36, 1
      %p476 = por %p474, %p475
      %p477 = scmp.ne.s32.totalorder %s466, %s467
      %p478 = scmp.eq.s32.totalorder %s36, 0
      %p479 = por %p477, %p478
      %p480 = scmp.ne.s32.totalorder %s466, %s467
      %p481 = scmp.eq.s32.totalorder %s37, 1
      %p482 = por %p480, %p481
      %p484 = scmp.ne.s32.totalorder %s467, %s483
      %p485 = scmp.eq.s32.totalorder %s37, 0
      %p486 = por %p484, %p485
      %p487 = scmp.le.s32.totalorder 1, %s31
      %p488 = scmp.lt.s32.totalorder %s31, 3
      %p489 = pnand %p487, %p488
      %p490 = pneg %p489
      // Predicated region
      $region9: #{tpu_custom_call.1} parent=5 // pred_check
        _
      $region10: #{tpu_custom_call.1} parent=5 // pred_check_branch
        %492 = sbr.rel (%p489) target = $region12
      $region11: #{tpu_custom_call.1} parent=5 // pred_region
        %s493 = ssub.s32 %s31, 1
        // Predicated region
        $region13: #{tpu_custom_call.1} parent=11 // pred_check
          %p494 = pneg %p69
        $region14: #{tpu_custom_call.1} parent=11 // pred_check_branch
          %496 = sbr.rel (%p494) target = $region16
        $region15: #{tpu_custom_call.1} parent=11 // pred_region
          %s497 = smul.u32 16, %s41
          %p498 = scmp.lt.s32.totalorder %s497, 15
          %s499 = scalar_select %p498, %s497, 15
          %s500 = smul.addr %s499, 8
          %s501 = scalar_lea.vmem %s0, %s500
          %s502 = smul.u32 16, %s41
        $region16: #{tpu_custom_call.1} parent=11 // pred_fallthru
          _
        // Predicated region
        $region17: #{tpu_custom_call.1} parent=11 // pred_check
          %p503 = pneg %p178
        $region18: #{tpu_custom_call.1} parent=11 // pred_check_branch
          %505 = sbr.rel (%p503) target = $region20
        $region19: #{tpu_custom_call.1} parent=11 // pred_region
          _
        $region20: #{tpu_custom_call.1} parent=11 // pred_fallthru
          _
        // Predicated region
        $region21: #{tpu_custom_call.1} parent=11 // pred_check
          %p506 = pneg %p199
        $region22: #{tpu_custom_call.1} parent=11 // pred_check_branch
          %508 = sbr.rel (%p506) target = $region24
        $region23: #{tpu_custom_call.1} parent=11 // pred_region
          _
        $region24: #{tpu_custom_call.1} parent=11 // pred_fallthru
          _
        // Predicated region
        $region25: #{tpu_custom_call.1} parent=11 // pred_check
          %p509 = pneg %p220
        $region26: #{tpu_custom_call.1} parent=11 // pred_check_branch
          %511 = sbr.rel (%p509) target = $region28
        $region27: #{tpu_custom_call.1} parent=11 // pred_region
          _
        $region28: #{tpu_custom_call.1} parent=11 // pred_fallthru
          _
        // Predicated region
        $region29: #{tpu_custom_call.1} parent=11 // pred_check
          %p512 = pneg %p241
        $region30: #{tpu_custom_call.1} parent=11 // pred_check_branch
          %514 = sbr.rel (%p512) target = $region32
        $region31: #{tpu_custom_call.1} parent=11 // pred_region
          _
        $region32: #{tpu_custom_call.1} parent=11 // pred_fallthru
          _
        // Predicated region
        $region33: #{tpu_custom_call.1} parent=11 // pred_check
          %p515 = pneg %p262
        $region34: #{tpu_custom_call.1} parent=11 // pred_check_branch
          %517 = sbr.rel (%p515) target = $region36
        $region35: #{tpu_custom_call.1} parent=11 // pred_region
          %s519 = ssub.s32 1024, 1024
          %520 = vsyncadd [#allocation6], %s519
          %s521 = sshll.u32 [#allocation5], 4
          %s522 = int_to_ptr.vmem [resolvable:$true] %s521
          %527 = dma.hbm_to_vmem [thread:$0]  %s8, 1024, %s522, [#allocation6], 64, 64, 4
        $region36: #{tpu_custom_call.1} parent=11 // pred_fallthru
          _
        // Predicated region
        $region37: #{tpu_custom_call.1} parent=11 // pred_check
          %p528 = pneg %p283
        $region38: #{tpu_custom_call.1} parent=11 // pred_check_branch
          %530 = sbr.rel (%p528) target = $region40
        $region39: #{tpu_custom_call.1} parent=11 // pred_region
          _
        $region40: #{tpu_custom_call.1} parent=11 // pred_fallthru
          _
        // Predicated region
        $region41: #{tpu_custom_call.1} parent=11 // pred_check
          %p531 = pneg %p304
        $region42: #{tpu_custom_call.1} parent=11 // pred_check_branch
          %533 = sbr.rel (%p531) target = $region44
        $region43: #{tpu_custom_call.1} parent=11 // pred_region
          %s535 = ssub.s32 1024, 1024
          %536 = vsyncadd [#allocation9], %s535
          %s537 = sshll.u32 [#allocation8], 4
          %s538 = int_to_ptr.vmem [resolvable:$true] %s537
          %543 = dma.hbm_to_vmem [thread:$0]  %s10, 1024, %s538, [#allocation9], 64, 64, 4
        $region44: #{tpu_custom_call.1} parent=11 // pred_fallthru
          _
        // Predicated region
        $region45: #{tpu_custom_call.1} parent=11 // pred_check
          %p544 = pneg %p325
        $region46: #{tpu_custom_call.1} parent=11 // pred_check_branch
          %546 = sbr.rel (%p544) target = $region48
        $region47: #{tpu_custom_call.1} parent=11 // pred_region
          _
        $region48: #{tpu_custom_call.1} parent=11 // pred_fallthru
          _
        // Predicated region
        $region49: #{tpu_custom_call.1} parent=11 // pred_check
          %p547 = pneg %p346
        $region50: #{tpu_custom_call.1} parent=11 // pred_check_branch
          %549 = sbr.rel (%p547) target = $region52
        $region51: #{tpu_custom_call.1} parent=11 // pred_region
          %s551 = ssub.s32 1024, 1024
          %552 = vsyncadd [#allocation9], %s551
          %s553 = sshll.u32 [#allocation10], 4
          %s554 = int_to_ptr.vmem [resolvable:$true] %s553
          %559 = dma.hbm_to_vmem [thread:$0]  %s12, 1024, %s554, [#allocation9], 64, 64, 4
        $region52: #{tpu_custom_call.1} parent=11 // pred_fallthru
          _
        // Predicated region
        $region53: #{tpu_custom_call.1} parent=11 // pred_check
          %p560 = pneg %p367
        $region54: #{tpu_custom_call.1} parent=11 // pred_check_branch
          %562 = sbr.rel (%p560) target = $region56
        $region55: #{tpu_custom_call.1} parent=11 // pred_region
          %s564 = ssub.s32 1024, 1024
          %565 = vsyncadd [#allocation12], %s564
          %s566 = sshll.u32 [#allocation11], 4
          %s567 = int_to_ptr.vmem [resolvable:$true] %s566
          %572 = dma.hbm_to_vmem [thread:$0]  %s13, 1024, %s567, [#allocation12], 64, 64, 4
        $region56: #{tpu_custom_call.1} parent=11 // pred_fallthru
          _
        // Predicated region
        $region57: #{tpu_custom_call.1} parent=11 // pred_check
          %p573 = pneg %p388
        $region58: #{tpu_custom_call.1} parent=11 // pred_check_branch
          %575 = sbr.rel (%p573) target = $region60
        $region59: #{tpu_custom_call.1} parent=11 // pred_region
          %s577 = ssub.s32 1024, 1024
          %578 = vsyncadd [#allocation12], %s577
          %s579 = sshll.u32 [#allocation13], 4
          %s580 = int_to_ptr.vmem [resolvable:$true] %s579
          %585 = dma.hbm_to_vmem [thread:$0]  %s14, 1024, %s580, [#allocation12], 64, 64, 4
        $region60: #{tpu_custom_call.1} parent=11 // pred_fallthru
          _
        // Predicated region
        $region61: #{tpu_custom_call.1} parent=11 // pred_check
          %p586 = pneg %p409
        $region62: #{tpu_custom_call.1} parent=11 // pred_check_branch
          %588 = sbr.rel (%p586) target = $region64
        $region63: #{tpu_custom_call.1} parent=11 // pred_region
          _
        $region64: #{tpu_custom_call.1} parent=11 // pred_fallthru
          _
        // Predicated region
        $region65: #{tpu_custom_call.1} parent=11 // pred_check
          %p589 = pneg %p430
        $region66: #{tpu_custom_call.1} parent=11 // pred_check_branch
          %591 = sbr.rel (%p589) target = $region68
        $region67: #{tpu_custom_call.1} parent=11 // pred_region
          %s593 = ssub.s32 1024, 1024
          %594 = vsyncadd [#allocation15], %s593
          %s595 = sshll.u32 [#allocation14], 4
          %s596 = int_to_ptr.vmem [resolvable:$true] %s595
          %601 = dma.hbm_to_vmem [thread:$0]  %s16, 1024, %s596, [#allocation15], 64, 64, 4
        $region68: #{tpu_custom_call.1} parent=11 // pred_fallthru
          _
        // Predicated region
        $region69: #{tpu_custom_call.1} parent=11 // pred_check
          %p602 = pneg %p451
        $region70: #{tpu_custom_call.1} parent=11 // pred_check_branch
          %604 = sbr.rel (%p602) target = $region72
        $region71: #{tpu_custom_call.1} parent=11 // pred_region
          _
        $region72: #{tpu_custom_call.1} parent=11 // pred_fallthru
          _
      $region12: #{tpu_custom_call.1} parent=5 // pred_fallthru
        _
      %p605 = scmp.lt.s32.totalorder %s31, 2
      // Predicated region
      $region73: #{tpu_custom_call.1} parent=5 // pred_check
        %p606 = pneg %p605
      $region74: #{tpu_custom_call.1} parent=5 // pred_check_branch
        %608 = sbr.rel (%p606) target = $region76
      $region75: #{tpu_custom_call.1} parent=5 // pred_region
        // Predicated region
        $region77: #{tpu_custom_call.1} parent=75 // pred_check
          %p609 = pneg %p93
        $region78: #{tpu_custom_call.1} parent=75 // pred_check_branch
          %611 = sbr.rel (%p609) target = $region80
        $region79: #{tpu_custom_call.1} parent=75 // pred_region
          %s612 = ssub.s32 1, %s38
          %s613 = smul.u32 %s39, %s612
          %p614 = scmp.lt.s32.totalorder %s613, 0
          %s615 = scalar_select %p614, %s613, 0
          %s616 = scalar_lea.vmem %s1, %s615
          %s617 = ssub.s32 1, %s38
          %s618 = smul.u32 %s39, %s617
        $region80: #{tpu_custom_call.1} parent=75 // pred_fallthru
          _
        // Predicated region
        $region81: #{tpu_custom_call.1} parent=75 // pred_check
          %p619 = pneg %p121
        $region82: #{tpu_custom_call.1} parent=75 // pred_check_branch
          %621 = sbr.rel (%p619) target = $region84
        $region83: #{tpu_custom_call.1} parent=75 // pred_region
          %s622 = smul.u32 %s39, %s38
          %s623 = smul.u32 16, %s622
          %p624 = scmp.lt.s32.totalorder %s623, 15
          %s625 = scalar_select %p624, %s623, 15
          %s626 = smul.addr %s625, 8
          %s627 = scalar_lea.vmem %s2, %s626
          %s628 = smul.u32 %s39, %s38
          %s629 = smul.u32 16, %s628
        $region84: #{tpu_custom_call.1} parent=75 // pred_fallthru
          _
        // Predicated region
        $region85: #{tpu_custom_call.1} parent=75 // pred_check
          %p630 = pneg %p151
        $region86: #{tpu_custom_call.1} parent=75 // pred_check_branch
          %632 = sbr.rel (%p630) target = $region88
        $region87: #{tpu_custom_call.1} parent=75 // pred_region
          %s633 = ssub.s32 1, %s38
          %s634 = smul.u32 %s39, %s633
          %s635 = smul.u32 16, %s634
          %p636 = scmp.lt.s32.totalorder %s635, 15
          %s637 = scalar_select %p636, %s635, 15
          %s638 = smul.addr %s637, 4
          %s639 = scalar_lea.vmem %s3, %s638
          %s640 = ssub.s32 1, %s38
          %s641 = smul.u32 %s39, %s640
          %s642 = smul.u32 16, %s641
        $region88: #{tpu_custom_call.1} parent=75 // pred_fallthru
          _
      $region76: #{tpu_custom_call.1} parent=5 // pred_fallthru
        _
      %p643 = scmp.le.s32.totalorder 1, %s31
      %p644 = scmp.lt.s32.totalorder %s31, 3
      %p645 = pnand %p643, %p644
      %p646 = pneg %p645
      // Predicated region
      $region89: #{tpu_custom_call.1} parent=5 // pred_check
        _
      $region90: #{tpu_custom_call.1} parent=5 // pred_check_branch
        %648 = sbr.rel (%p645) target = $region92
      $region91: #{tpu_custom_call.1} parent=5 // pred_region
        %s649 = ssub.s32 %s31, 1
        // Predicated region
        $region93: #{tpu_custom_call.1} parent=91 // pred_check
          %p650 = pneg %p262
        $region94: #{tpu_custom_call.1} parent=91 // pred_check_branch
          %652 = sbr.rel (%p650) target = $region96
        $region95: #{tpu_custom_call.1} parent=91 // pred_region
          %653 = dma.done [#allocation6], 1024
        $region96: #{tpu_custom_call.1} parent=91 // pred_fallthru
          _
        // Predicated region
        $region97: #{tpu_custom_call.1} parent=91 // pred_check
          %p654 = pneg %p304
        $region98: #{tpu_custom_call.1} parent=91 // pred_check_branch
          %656 = sbr.rel (%p654) target = $region100
        $region99: #{tpu_custom_call.1} parent=91 // pred_region
          %657 = dma.done [#allocation9], 1024
        $region100: #{tpu_custom_call.1} parent=91 // pred_fallthru
          _
        // Predicated region
        $region101: #{tpu_custom_call.1} parent=91 // pred_check
          %p658 = pneg %p346
        $region102: #{tpu_custom_call.1} parent=91 // pred_check_branch
          %660 = sbr.rel (%p658) target = $region104
        $region103: #{tpu_custom_call.1} parent=91 // pred_region
          %661 = dma.done [#allocation9], 1024
        $region104: #{tpu_custom_call.1} parent=91 // pred_fallthru
          _
        // Predicated region
        $region105: #{tpu_custom_call.1} parent=91 // pred_check
          %p662 = pneg %p367
        $region106: #{tpu_custom_call.1} parent=91 // pred_check_branch
          %664 = sbr.rel (%p662) target = $region108
        $region107: #{tpu_custom_call.1} parent=91 // pred_region
          %665 = dma.done [#allocation12], 1024
        $region108: #{tpu_custom_call.1} parent=91 // pred_fallthru
          _
        // Predicated region
        $region109: #{tpu_custom_call.1} parent=91 // pred_check
          %p666 = pneg %p388
        $region110: #{tpu_custom_call.1} parent=91 // pred_check_branch
          %668 = sbr.rel (%p666) target = $region112
        $region111: #{tpu_custom_call.1} parent=91 // pred_region
          %669 = dma.done [#allocation12], 1024
        $region112: #{tpu_custom_call.1} parent=91 // pred_fallthru
          _
        // Predicated region
        $region113: #{tpu_custom_call.1} parent=91 // pred_check
          %p670 = pneg %p430
        $region114: #{tpu_custom_call.1} parent=91 // pred_check_branch
          %672 = sbr.rel (%p670) target = $region116
        $region115: #{tpu_custom_call.1} parent=91 // pred_region
          %673 = dma.done [#allocation15], 1024
        $region116: #{tpu_custom_call.1} parent=91 // pred_fallthru
          _
        %s674 = smul.u32 16, %s41
        %p675 = scmp.lt.s32.totalorder %s674, 15
        %s676 = scalar_select %p675, %s674, 15
        %s677 = smul.addr %s676, 8
        %s678 = scalar_lea.vmem %s0, %s677
        %p679 = pneg %p69
        %p680 = pneg %p66
        %s681 = ssub.s32 1, %s40
        %s682 = smul.u32 %s41, %s681
        %p683 = scmp.lt.s32.totalorder %s682, 0
        %s684 = scalar_select %p683, %s682, 0
        %s685 = scalar_lea.vmem %s1, %s684
        %p686 = pneg %p99
        %p687 = pneg %p96
        %s688 = smul.u32 %s41, %s40
        %s689 = smul.u32 16, %s688
        %p690 = scmp.lt.s32.totalorder %s689, 15
        %s691 = scalar_select %p690, %s689, 15
        %s692 = smul.addr %s691, 8
        %s693 = scalar_lea.vmem %s2, %s692
        %p694 = pneg %p127
        %p695 = pneg %p124
        %s696 = ssub.s32 1, %s40
        %s697 = smul.u32 %s41, %s696
        %s698 = smul.u32 16, %s697
        %p699 = scmp.lt.s32.totalorder %s698, 15
        %s700 = scalar_select %p699, %s698, 15
        %s701 = smul.addr %s700, 4
        %s702 = scalar_lea.vmem %s3, %s701
        %p703 = pneg %p157
        %p704 = pneg %p154
        %p705 = pneg %p178
        %p706 = pneg %p175
        %p707 = pneg %p199
        %p708 = pneg %p196
        %p709 = pneg %p220
        %p710 = pneg %p217
        %p711 = pneg %p241
        %p712 = pneg %p238
        %p713 = pneg %p262
        %p714 = pneg %p259
        %p715 = pneg %p283
        %p716 = pneg %p280
        %p717 = pneg %p304
        %p718 = pneg %p301
        %p719 = pneg %p325
        %p720 = pneg %p322
        %p721 = pneg %p346
        %p722 = pneg %p343
        %p723 = pneg %p367
        %p724 = pneg %p364
        %p725 = pneg %p388
        %p726 = pneg %p385
        %p727 = pneg %p409
        %p728 = pneg %p406
        %p729 = pneg %p430
        %p730 = pneg %p427
        %p731 = pneg %p451
        %p732 = pneg %p448
        %p733 = pneg %p479
        %p734 = pneg %p476
        %s735 = sand.u32 %s466, 1
        %s736 = scalar_lea.sflag [#allocation7], %s735
        %s737 = sand.u32 %s466, 1
        %s738 = smul.addr %s737, 128
        %s739 = scalar_lea.vmem [#allocation16], %s738
        %s740 = smul.u32 16, %s41
        %p741 = scmp.lt.s32.totalorder %s740, 15
        %s742 = scalar_select %p741, %s740, 15
        %s743 = smul.addr %s742, 8
        %s744 = scalar_lea.vmem %s0, %s743
        %s745 = smul.u32 16, %s41
        %s746 = ssub.s32 1, %s40
        %s747 = smul.u32 %s41, %s746
        %p748 = scmp.lt.s32.totalorder %s747, 0
        %s749 = scalar_select %p748, %s747, 0
        %s750 = scalar_lea.vmem %s1, %s749
        %s751 = ssub.s32 1, %s40
        %s752 = smul.u32 %s41, %s751
        %s753 = smul.u32 %s41, %s40
        %s754 = smul.u32 16, %s753
        %p755 = scmp.lt.s32.totalorder %s754, 15
        %s756 = scalar_select %p755, %s754, 15
        %s757 = smul.addr %s756, 8
        %s758 = scalar_lea.vmem %s2, %s757
        %s759 = smul.u32 %s41, %s40
        %s760 = smul.u32 16, %s759
        %s761 = ssub.s32 1, %s40
        %s762 = smul.u32 %s41, %s761
        %s763 = smul.u32 16, %s762
        %p764 = scmp.lt.s32.totalorder %s763, 15
        %s765 = scalar_select %p764, %s763, 15
        %s766 = smul.addr %s765, 4
        %s767 = scalar_lea.vmem %s3, %s766
        %s768 = ssub.s32 1, %s40
        %s769 = smul.u32 %s41, %s768
        %s770 = smul.u32 16, %s769
        %s771 = smul.u32 %s41, %s40
        %s772 = smul.u32 16, %s771
        %p774 = scmp.eq.s32.totalorder %s40, 0
        %p775 = scmp.eq.s32.totalorder %s41, 0
        %p776 = pnand %p774, %p775
        %p777 = pneg %p776
        // Predicated region
        $region117: #{tpu_custom_call.1} parent=91 // pred_check
          _
        $region118: #{tpu_custom_call.1} parent=91 // pred_check_branch
          %779 = sbr.rel (%p776) target = $region120
        $region119: #{tpu_custom_call.1} parent=91 // pred_region
          %780 = vst [vmem:[#allocation2] sm:$0xff] 0.0
          %781 = vst [vmem:[#allocation2 + $0x8] sm:$0xff] 0.0
          %782 = vst [vmem:[#allocation2 + $0x10] sm:$0xff] 0.0
          %783 = vst [vmem:[#allocation2 + $0x18] sm:$0xff] 0.0
          %784 = vst [vmem:[#allocation2 + $0x20] sm:$0xff] 0.0
          %785 = vst [vmem:[#allocation2 + $0x28] sm:$0xff] 0.0
          %786 = vst [vmem:[#allocation2 + $0x30] sm:$0xff] 0.0
          %787 = vst [vmem:[#allocation2 + $0x38] sm:$0xff] 0.0
          %788 = vst [vmem:[#allocation2 + $0x40] sm:$0xff] 0.0
          %789 = vst [vmem:[#allocation2 + $0x48] sm:$0xff] 0.0
          %790 = vst [vmem:[#allocation2 + $0x50] sm:$0xff] 0.0
          %791 = vst [vmem:[#allocation2 + $0x58] sm:$0xff] 0.0
          %792 = vst [vmem:[#allocation2 + $0x60] sm:$0xff] 0.0
          %793 = vst [vmem:[#allocation2 + $0x68] sm:$0xff] 0.0
          %794 = vst [vmem:[#allocation2 + $0x70] sm:$0xff] 0.0
          %795 = vst [vmem:[#allocation2 + $0x78] sm:$0xff] 0.0
        $region120: #{tpu_custom_call.1} parent=91 // pred_fallthru
          _
        // Predicated region
        $region121: #{tpu_custom_call.1} parent=91 // pred_check
          %p796 = pneg %p774
        $region122: #{tpu_custom_call.1} parent=91 // pred_check_branch
          %798 = sbr.rel (%p796) target = $region124
        $region123: #{tpu_custom_call.1} parent=91 // pred_region
          %v799 = vld [vmem:[%s767] sm:$0xf]
          %v800 = vld [vmem:[%s767 + $0x4] sm:$0xf]
          %v801 = vld [vmem:[%s767 + $0x8] sm:$0xf]
          %v802 = vld [vmem:[%s767 + $0xc] sm:$0xf]
          %v803 = vld [vmem:[%s767 + $0x10] sm:$0xf]
          %v804 = vld [vmem:[%s767 + $0x14] sm:$0xf]
          %v805 = vld [vmem:[%s767 + $0x18] sm:$0xf]
          %v806 = vld [vmem:[%s767 + $0x1c] sm:$0xf]
          %v807 = vld [vmem:[%s767 + $0x20] sm:$0xf]
          %v808 = vld [vmem:[%s767 + $0x24] sm:$0xf]
          %v809 = vld [vmem:[%s767 + $0x28] sm:$0xf]
          %v810 = vld [vmem:[%s767 + $0x2c] sm:$0xf]
          %v811 = vld [vmem:[%s767 + $0x30] sm:$0xf]
          %v812 = vld [vmem:[%s767 + $0x34] sm:$0xf]
          %v813 = vld [vmem:[%s767 + $0x38] sm:$0xf]
          %v814 = vld [vmem:[%s767 + $0x3c] sm:$0xf]
          %v815 = vld [vmem:[%s6] sm:$0xf]
          %v816 = vld [vmem:[%s6 + $0x4] sm:$0xf]
          %v817 = vld [vmem:[%s6 + $0x8] sm:$0xf]
          %v818 = vld [vmem:[%s6 + $0xc] sm:$0xf]
          %v819 = vld [vmem:[%s6 + $0x10] sm:$0xf]
          %v820 = vld [vmem:[%s6 + $0x14] sm:$0xf]
          %v821 = vld [vmem:[%s6 + $0x18] sm:$0xf]
          %v822 = vld [vmem:[%s6 + $0x1c] sm:$0xf]
          %v823 = vld [vmem:[%s6 + $0x20] sm:$0xf]
          %v824 = vld [vmem:[%s6 + $0x24] sm:$0xf]
          %v825 = vld [vmem:[%s6 + $0x28] sm:$0xf]
          %v826 = vld [vmem:[%s6 + $0x2c] sm:$0xf]
          %v827 = vld [vmem:[%s6 + $0x30] sm:$0xf]
          %v828 = vld [vmem:[%s6 + $0x34] sm:$0xf]
          %v829 = vld [vmem:[%s6 + $0x38] sm:$0xf]
          %v830 = vld [vmem:[%s6 + $0x3c] sm:$0xf]
          %v831 = vld [vmem:[%s7] sm:$0x1]
          %v833 = vlaneseq
          %v834 = vshrl.u32 %v833, 7
          %v835 = vsub.s32 0, %v834
          %v836 = vrot.slane %v831, %v835
          %v854 = vunpack.c.l.b16 %v799
          %v855 = vunpack.c.l.b16 %v800
          %v856 = vunpack.c.l.b16 %v801
          %v857 = vunpack.c.l.b16 %v802
          %v858 = vunpack.c.l.b16 %v803
          %v859 = vunpack.c.l.b16 %v804
          %v860 = vunpack.c.l.b16 %v805
          %v861 = vunpack.c.l.b16 %v806
          %v862 = vunpack.c.l.b16 %v807
          %v863 = vunpack.c.l.b16 %v808
          %v864 = vunpack.c.l.b16 %v809
          %v865 = vunpack.c.l.b16 %v810
          %v866 = vunpack.c.l.b16 %v811
          %v867 = vunpack.c.l.b16 %v812
          %v868 = vunpack.c.l.b16 %v813
          %v869 = vunpack.c.l.b16 %v814
          %v870 = vpack.c.b16 %v855, %v854
          %v871 = vpack.c.b16 %v857, %v856
          %v872 = vpack.c.b16 %v859, %v858
          %v873 = vpack.c.b16 %v861, %v860
          %v874 = vpack.c.b16 %v863, %v862
          %v875 = vpack.c.b16 %v865, %v864
          %v876 = vpack.c.b16 %v867, %v866
          %v877 = vpack.c.b16 %v869, %v868
          %v902 = vunpack.c.l.b16 %v815
          %v903 = vunpack.c.l.b16 %v816
          %v904 = vunpack.c.l.b16 %v817
          %v905 = vunpack.c.l.b16 %v818
          %v906 = vunpack.c.l.b16 %v819
          %v907 = vunpack.c.l.b16 %v820
          %v908 = vunpack.c.l.b16 %v821
          %v909 = vunpack.c.l.b16 %v822
          %v910 = vunpack.c.l.b16 %v823
          %v911 = vunpack.c.l.b16 %v824
          %v912 = vunpack.c.l.b16 %v825
          %v913 = vunpack.c.l.b16 %v826
          %v914 = vunpack.c.l.b16 %v827
          %v915 = vunpack.c.l.b16 %v828
          %v916 = vunpack.c.l.b16 %v829
          %v917 = vunpack.c.l.b16 %v830
          %v918 = vpack.c.b16 %v903, %v902
          %v919 = vpack.c.b16 %v905, %v904
          %v920 = vpack.c.b16 %v907, %v906
          %v921 = vpack.c.b16 %v909, %v908
          %v922 = vpack.c.b16 %v911, %v910
          %v923 = vpack.c.b16 %v913, %v912
          %v924 = vpack.c.b16 %v915, %v914
          %v925 = vpack.c.b16 %v917, %v916
          %934 = vmatprep.subr.bf16.mxu0 0
          %935 = vmatpush1.bf16.msra.mxu0 %v918
          %936 = vmatprep.subr.bf16.mxu0 0
          %937 = vmatpush1.bf16.msra.mxu0 %v919
          %938 = vmatprep.subr.bf16.mxu0 0
          %939 = vmatpush1.bf16.msra.mxu0 %v920
          %940 = vmatprep.subr.bf16.mxu0 0
          %941 = vmatpush1.bf16.msra.mxu0 %v921
          %942 = vmatprep.subr.bf16.mxu0 0
          %943 = vmatpush1.bf16.msra.mxu0 %v922
          %944 = vmatprep.subr.bf16.mxu0 0
          %945 = vmatpush1.bf16.msra.mxu0 %v923
          %946 = vmatprep.subr.bf16.mxu0 0
          %947 = vmatpush1.bf16.msra.mxu0 %v924
          %948 = vmatprep.subr.bf16.mxu0 0
          %949 = vmatpush1.bf16.msra.mxu0 %v925
          %950 = vmatprep.subr.bf16.mxu0 0
          %951 = vmatpush1.bf16.msra.mxu0 0
          %952 = vmatprep.subr.bf16.mxu0 0
          %953 = vmatpush1.bf16.msra.mxu0 0
          %954 = vmatprep.subr.bf16.mxu0 0
          %955 = vmatpush1.bf16.msra.mxu0 0
          %956 = vmatprep.subr.bf16.mxu0 0
          %957 = vmatpush1.bf16.msra.mxu0 0
          %958 = vmatprep.subr.bf16.mxu0 0
          %959 = vmatpush1.bf16.msra.mxu0 0
          %960 = vmatprep.subr.bf16.mxu0 0
          %961 = vmatpush1.bf16.msra.mxu0 0
          %962 = vmatprep.subr.bf16.mxu0 0
          %963 = vmatpush1.bf16.msra.mxu0 0
          %964 = vmatprep.subr.bf16.mxu0 0
          %965 = vmatpush1.bf16.msra.mxu0 0
          %966 = vmatprep.mubr.bf16.mxu0 0
          %967 = vmatmul.mubr.bf16.gmra.mrb[0].mxu0 %v870
          %v968 = vpop.f32.mrb[0].mxu0
          %v969 = vadd.f32 %v836, %v968
          %v970 = vpop.f32.mrb[0].mxu0
          %v971 = vpop.f32.mrb[0].mxu0
          %v972 = vadd.f32 %v836, %v971
          %v973 = vpop.f32.mrb[0].mxu0
          %974 = vmatprep.mubr.bf16.mxu0 0
          %975 = vmatmul.mubr.bf16.gmra.mrb[0].mxu0 %v871
          %v976 = vpop.f32.mrb[0].mxu0
          %v977 = vadd.f32 %v836, %v976
          %v978 = vpop.f32.mrb[0].mxu0
          %v979 = vpop.f32.mrb[0].mxu0
          %v980 = vadd.f32 %v836, %v979
          %v981 = vpop.f32.mrb[0].mxu0
          %982 = vmatprep.mubr.bf16.mxu0 0
          %983 = vmatmul.mubr.bf16.gmra.mrb[0].mxu0 %v872
          %v984 = vpop.f32.mrb[0].mxu0
          %v985 = vadd.f32 %v836, %v984
          %v986 = vpop.f32.mrb[0].mxu0
          %v987 = vpop.f32.mrb[0].mxu0
          %v988 = vadd.f32 %v836, %v987
          %v989 = vpop.f32.mrb[0].mxu0
          %990 = vmatprep.mubr.bf16.mxu0 0
          %991 = vmatmul.mubr.bf16.gmra.mrb[0].mxu0 %v873
          %v992 = vpop.f32.mrb[0].mxu0
          %v993 = vadd.f32 %v836, %v992
          %v994 = vpop.f32.mrb[0].mxu0
          %v995 = vpop.f32.mrb[0].mxu0
          %v996 = vadd.f32 %v836, %v995
          %v997 = vpop.f32.mrb[0].mxu0
          %998 = vmatprep.mubr.bf16.mxu0 0
          %999 = vmatmul.mubr.bf16.gmra.mrb[0].mxu0 %v874
          %v1000 = vpop.f32.mrb[0].mxu0
          %v1001 = vadd.f32 %v836, %v1000
          %v1002 = vpop.f32.mrb[0].mxu0
          %v1003 = vpop.f32.mrb[0].mxu0
          %v1004 = vadd.f32 %v836, %v1003
          %v1005 = vpop.f32.mrb[0].mxu0
          %1006 = vmatprep.mubr.bf16.mxu0 0
          %1007 = vmatmul.mubr.bf16.gmra.mrb[0].mxu0 %v875
          %v1008 = vpop.f32.mrb[0].mxu0
          %v1009 = vadd.f32 %v836, %v1008
          %v1010 = vpop.f32.mrb[0].mxu0
          %v1011 = vpop.f32.mrb[0].mxu0
          %v1012 = vadd.f32 %v836, %v1011
          %v1013 = vpop.f32.mrb[0].mxu0
          %1014 = vmatprep.mubr.bf16.mxu0 0
          %1015 = vmatmul.mubr.bf16.gmra.mrb[0].mxu0 %v876
          %v1016 = vpop.f32.mrb[0].mxu0
          %v1017 = vadd.f32 %v836, %v1016
          %v1018 = vpop.f32.mrb[0].mxu0
          %v1019 = vpop.f32.mrb[0].mxu0
          %v1020 = vadd.f32 %v836, %v1019
          %v1021 = vpop.f32.mrb[0].mxu0
          %1022 = vmatprep.mubr.bf16.mxu0 0
          %1023 = vmatmul.mubr.bf16.gmra.mrb[0].mxu0 %v877
          %v1024 = vpop.f32.mrb[0].mxu0
          %v1025 = vadd.f32 %v836, %v1024
          %v1026 = vpop.f32.mrb[0].mxu0
          %v1027 = vpop.f32.mrb[0].mxu0
          %v1028 = vadd.f32 %v836, %v1027
          %v1029 = vpop.f32.mrb[0].mxu0
          %1030 = vdwg.mxu0
          %v1031 = vmax.f32 %v969, 0.0
          %v1032 = vmax.f32 %v972, 0.0
          %v1033 = vmax.f32 %v977, 0.0
          %v1034 = vmax.f32 %v980, 0.0
          %v1035 = vmax.f32 %v985, 0.0
          %v1036 = vmax.f32 %v988, 0.0
          %v1037 = vmax.f32 %v993, 0.0
          %v1038 = vmax.f32 %v996, 0.0
          %v1039 = vmax.f32 %v1001, 0.0
          %v1040 = vmax.f32 %v1004, 0.0
          %v1041 = vmax.f32 %v1009, 0.0
          %v1042 = vmax.f32 %v1012, 0.0
          %v1043 = vmax.f32 %v1017, 0.0
          %v1044 = vmax.f32 %v1020, 0.0
          %v1045 = vmax.f32 %v1025, 0.0
          %v1046 = vmax.f32 %v1028, 0.0
          %v1047 = vpack.c.bf16 %v1032, %v1031
          %v1048 = vpack.c.bf16 %v1034, %v1033
          %v1049 = vpack.c.bf16 %v1036, %v1035
          %v1050 = vpack.c.bf16 %v1038, %v1037
          %v1051 = vpack.c.bf16 %v1040, %v1039
          %v1052 = vpack.c.bf16 %v1042, %v1041
          %v1053 = vpack.c.bf16 %v1044, %v1043
          %v1054 = vpack.c.bf16 %v1046, %v1045
          %v1055 = vld [vmem:[#allocation5] sm:$0xf]
          %v1056 = vld [vmem:[#allocation5 + $0x4] sm:$0xf]
          %v1057 = vld [vmem:[#allocation5 + $0x8] sm:$0xf]
          %v1058 = vld [vmem:[#allocation5 + $0xc] sm:$0xf]
          %v1059 = vld [vmem:[#allocation5 + $0x10] sm:$0xf]
          %v1060 = vld [vmem:[#allocation5 + $0x14] sm:$0xf]
          %v1061 = vld [vmem:[#allocation5 + $0x18] sm:$0xf]
          %v1062 = vld [vmem:[#allocation5 + $0x1c] sm:$0xf]
          %v1063 = vld [vmem:[#allocation5 + $0x20] sm:$0xf]
          %v1064 = vld [vmem:[#allocation5 + $0x24] sm:$0xf]
          %v1065 = vld [vmem:[#allocation5 + $0x28] sm:$0xf]
          %v1066 = vld [vmem:[#allocation5 + $0x2c] sm:$0xf]
          %v1067 = vld [vmem:[#allocation5 + $0x30] sm:$0xf]
          %v1068 = vld [vmem:[#allocation5 + $0x34] sm:$0xf]
          %v1069 = vld [vmem:[#allocation5 + $0x38] sm:$0xf]
          %v1070 = vld [vmem:[#allocation5 + $0x3c] sm:$0xf]
          %v1071 = vld [vmem:[%s9] sm:$0x1]
          %v1073 = vlaneseq
          %v1074 = vshrl.u32 %v1073, 7
          %v1075 = vsub.s32 0, %v1074
          %v1076 = vrot.slane %v1071, %v1075
          %v1094 = vunpack.c.l.b16 %v1055
          %v1095 = vunpack.c.l.b16 %v1056
          %v1096 = vunpack.c.l.b16 %v1057
          %v1097 = vunpack.c.l.b16 %v1058
          %v1098 = vunpack.c.l.b16 %v1059
          %v1099 = vunpack.c.l.b16 %v1060
          %v1100 = vunpack.c.l.b16 %v1061
          %v1101 = vunpack.c.l.b16 %v1062
          %v1102 = vunpack.c.l.b16 %v1063
          %v1103 = vunpack.c.l.b16 %v1064
          %v1104 = vunpack.c.l.b16 %v1065
          %v1105 = vunpack.c.l.b16 %v1066
          %v1106 = vunpack.c.l.b16 %v1067
          %v1107 = vunpack.c.l.b16 %v1068
          %v1108 = vunpack.c.l.b16 %v1069
          %v1109 = vunpack.c.l.b16 %v1070
          %v1110 = vpack.c.b16 %v1095, %v1094
          %v1111 = vpack.c.b16 %v1097, %v1096
          %v1112 = vpack.c.b16 %v1099, %v1098
          %v1113 = vpack.c.b16 %v1101, %v1100
          %v1114 = vpack.c.b16 %v1103, %v1102
          %v1115 = vpack.c.b16 %v1105, %v1104
          %v1116 = vpack.c.b16 %v1107, %v1106
          %v1117 = vpack.c.b16 %v1109, %v1108
          %1126 = vmatprep.subr.bf16.mxu0 0
          %1127 = vmatpush1.bf16.msra.mxu0 %v1110
          %1128 = vmatprep.subr.bf16.mxu0 0
          %1129 = vmatpush1.bf16.msra.mxu0 %v1111
          %1130 = vmatprep.subr.bf16.mxu0 0
          %1131 = vmatpush1.bf16.msra.mxu0 %v1112
          %1132 = vmatprep.subr.bf16.mxu0 0
          %1133 = vmatpush1.bf16.msra.mxu0 %v1113
          %1134 = vmatprep.subr.bf16.mxu0 0
          %1135 = vmatpush1.bf16.msra.mxu0 %v1114
          %1136 = vmatprep.subr.bf16.mxu0 0
          %1137 = vmatpush1.bf16.msra.mxu0 %v1115
          %1138 = vmatprep.subr.bf16.mxu0 0
          %1139 = vmatpush1.bf16.msra.mxu0 %v1116
          %1140 = vmatprep.subr.bf16.mxu0 0
          %1141 = vmatpush1.bf16.msra.mxu0 %v1117
          %1142 = vmatprep.subr.bf16.mxu0 0
          %1143 = vmatpush1.bf16.msra.mxu0 0
          %1144 = vmatprep.subr.bf16.mxu0 0
          %1145 = vmatpush1.bf16.msra.mxu0 0
          %1146 = vmatprep.subr.bf16.mxu0 0
          %1147 = vmatpush1.bf16.msra.mxu0 0
          %1148 = vmatprep.subr.bf16.mxu0 0
          %1149 = vmatpush1.bf16.msra.mxu0 0
          %1150 = vmatprep.subr.bf16.mxu0 0
          %1151 = vmatpush1.bf16.msra.mxu0 0
          %1152 = vmatprep.subr.bf16.mxu0 0
          %1153 = vmatpush1.bf16.msra.mxu0 0
          %1154 = vmatprep.subr.bf16.mxu0 0
          %1155 = vmatpush1.bf16.msra.mxu0 0
          %1156 = vmatprep.subr.bf16.mxu0 0
          %1157 = vmatpush1.bf16.msra.mxu0 0
          %1158 = vmatprep.mubr.bf16.mxu0 0
          %1159 = vmatmul.mubr.bf16.gmra.mrb[0].mxu0 %v1047
          %v1160 = vpop.f32.mrb[0].mxu0
          %v1161 = vadd.f32 %v1076, %v1160
          %v1162 = vpop.f32.mrb[0].mxu0
          %v1163 = vpop.f32.mrb[0].mxu0
          %v1164 = vadd.f32 %v1076, %v1163
          %v1165 = vpop.f32.mrb[0].mxu0
          %1166 = vmatprep.mubr.bf16.mxu0 0
          %1167 = vmatmul.mubr.bf16.gmra.mrb[0].mxu0 %v1048
          %v1168 = vpop.f32.mrb[0].mxu0
          %v1169 = vadd.f32 %v1076, %v1168
          %v1170 = vpop.f32.mrb[0].mxu0
          %v1171 = vpop.f32.mrb[0].mxu0
          %v1172 = vadd.f32 %v1076, %v1171
          %v1173 = vpop.f32.mrb[0].mxu0
          %1174 = vmatprep.mubr.bf16.mxu0 0
          %1175 = vmatmul.mubr.bf16.gmra.mrb[0].mxu0 %v1049
          %v1176 = vpop.f32.mrb[0].mxu0
          %v1177 = vadd.f32 %v1076, %v1176
          %v1178 = vpop.f32.mrb[0].mxu0
          %v1179 = vpop.f32.mrb[0].mxu0
          %v1180 = vadd.f32 %v1076, %v1179
          %v1181 = vpop.f32.mrb[0].mxu0
          %1182 = vmatprep.mubr.bf16.mxu0 0
          %1183 = vmatmul.mubr.bf16.gmra.mrb[0].mxu0 %v1050
          %v1184 = vpop.f32.mrb[0].mxu0
          %v1185 = vadd.f32 %v1076, %v1184
          %v1186 = vpop.f32.mrb[0].mxu0
          %v1187 = vpop.f32.mrb[0].mxu0
          %v1188 = vadd.f32 %v1076, %v1187
          %v1189 = vpop.f32.mrb[0].mxu0
          %1190 = vmatprep.mubr.bf16.mxu0 0
          %1191 = vmatmul.mubr.bf16.gmra.mrb[0].mxu0 %v1051
          %v1192 = vpop.f32.mrb[0].mxu0
          %v1193 = vadd.f32 %v1076, %v1192
          %v1194 = vpop.f32.mrb[0].mxu0
          %v1195 = vpop.f32.mrb[0].mxu0
          %v1196 = vadd.f32 %v1076, %v1195
          %v1197 = vpop.f32.mrb[0].mxu0
          %1198 = vmatprep.mubr.bf16.mxu0 0
          %1199 = vmatmul.mubr.bf16.gmra.mrb[0].mxu0 %v1052
          %v1200 = vpop.f32.mrb[0].mxu0
          %v1201 = vadd.f32 %v1076, %v1200
          %v1202 = vpop.f32.mrb[0].mxu0
          %v1203 = vpop.f32.mrb[0].mxu0
          %v1204 = vadd.f32 %v1076, %v1203
          %v1205 = vpop.f32.mrb[0].mxu0
          %1206 = vmatprep.mubr.bf16.mxu0 0
          %1207 = vmatmul.mubr.bf16.gmra.mrb[0].mxu0 %v1053
          %v1208 = vpop.f32.mrb[0].mxu0
          %v1209 = vadd.f32 %v1076, %v1208
          %v1210 = vpop.f32.mrb[0].mxu0
          %v1211 = vpop.f32.mrb[0].mxu0
          %v1212 = vadd.f32 %v1076, %v1211
          %v1213 = vpop.f32.mrb[0].mxu0
          %1214 = vmatprep.mubr.bf16.mxu0 0
          %1215 = vmatmul.mubr.bf16.gmra.mrb[0].mxu0 %v1054
          %v1216 = vpop.f32.mrb[0].mxu0
          %v1217 = vadd.f32 %v1076, %v1216
          %v1218 = vpop.f32.mrb[0].mxu0
          %v1219 = vpop.f32.mrb[0].mxu0
          %v1220 = vadd.f32 %v1076, %v1219
          %v1221 = vpop.f32.mrb[0].mxu0
          %1222 = vdwg.mxu0
          %v1223 = vlaneseq
          %v1224 = vand.u32 %v1223, 127
          %v1225 = vld [vmem:[%s744] sm:$0xff]
          %v1226 = vld [vmem:[%s744 + $0x8] sm:$0xff]
          %v1227 = vld [vmem:[%s744 + $0x10] sm:$0xff]
          %v1228 = vld [vmem:[%s744 + $0x18] sm:$0xff]
          %v1229 = vld [vmem:[%s744 + $0x20] sm:$0xff]
          %v1230 = vld [vmem:[%s744 + $0x28] sm:$0xff]
          %v1231 = vld [vmem:[%s744 + $0x30] sm:$0xff]
          %v1232 = vld [vmem:[%s744 + $0x38] sm:$0xff]
          %v1233 = vld [vmem:[%s744 + $0x40] sm:$0xff]
          %v1234 = vld [vmem:[%s744 + $0x48] sm:$0xff]
          %v1235 = vld [vmem:[%s744 + $0x50] sm:$0xff]
          %v1236 = vld [vmem:[%s744 + $0x58] sm:$0xff]
          %v1237 = vld [vmem:[%s744 + $0x60] sm:$0xff]
          %v1238 = vld [vmem:[%s744 + $0x68] sm:$0xff]
          %v1239 = vld [vmem:[%s744 + $0x70] sm:$0xff]
          %v1240 = vld [vmem:[%s744 + $0x78] sm:$0xff]
          %1241 = vset.pattern.permute.xlu0 0
          %1242 = vperm.xlu0 %1241, %v1225
          %v1243 = vpop.permute.xlu0 %1242
          %1244 = vset.pattern.permute.xlu0 0
          %1245 = vperm.xlu0 %1244, %v1226
          %v1246 = vpop.permute.xlu0 %1245
          %1247 = vset.pattern.permute.xlu0 0
          %1248 = vperm.xlu0 %1247, %v1227
          %v1249 = vpop.permute.xlu0 %1248
          %1250 = vset.pattern.permute.xlu0 0
          %1251 = vperm.xlu0 %1250, %v1228
          %v1252 = vpop.permute.xlu0 %1251
          %1253 = vset.pattern.permute.xlu0 0
          %1254 = vperm.xlu0 %1253, %v1229
          %v1255 = vpop.permute.xlu0 %1254
          %1256 = vset.pattern.permute.xlu0 0
          %1257 = vperm.xlu0 %1256, %v1230
          %v1258 = vpop.permute.xlu0 %1257
          %1259 = vset.pattern.permute.xlu0 0
          %1260 = vperm.xlu0 %1259, %v1231
          %v1261 = vpop.permute.xlu0 %1260
          %1262 = vset.pattern.permute.xlu0 0
          %1263 = vperm.xlu0 %1262, %v1232
          %v1264 = vpop.permute.xlu0 %1263
          %1265 = vset.pattern.permute.xlu0 0
          %1266 = vperm.xlu0 %1265, %v1233
          %v1267 = vpop.permute.xlu0 %1266
          %1268 = vset.pattern.permute.xlu0 0
          %1269 = vperm.xlu0 %1268, %v1234
          %v1270 = vpop.permute.xlu0 %1269
          %1271 = vset.pattern.permute.xlu0 0
          %1272 = vperm.xlu0 %1271, %v1235
          %v1273 = vpop.permute.xlu0 %1272
          %1274 = vset.pattern.permute.xlu0 0
          %1275 = vperm.xlu0 %1274, %v1236
          %v1276 = vpop.permute.xlu0 %1275
          %1277 = vset.pattern.permute.xlu0 0
          %1278 = vperm.xlu0 %1277, %v1237
          %v1279 = vpop.permute.xlu0 %1278
          %1280 = vset.pattern.permute.xlu0 0
          %1281 = vperm.xlu0 %1280, %v1238
          %v1282 = vpop.permute.xlu0 %1281
          %1283 = vset.pattern.permute.xlu0 0
          %1284 = vperm.xlu0 %1283, %v1239
          %v1285 = vpop.permute.xlu0 %1284
          %1286 = vset.pattern.permute.xlu0 0
          %1287 = vperm.xlu0 %1286, %v1240
          %v1288 = vpop.permute.xlu0 %1287
          %vm1289 = vcmp.eq.s32.totalorder %v1224, %v1243
          %vm1290 = vcmp.eq.s32.totalorder %v1224, %v1246
          %vm1291 = vcmp.eq.s32.totalorder %v1224, %v1249
          %vm1292 = vcmp.eq.s32.totalorder %v1224, %v1252
          %vm1293 = vcmp.eq.s32.totalorder %v1224, %v1255
          %vm1294 = vcmp.eq.s32.totalorder %v1224, %v1258
          %vm1295 = vcmp.eq.s32.totalorder %v1224, %v1261
          %vm1296 = vcmp.eq.s32.totalorder %v1224, %v1264
          %vm1297 = vcmp.eq.s32.totalorder %v1224, %v1267
          %vm1298 = vcmp.eq.s32.totalorder %v1224, %v1270
          %vm1299 = vcmp.eq.s32.totalorder %v1224, %v1273
          %vm1300 = vcmp.eq.s32.totalorder %v1224, %v1276
          %vm1301 = vcmp.eq.s32.totalorder %v1224, %v1279
          %vm1302 = vcmp.eq.s32.totalorder %v1224, %v1282
          %vm1303 = vcmp.eq.s32.totalorder %v1224, %v1285
          %vm1304 = vcmp.eq.s32.totalorder %v1224, %v1288
          %v1305 = vsel %vm1289, 1, 0
          %v1306 = vsel %vm1290, 1, 0
          %v1307 = vsel %vm1291, 1, 0
          %v1308 = vsel %vm1292, 1, 0
          %v1309 = vsel %vm1293, 1, 0
          %v1310 = vsel %vm1294, 1, 0
          %v1311 = vsel %vm1295, 1, 0
          %v1312 = vsel %vm1296, 1, 0
          %v1313 = vsel %vm1297, 1, 0
          %v1314 = vsel %vm1298, 1, 0
          %v1315 = vsel %vm1299, 1, 0
          %v1316 = vsel %vm1300, 1, 0
          %v1317 = vsel %vm1301, 1, 0
          %v1318 = vsel %vm1302, 1, 0
          %v1319 = vsel %vm1303, 1, 0
          %v1320 = vsel %vm1304, 1, 0
          %v1321 = vcvt.s32.f32 %v1305
          %v1322 = vcvt.s32.f32 %v1306
          %v1323 = vcvt.s32.f32 %v1307
          %v1324 = vcvt.s32.f32 %v1308
          %v1325 = vcvt.s32.f32 %v1309
          %v1326 = vcvt.s32.f32 %v1310
          %v1327 = vcvt.s32.f32 %v1311
          %v1328 = vcvt.s32.f32 %v1312
          %v1329 = vcvt.s32.f32 %v1313
          %v1330 = vcvt.s32.f32 %v1314
          %v1331 = vcvt.s32.f32 %v1315
          %v1332 = vcvt.s32.f32 %v1316
          %v1333 = vcvt.s32.f32 %v1317
          %v1334 = vcvt.s32.f32 %v1318
          %v1335 = vcvt.s32.f32 %v1319
          %v1336 = vcvt.s32.f32 %v1320
          %v1337 = vpack.c.bf16 %v1322, %v1321
          %v1338 = vpack.c.bf16 %v1324, %v1323
          %v1339 = vpack.c.bf16 %v1326, %v1325
          %v1340 = vpack.c.bf16 %v1328, %v1327
          %v1341 = vpack.c.bf16 %v1330, %v1329
          %v1342 = vpack.c.bf16 %v1332, %v1331
          %v1343 = vpack.c.bf16 %v1334, %v1333
          %v1344 = vpack.c.bf16 %v1336, %v1335
          %v1345 = vld [vmem:[%s4] sm:$0xf]
          %v1346 = vld [vmem:[%s4 + $0x4] sm:$0xf]
          %v1347 = vld [vmem:[%s4 + $0x8] sm:$0xf]
          %v1348 = vld [vmem:[%s4 + $0xc] sm:$0xf]
          %v1349 = vld [vmem:[%s4 + $0x10] sm:$0xf]
          %v1350 = vld [vmem:[%s4 + $0x14] sm:$0xf]
          %v1351 = vld [vmem:[%s4 + $0x18] sm:$0xf]
          %v1352 = vld [vmem:[%s4 + $0x1c] sm:$0xf]
          %v1353 = vld [vmem:[%s4 + $0x20] sm:$0xf]
          %v1354 = vld [vmem:[%s4 + $0x24] sm:$0xf]
          %v1355 = vld [vmem:[%s4 + $0x28] sm:$0xf]
          %v1356 = vld [vmem:[%s4 + $0x2c] sm:$0xf]
          %v1357 = vld [vmem:[%s4 + $0x30] sm:$0xf]
          %v1358 = vld [vmem:[%s4 + $0x34] sm:$0xf]
          %v1359 = vld [vmem:[%s4 + $0x38] sm:$0xf]
          %v1360 = vld [vmem:[%s4 + $0x3c] sm:$0xf]
          %v1377 = vunpack.c.l.b16 %v1345
          %v1378 = vunpack.c.l.b16 %v1346
          %v1379 = vunpack.c.l.b16 %v1347
          %v1380 = vunpack.c.l.b16 %v1348
          %v1381 = vunpack.c.l.b16 %v1349
          %v1382 = vunpack.c.l.b16 %v1350
          %v1383 = vunpack.c.l.b16 %v1351
          %v1384 = vunpack.c.l.b16 %v1352
          %v1385 = vunpack.c.l.b16 %v1353
          %v1386 = vunpack.c.l.b16 %v1354
          %v1387 = vunpack.c.l.b16 %v1355
          %v1388 = vunpack.c.l.b16 %v1356
          %v1389 = vunpack.c.l.b16 %v1357
          %v1390 = vunpack.c.l.b16 %v1358
          %v1391 = vunpack.c.l.b16 %v1359
          %v1392 = vunpack.c.l.b16 %v1360
          %v1393 = vpack.c.b16 %v1378, %v1377
          %v1394 = vpack.c.b16 %v1380, %v1379
          %v1395 = vpack.c.b16 %v1382, %v1381
          %v1396 = vpack.c.b16 %v1384, %v1383
          %v1397 = vpack.c.b16 %v1386, %v1385
          %v1398 = vpack.c.b16 %v1388, %v1387
          %v1399 = vpack.c.b16 %v1390, %v1389
          %v1400 = vpack.c.b16 %v1392, %v1391
          %1409 = vmatprep.subr.bf16.mxu0 0
          %1410 = vmatpush1.bf16.msra.mxu0 %v1393
          %1411 = vmatprep.subr.bf16.mxu0 0
          %1412 = vmatpush1.bf16.msra.mxu0 %v1394
          %1413 = vmatprep.subr.bf16.mxu0 0
          %1414 = vmatpush1.bf16.msra.mxu0 %v1395
          %1415 = vmatprep.subr.bf16.mxu0 0
          %1416 = vmatpush1.bf16.msra.mxu0 %v1396
          %1417 = vmatprep.subr.bf16.mxu0 0
          %1418 = vmatpush1.bf16.msra.mxu0 %v1397
          %1419 = vmatprep.subr.bf16.mxu0 0
          %1420 = vmatpush1.bf16.msra.mxu0 %v1398
          %1421 = vmatprep.subr.bf16.mxu0 0
          %1422 = vmatpush1.bf16.msra.mxu0 %v1399
          %1423 = vmatprep.subr.bf16.mxu0 0
          %1424 = vmatpush1.bf16.msra.mxu0 %v1400
          %1425 = vmatprep.subr.bf16.mxu0 0
          %1426 = vmatpush1.bf16.msra.mxu0 0
          %1427 = vmatprep.subr.bf16.mxu0 0
          %1428 = vmatpush1.bf16.msra.mxu0 0
          %1429 = vmatprep.subr.bf16.mxu0 0
          %1430 = vmatpush1.bf16.msra.mxu0 0
          %1431 = vmatprep.subr.bf16.mxu0 0
          %1432 = vmatpush1.bf16.msra.mxu0 0
          %1433 = vmatprep.subr.bf16.mxu0 0
          %1434 = vmatpush1.bf16.msra.mxu0 0
          %1435 = vmatprep.subr.bf16.mxu0 0
          %1436 = vmatpush1.bf16.msra.mxu0 0
          %1437 = vmatprep.subr.bf16.mxu0 0
          %1438 = vmatpush1.bf16.msra.mxu0 0
          %1439 = vmatprep.subr.bf16.mxu0 0
          %1440 = vmatpush1.bf16.msra.mxu0 0
          %1441 = vmatprep.mubr.bf16.mxu0 0
          %1442 = vmatmul.mubr.bf16.gmra.mrb[0].mxu0 %v1337
          %v1443 = vpop.f32.mrb[0].mxu0
          %v1444 = vadd.f32 0.0, %v1443
          %v1445 = vpop.f32.mrb[0].mxu0
          %v1446 = vpop.f32.mrb[0].mxu0
          %v1447 = vadd.f32 0.0, %v1446
          %v1448 = vpop.f32.mrb[0].mxu0
          %1449 = vmatprep.mubr.bf16.mxu0 0
          %1450 = vmatmul.mubr.bf16.gmra.mrb[0].mxu0 %v1338
          %v1451 = vpop.f32.mrb[0].mxu0
          %v1452 = vadd.f32 0.0, %v1451
          %v1453 = vpop.f32.mrb[0].mxu0
          %v1454 = vpop.f32.mrb[0].mxu0
          %v1455 = vadd.f32 0.0, %v1454
          %v1456 = vpop.f32.mrb[0].mxu0
          %1457 = vmatprep.mubr.bf16.mxu0 0
          %1458 = vmatmul.mubr.bf16.gmra.mrb[0].mxu0 %v1339
          %v1459 = vpop.f32.mrb[0].mxu0
          %v1460 = vadd.f32 0.0, %v1459
          %v1461 = vpop.f32.mrb[0].mxu0
          %v1462 = vpop.f32.mrb[0].mxu0
          %v1463 = vadd.f32 0.0, %v1462
          %v1464 = vpop.f32.mrb[0].mxu0
          %1465 = vmatprep.mubr.bf16.mxu0 0
          %1466 = vmatmul.mubr.bf16.gmra.mrb[0].mxu0 %v1340
          %v1467 = vpop.f32.mrb[0].mxu0
          %v1468 = vadd.f32 0.0, %v1467
          %v1469 = vpop.f32.mrb[0].mxu0
          %v1470 = vpop.f32.mrb[0].mxu0
          %v1471 = vadd.f32 0.0, %v1470
          %v1472 = vpop.f32.mrb[0].mxu0
          %1473 = vmatprep.mubr.bf16.mxu0 0
          %1474 = vmatmul.mubr.bf16.gmra.mrb[0].mxu0 %v1341
          %v1475 = vpop.f32.mrb[0].mxu0
          %v1476 = vadd.f32 0.0, %v1475
          %v1477 = vpop.f32.mrb[0].mxu0
          %v1478 = vpop.f32.mrb[0].mxu0
          %v1479 = vadd.f32 0.0, %v1478
          %v1480 = vpop.f32.mrb[0].mxu0
          %1481 = vmatprep.mubr.bf16.mxu0 0
          %1482 = vmatmul.mubr.bf16.gmra.mrb[0].mxu0 %v1342
          %v1483 = vpop.f32.mrb[0].mxu0
          %v1484 = vadd.f32 0.0, %v1483
          %v1485 = vpop.f32.mrb[0].mxu0
          %v1486 = vpop.f32.mrb[0].mxu0
          %v1487 = vadd.f32 0.0, %v1486
          %v1488 = vpop.f32.mrb[0].mxu0
          %1489 = vmatprep.mubr.bf16.mxu0 0
          %1490 = vmatmul.mubr.bf16.gmra.mrb[0].mxu0 %v1343
          %v1491 = vpop.f32.mrb[0].mxu0
          %v1492 = vadd.f32 0.0, %v1491
          %v1493 = vpop.f32.mrb[0].mxu0
          %v1494 = vpop.f32.mrb[0].mxu0
          %v1495 = vadd.f32 0.0, %v1494
          %v1496 = vpop.f32.mrb[0].mxu0
          %1497 = vmatprep.mubr.bf16.mxu0 0
          %1498 = vmatmul.mubr.bf16.gmra.mrb[0].mxu0 %v1344
          %v1499 = vpop.f32.mrb[0].mxu0
          %v1500 = vadd.f32 0.0, %v1499
          %v1501 = vpop.f32.mrb[0].mxu0
          %v1502 = vpop.f32.mrb[0].mxu0
          %v1503 = vadd.f32 0.0, %v1502
          %v1504 = vpop.f32.mrb[0].mxu0
          %1505 = vdwg.mxu0
          %v1506 = vpack.c.bf16 %v1447, %v1444
          %v1507 = vpack.c.bf16 %v1455, %v1452
          %v1508 = vpack.c.bf16 %v1463, %v1460
          %v1509 = vpack.c.bf16 %v1471, %v1468
          %v1510 = vpack.c.bf16 %v1479, %v1476
          %v1511 = vpack.c.bf16 %v1487, %v1484
          %v1512 = vpack.c.bf16 %v1495, %v1492
          %v1513 = vpack.c.bf16 %v1503, %v1500
          %v1514 = vld [vmem:[%s5] sm:$0xf]
          %v1515 = vld [vmem:[%s5 + $0x4] sm:$0xf]
          %v1516 = vld [vmem:[%s5 + $0x8] sm:$0xf]
          %v1517 = vld [vmem:[%s5 + $0xc] sm:$0xf]
          %v1518 = vld [vmem:[%s5 + $0x10] sm:$0xf]
          %v1519 = vld [vmem:[%s5 + $0x14] sm:$0xf]
          %v1520 = vld [vmem:[%s5 + $0x18] sm:$0xf]
          %v1521 = vld [vmem:[%s5 + $0x1c] sm:$0xf]
          %v1522 = vld [vmem:[%s5 + $0x20] sm:$0xf]
          %v1523 = vld [vmem:[%s5 + $0x24] sm:$0xf]
          %v1524 = vld [vmem:[%s5 + $0x28] sm:$0xf]
          %v1525 = vld [vmem:[%s5 + $0x2c] sm:$0xf]
          %v1526 = vld [vmem:[%s5 + $0x30] sm:$0xf]
          %v1527 = vld [vmem:[%s5 + $0x34] sm:$0xf]
          %v1528 = vld [vmem:[%s5 + $0x38] sm:$0xf]
          %v1529 = vld [vmem:[%s5 + $0x3c] sm:$0xf]
          %v1546 = vunpack.c.l.b16 %v1514
          %v1547 = vunpack.c.l.b16 %v1515
          %v1548 = vunpack.c.l.b16 %v1516
          %v1549 = vunpack.c.l.b16 %v1517
          %v1550 = vunpack.c.l.b16 %v1518
          %v1551 = vunpack.c.l.b16 %v1519
          %v1552 = vunpack.c.l.b16 %v1520
          %v1553 = vunpack.c.l.b16 %v1521
          %v1554 = vunpack.c.l.b16 %v1522
          %v1555 = vunpack.c.l.b16 %v1523
          %v1556 = vunpack.c.l.b16 %v1524
          %v1557 = vunpack.c.l.b16 %v1525
          %v1558 = vunpack.c.l.b16 %v1526
          %v1559 = vunpack.c.l.b16 %v1527
          %v1560 = vunpack.c.l.b16 %v1528
          %v1561 = vunpack.c.l.b16 %v1529
          %v1562 = vpack.c.b16 %v1547, %v1546
          %v1563 = vpack.c.b16 %v1549, %v1548
          %v1564 = vpack.c.b16 %v1551, %v1550
          %v1565 = vpack.c.b16 %v1553, %v1552
          %v1566 = vpack.c.b16 %v1555, %v1554
          %v1567 = vpack.c.b16 %v1557, %v1556
          %v1568 = vpack.c.b16 %v1559, %v1558
          %v1569 = vpack.c.b16 %v1561, %v1560
          %1578 = vmatprep.subr.bf16.mxu0 0
          %1579 = vmatpush1.bf16.msra.mxu0 %v1562
          %1580 = vmatprep.subr.bf16.mxu0 0
          %1581 = vmatpush1.bf16.msra.mxu0 %v1563
          %1582 = vmatprep.subr.bf16.mxu0 0
          %1583 = vmatpush1.bf16.msra.mxu0 %v1564
          %1584 = vmatprep.subr.bf16.mxu0 0
          %1585 = vmatpush1.bf16.msra.mxu0 %v1565
          %1586 = vmatprep.subr.bf16.mxu0 0
          %1587 = vmatpush1.bf16.msra.mxu0 %v1566
          %1588 = vmatprep.subr.bf16.mxu0 0
          %1589 = vmatpush1.bf16.msra.mxu0 %v1567
          %1590 = vmatprep.subr.bf16.mxu0 0
          %1591 = vmatpush1.bf16.msra.mxu0 %v1568
          %1592 = vmatprep.subr.bf16.mxu0 0
          %1593 = vmatpush1.bf16.msra.mxu0 %v1569
          %1594 = vmatprep.subr.bf16.mxu0 0
          %1595 = vmatpush1.bf16.msra.mxu0 0
          %1596 = vmatprep.subr.bf16.mxu0 0
          %1597 = vmatpush1.bf16.msra.mxu0 0
          %1598 = vmatprep.subr.bf16.mxu0 0
          %1599 = vmatpush1.bf16.msra.mxu0 0
          %1600 = vmatprep.subr.bf16.mxu0 0
          %1601 = vmatpush1.bf16.msra.mxu0 0
          %1602 = vmatprep.subr.bf16.mxu0 0
          %1603 = vmatpush1.bf16.msra.mxu0 0
          %1604 = vmatprep.subr.bf16.mxu0 0
          %1605 = vmatpush1.bf16.msra.mxu0 0
          %1606 = vmatprep.subr.bf16.mxu0 0
          %1607 = vmatpush1.bf16.msra.mxu0 0
          %1608 = vmatprep.subr.bf16.mxu0 0
          %1609 = vmatpush1.bf16.msra.mxu0 0
          %1610 = vmatprep.mubr.bf16.mxu0 0
          %1611 = vmatmul.mubr.bf16.gmra.mrb[0].mxu0 %v1506
          %v1612 = vpop.f32.mrb[0].mxu0
          %v1613 = vadd.f32 0.0, %v1612
          %v1614 = vpop.f32.mrb[0].mxu0
          %v1615 = vpop.f32.mrb[0].mxu0
          %v1616 = vadd.f32 0.0, %v1615
          %v1617 = vpop.f32.mrb[0].mxu0
          %1618 = vmatprep.mubr.bf16.mxu0 0
          %1619 = vmatmul.mubr.bf16.gmra.mrb[0].mxu0 %v1507
          %v1620 = vpop.f32.mrb[0].mxu0
          %v1621 = vadd.f32 0.0, %v1620
          %v1622 = vpop.f32.mrb[0].mxu0
          %v1623 = vpop.f32.mrb[0].mxu0
          %v1624 = vadd.f32 0.0, %v1623
          %v1625 = vpop.f32.mrb[0].mxu0
          %1626 = vmatprep.mubr.bf16.mxu0 0
          %1627 = vmatmul.mubr.bf16.gmra.mrb[0].mxu0 %v1508
          %v1628 = vpop.f32.mrb[0].mxu0
          %v1629 = vadd.f32 0.0, %v1628
          %v1630 = vpop.f32.mrb[0].mxu0
          %v1631 = vpop.f32.mrb[0].mxu0
          %v1632 = vadd.f32 0.0, %v1631
          %v1633 = vpop.f32.mrb[0].mxu0
          %1634 = vmatprep.mubr.bf16.mxu0 0
          %1635 = vmatmul.mubr.bf16.gmra.mrb[0].mxu0 %v1509
          %v1636 = vpop.f32.mrb[0].mxu0
          %v1637 = vadd.f32 0.0, %v1636
          %v1638 = vpop.f32.mrb[0].mxu0
          %v1639 = vpop.f32.mrb[0].mxu0
          %v1640 = vadd.f32 0.0, %v1639
          %v1641 = vpop.f32.mrb[0].mxu0
          %1642 = vmatprep.mubr.bf16.mxu0 0
          %1643 = vmatmul.mubr.bf16.gmra.mrb[0].mxu0 %v1510
          %v1644 = vpop.f32.mrb[0].mxu0
          %v1645 = vadd.f32 0.0, %v1644
          %v1646 = vpop.f32.mrb[0].mxu0
          %v1647 = vpop.f32.mrb[0].mxu0
          %v1648 = vadd.f32 0.0, %v1647
          %v1649 = vpop.f32.mrb[0].mxu0
          %1650 = vmatprep.mubr.bf16.mxu0 0
          %1651 = vmatmul.mubr.bf16.gmra.mrb[0].mxu0 %v1511
          %v1652 = vpop.f32.mrb[0].mxu0
          %v1653 = vadd.f32 0.0, %v1652
          %v1654 = vpop.f32.mrb[0].mxu0
          %v1655 = vpop.f32.mrb[0].mxu0
          %v1656 = vadd.f32 0.0, %v1655
          %v1657 = vpop.f32.mrb[0].mxu0
          %1658 = vmatprep.mubr.bf16.mxu0 0
          %1659 = vmatmul.mubr.bf16.gmra.mrb[0].mxu0 %v1512
          %v1660 = vpop.f32.mrb[0].mxu0
          %v1661 = vadd.f32 0.0, %v1660
          %v1662 = vpop.f32.mrb[0].mxu0
          %v1663 = vpop.f32.mrb[0].mxu0
          %v1664 = vadd.f32 0.0, %v1663
          %v1665 = vpop.f32.mrb[0].mxu0
          %1666 = vmatprep.mubr.bf16.mxu0 0
          %1667 = vmatmul.mubr.bf16.gmra.mrb[0].mxu0 %v1513
          %v1668 = vpop.f32.mrb[0].mxu0
          %v1669 = vadd.f32 0.0, %v1668
          %v1670 = vpop.f32.mrb[0].mxu0
          %v1671 = vpop.f32.mrb[0].mxu0
          %v1672 = vadd.f32 0.0, %v1671
          %v1673 = vpop.f32.mrb[0].mxu0
          %1674 = vdwg.mxu0
          %v1675 = vmul.f32 %v1613, %v1161
          %v1676 = vmul.f32 %v1616, %v1164
          %v1677 = vmul.f32 %v1621, %v1169
          %v1678 = vmul.f32 %v1624, %v1172
          %v1679 = vmul.f32 %v1629, %v1177
          %v1680 = vmul.f32 %v1632, %v1180
          %v1681 = vmul.f32 %v1637, %v1185
          %v1682 = vmul.f32 %v1640, %v1188
          %v1683 = vmul.f32 %v1645, %v1193
          %v1684 = vmul.f32 %v1648, %v1196
          %v1685 = vmul.f32 %v1653, %v1201
          %v1686 = vmul.f32 %v1656, %v1204
          %v1687 = vmul.f32 %v1661, %v1209
          %v1688 = vmul.f32 %v1664, %v1212
          %v1689 = vmul.f32 %v1669, %v1217
          %v1690 = vmul.f32 %v1672, %v1220
          %v1691 = vpack.c.bf16 %v1676, %v1675
          %v1692 = vpack.c.bf16 %v1678, %v1677
          %v1693 = vpack.c.bf16 %v1680, %v1679
          %v1694 = vpack.c.bf16 %v1682, %v1681
          %v1695 = vpack.c.bf16 %v1684, %v1683
          %v1696 = vpack.c.bf16 %v1686, %v1685
          %v1697 = vpack.c.bf16 %v1688, %v1687
          %v1698 = vpack.c.bf16 %v1690, %v1689
          %v1699 = vld [vmem:[#allocation10] sm:$0xf]
          %v1700 = vld [vmem:[#allocation10 + $0x4] sm:$0xf]
          %v1701 = vld [vmem:[#allocation10 + $0x8] sm:$0xf]
          %v1702 = vld [vmem:[#allocation10 + $0xc] sm:$0xf]
          %v1703 = vld [vmem:[#allocation10 + $0x10] sm:$0xf]
          %v1704 = vld [vmem:[#allocation10 + $0x14] sm:$0xf]
          %v1705 = vld [vmem:[#allocation10 + $0x18] sm:$0xf]
          %v1706 = vld [vmem:[#allocation10 + $0x1c] sm:$0xf]
          %v1707 = vld [vmem:[#allocation10 + $0x20] sm:$0xf]
          %v1708 = vld [vmem:[#allocation10 + $0x24] sm:$0xf]
          %v1709 = vld [vmem:[#allocation10 + $0x28] sm:$0xf]
          %v1710 = vld [vmem:[#allocation10 + $0x2c] sm:$0xf]
          %v1711 = vld [vmem:[#allocation10 + $0x30] sm:$0xf]
          %v1712 = vld [vmem:[#allocation10 + $0x34] sm:$0xf]
          %v1713 = vld [vmem:[#allocation10 + $0x38] sm:$0xf]
          %v1714 = vld [vmem:[#allocation10 + $0x3c] sm:$0xf]
          %vm1715 = vcmp.eq.s32.totalorder %v1224, 8
          %v1716 = vsel %vm1715, 1, 0
          %v1717 = vcvt.s32.f32 %v1716
          %v1734 = vunpack.c.l.b16 %v1699
          %v1735 = vunpack.c.l.b16 %v1700
          %v1736 = vunpack.c.l.b16 %v1701
          %v1737 = vunpack.c.l.b16 %v1702
          %v1738 = vunpack.c.l.b16 %v1703
          %v1739 = vunpack.c.l.b16 %v1704
          %v1740 = vunpack.c.l.b16 %v1705
          %v1741 = vunpack.c.l.b16 %v1706
          %v1742 = vunpack.c.l.b16 %v1707
          %v1743 = vunpack.c.l.b16 %v1708
          %v1744 = vunpack.c.l.b16 %v1709
          %v1745 = vunpack.c.l.b16 %v1710
          %v1746 = vunpack.c.l.b16 %v1711
          %v1747 = vunpack.c.l.b16 %v1712
          %v1748 = vunpack.c.l.b16 %v1713
          %v1749 = vunpack.c.l.b16 %v1714
          %v1750 = vpack.c.b16 %v1735, %v1734
          %v1751 = vpack.c.b16 %v1737, %v1736
          %v1752 = vpack.c.b16 %v1739, %v1738
          %v1753 = vpack.c.b16 %v1741, %v1740
          %v1754 = vpack.c.b16 %v1743, %v1742
          %v1755 = vpack.c.b16 %v1745, %v1744
          %v1756 = vpack.c.b16 %v1747, %v1746
          %v1757 = vpack.c.b16 %v1749, %v1748
          %1766 = vmatprep.subr.bf16.mxu0 0
          %1767 = vmatpush1.bf16.msra.mxu0 %v1750
          %1768 = vmatprep.subr.bf16.mxu0 0
          %1769 = vmatpush1.bf16.msra.mxu0 %v1751
          %1770 = vmatprep.subr.bf16.mxu0 0
          %1771 = vmatpush1.bf16.msra.mxu0 %v1752
          %1772 = vmatprep.subr.bf16.mxu0 0
          %1773 = vmatpush1.bf16.msra.mxu0 %v1753
          %1774 = vmatprep.subr.bf16.mxu0 0
          %1775 = vmatpush1.bf16.msra.mxu0 %v1754
          %1776 = vmatprep.subr.bf16.mxu0 0
          %1777 = vmatpush1.bf16.msra.mxu0 %v1755
          %1778 = vmatprep.subr.bf16.mxu0 0
          %1779 = vmatpush1.bf16.msra.mxu0 %v1756
          %1780 = vmatprep.subr.bf16.mxu0 0
          %1781 = vmatpush1.bf16.msra.mxu0 %v1757
          %1782 = vmatprep.subr.bf16.mxu0 0
          %1783 = vmatpush1.bf16.msra.mxu0 0
          %1784 = vmatprep.subr.bf16.mxu0 0
          %1785 = vmatpush1.bf16.msra.mxu0 0
          %1786 = vmatprep.subr.bf16.mxu0 0
          %1787 = vmatpush1.bf16.msra.mxu0 0
          %1788 = vmatprep.subr.bf16.mxu0 0
          %1789 = vmatpush1.bf16.msra.mxu0 0
          %1790 = vmatprep.subr.bf16.mxu0 0
          %1791 = vmatpush1.bf16.msra.mxu0 0
          %1792 = vmatprep.subr.bf16.mxu0 0
          %1793 = vmatpush1.bf16.msra.mxu0 0
          %1794 = vmatprep.subr.bf16.mxu0 0
          %1795 = vmatpush1.bf16.msra.mxu0 0
          %1796 = vmatprep.subr.bf16.mxu0 0
          %1797 = vmatpush1.bf16.msra.mxu0 0
          %1798 = vmatprep.mubr.bf16.mxu0 0
          %1799 = vmatmul.mubr.bf16.gmra.mrb[0].mxu0 %v1691
          %v1800 = vpop.f32.mrb[0].mxu0
          %v1801 = vadd.f32 %v1717, %v1800
          %v1802 = vpop.f32.mrb[0].mxu0
          %v1803 = vpop.f32.mrb[0].mxu0
          %v1804 = vadd.f32 %v1717, %v1803
          %v1805 = vpop.f32.mrb[0].mxu0
          %1806 = vmatprep.mubr.bf16.mxu0 0
          %1807 = vmatmul.mubr.bf16.gmra.mrb[0].mxu0 %v1692
          %v1808 = vpop.f32.mrb[0].mxu0
          %v1809 = vadd.f32 %v1717, %v1808
          %v1810 = vpop.f32.mrb[0].mxu0
          %v1811 = vpop.f32.mrb[0].mxu0
          %v1812 = vadd.f32 %v1717, %v1811
          %v1813 = vpop.f32.mrb[0].mxu0
          %1814 = vmatprep.mubr.bf16.mxu0 0
          %1815 = vmatmul.mubr.bf16.gmra.mrb[0].mxu0 %v1693
          %v1816 = vpop.f32.mrb[0].mxu0
          %v1817 = vadd.f32 %v1717, %v1816
          %v1818 = vpop.f32.mrb[0].mxu0
          %v1819 = vpop.f32.mrb[0].mxu0
          %v1820 = vadd.f32 %v1717, %v1819
          %v1821 = vpop.f32.mrb[0].mxu0
          %1822 = vmatprep.mubr.bf16.mxu0 0
          %1823 = vmatmul.mubr.bf16.gmra.mrb[0].mxu0 %v1694
          %v1824 = vpop.f32.mrb[0].mxu0
          %v1825 = vadd.f32 %v1717, %v1824
          %v1826 = vpop.f32.mrb[0].mxu0
          %v1827 = vpop.f32.mrb[0].mxu0
          %v1828 = vadd.f32 %v1717, %v1827
          %v1829 = vpop.f32.mrb[0].mxu0
          %1830 = vmatprep.mubr.bf16.mxu0 0
          %1831 = vmatmul.mubr.bf16.gmra.mrb[0].mxu0 %v1695
          %v1832 = vpop.f32.mrb[0].mxu0
          %v1833 = vadd.f32 %v1717, %v1832
          %v1834 = vpop.f32.mrb[0].mxu0
          %v1835 = vpop.f32.mrb[0].mxu0
          %v1836 = vadd.f32 %v1717, %v1835
          %v1837 = vpop.f32.mrb[0].mxu0
          %1838 = vmatprep.mubr.bf16.mxu0 0
          %1839 = vmatmul.mubr.bf16.gmra.mrb[0].mxu0 %v1696
          %v1840 = vpop.f32.mrb[0].mxu0
          %v1841 = vadd.f32 %v1717, %v1840
          %v1842 = vpop.f32.mrb[0].mxu0
          %v1843 = vpop.f32.mrb[0].mxu0
          %v1844 = vadd.f32 %v1717, %v1843
          %v1845 = vpop.f32.mrb[0].mxu0
          %1846 = vmatprep.mubr.bf16.mxu0 0
          %1847 = vmatmul.mubr.bf16.gmra.mrb[0].mxu0 %v1697
          %v1848 = vpop.f32.mrb[0].mxu0
          %v1849 = vadd.f32 %v1717, %v1848
          %v1850 = vpop.f32.mrb[0].mxu0
          %v1851 = vpop.f32.mrb[0].mxu0
          %v1852 = vadd.f32 %v1717, %v1851
          %v1853 = vpop.f32.mrb[0].mxu0
          %1854 = vmatprep.mubr.bf16.mxu0 0
          %1855 = vmatmul.mubr.bf16.gmra.mrb[0].mxu0 %v1698
          %v1856 = vpop.f32.mrb[0].mxu0
          %v1857 = vadd.f32 %v1717, %v1856
          %v1858 = vpop.f32.mrb[0].mxu0
          %v1859 = vpop.f32.mrb[0].mxu0
          %v1860 = vadd.f32 %v1717, %v1859
          %v1861 = vpop.f32.mrb[0].mxu0
          %1862 = vdwg.mxu0
          %v1863 = vlaneseq
          %v1864 = vshrl.u32 %v1863, 7
          %v1865 = vadd.s32 %v1864, 8
          %v1866 = vadd.s32 %v1864, 16
          %v1867 = vadd.s32 %v1864, 24
          %v1868 = vadd.s32 %v1864, 32
          %v1869 = vadd.s32 %v1864, 40
          %v1870 = vadd.s32 %v1864, 48
          %v1871 = vadd.s32 %v1864, 56
          %v1872 = vadd.s32 %v1864, 64
          %v1873 = vadd.s32 %v1864, 72
          %v1874 = vadd.s32 %v1864, 80
          %v1875 = vadd.s32 %v1864, 88
          %v1876 = vadd.s32 %v1864, 96
          %v1877 = vadd.s32 %v1864, 104
          %v1878 = vadd.s32 %v1864, 112
          %v1879 = vadd.s32 %v1864, 120
          %v1880 = vld [vmem:[%s750] sm:$0x1]
          %v1881 = vlaneseq
          %v1882 = vshrl.u32 %v1881, 7
          %v1883 = vsub.s32 0, %v1882
          %v1884 = vrot.slane %v1880, %v1883
          %vm1885 = vcmp.eq.s32.totalorder %v1864, %v1884
          %vm1886 = vcmp.eq.s32.totalorder %v1865, %v1884
          %vm1887 = vcmp.eq.s32.totalorder %v1866, %v1884
          %vm1888 = vcmp.eq.s32.totalorder %v1867, %v1884
          %vm1889 = vcmp.eq.s32.totalorder %v1868, %v1884
          %vm1890 = vcmp.eq.s32.totalorder %v1869, %v1884
          %vm1891 = vcmp.eq.s32.totalorder %v1870, %v1884
          %vm1892 = vcmp.eq.s32.totalorder %v1871, %v1884
          %vm1893 = vcmp.eq.s32.totalorder %v1872, %v1884
          %vm1894 = vcmp.eq.s32.totalorder %v1873, %v1884
          %vm1895 = vcmp.eq.s32.totalorder %v1874, %v1884
          %vm1896 = vcmp.eq.s32.totalorder %v1875, %v1884
          %vm1897 = vcmp.eq.s32.totalorder %v1876, %v1884
          %vm1898 = vcmp.eq.s32.totalorder %v1877, %v1884
          %vm1899 = vcmp.eq.s32.totalorder %v1878, %v1884
          %vm1900 = vcmp.eq.s32.totalorder %v1879, %v1884
          %v1901 = vsel %vm1885, 1, 0
          %v1902 = vsel %vm1886, 1, 0
          %v1903 = vsel %vm1887, 1, 0
          %v1904 = vsel %vm1888, 1, 0
          %v1905 = vsel %vm1889, 1, 0
          %v1906 = vsel %vm1890, 1, 0
          %v1907 = vsel %vm1891, 1, 0
          %v1908 = vsel %vm1892, 1, 0
          %v1909 = vsel %vm1893, 1, 0
          %v1910 = vsel %vm1894, 1, 0
          %v1911 = vsel %vm1895, 1, 0
          %v1912 = vsel %vm1896, 1, 0
          %v1913 = vsel %vm1897, 1, 0
          %v1914 = vsel %vm1898, 1, 0
          %v1915 = vsel %vm1899, 1, 0
          %v1916 = vsel %vm1900, 1, 0
          %v1917 = vcvt.s32.f32 %v1901
          %v1918 = vcvt.s32.f32 %v1902
          %v1919 = vcvt.s32.f32 %v1903
          %v1920 = vcvt.s32.f32 %v1904
          %v1921 = vcvt.s32.f32 %v1905
          %v1922 = vcvt.s32.f32 %v1906
          %v1923 = vcvt.s32.f32 %v1907
          %v1924 = vcvt.s32.f32 %v1908
          %v1925 = vcvt.s32.f32 %v1909
          %v1926 = vcvt.s32.f32 %v1910
          %v1927 = vcvt.s32.f32 %v1911
          %v1928 = vcvt.s32.f32 %v1912
          %v1929 = vcvt.s32.f32 %v1913
          %v1930 = vcvt.s32.f32 %v1914
          %v1931 = vcvt.s32.f32 %v1915
          %v1932 = vcvt.s32.f32 %v1916
          %v1933 = vpack.c.bf16 %v1918, %v1917
          %v1934 = vpack.c.bf16 %v1920, %v1919
          %v1935 = vpack.c.bf16 %v1922, %v1921
          %v1936 = vpack.c.bf16 %v1924, %v1923
          %v1937 = vpack.c.bf16 %v1926, %v1925
          %v1938 = vpack.c.bf16 %v1928, %v1927
          %v1939 = vpack.c.bf16 %v1930, %v1929
          %v1940 = vpack.c.bf16 %v1932, %v1931
          %v1941 = vld [vmem:[#allocation2] sm:$0xff]
          %v1942 = vld [vmem:[#allocation2 + $0x8] sm:$0xff]
          %v1943 = vld [vmem:[#allocation2 + $0x10] sm:$0xff]
          %v1944 = vld [vmem:[#allocation2 + $0x18] sm:$0xff]
          %v1945 = vld [vmem:[#allocation2 + $0x20] sm:$0xff]
          %v1946 = vld [vmem:[#allocation2 + $0x28] sm:$0xff]
          %v1947 = vld [vmem:[#allocation2 + $0x30] sm:$0xff]
          %v1948 = vld [vmem:[#allocation2 + $0x38] sm:$0xff]
          %v1949 = vld [vmem:[#allocation2 + $0x40] sm:$0xff]
          %v1950 = vld [vmem:[#allocation2 + $0x48] sm:$0xff]
          %v1951 = vld [vmem:[#allocation2 + $0x50] sm:$0xff]
          %v1952 = vld [vmem:[#allocation2 + $0x58] sm:$0xff]
          %v1953 = vld [vmem:[#allocation2 + $0x60] sm:$0xff]
          %v1954 = vld [vmem:[#allocation2 + $0x68] sm:$0xff]
          %v1955 = vld [vmem:[#allocation2 + $0x70] sm:$0xff]
          %v1956 = vld [vmem:[#allocation2 + $0x78] sm:$0xff]
          %v1957 = vpack.c.bf16 %v1804, %v1801
          %v1958 = vpack.c.bf16 %v1812, %v1809
          %v1959 = vpack.c.bf16 %v1820, %v1817
          %v1960 = vpack.c.bf16 %v1828, %v1825
          %v1961 = vpack.c.bf16 %v1836, %v1833
          %v1962 = vpack.c.bf16 %v1844, %v1841
          %v1963 = vpack.c.bf16 %v1852, %v1849
          %v1964 = vpack.c.bf16 %v1860, %v1857
          %1965 = vmatprep.subr.bf16.mxu0 0
          %1966 = vmatpush1.bf16.msra.mxu0 %v1957
          %1967 = vmatprep.subr.bf16.mxu0 0
          %1968 = vmatpush1.bf16.msra.mxu0 %v1958
          %1969 = vmatprep.subr.bf16.mxu0 0
          %1970 = vmatpush1.bf16.msra.mxu0 %v1959
          %1971 = vmatprep.subr.bf16.mxu0 0
          %1972 = vmatpush1.bf16.msra.mxu0 %v1960
          %1973 = vmatprep.subr.bf16.mxu0 0
          %1974 = vmatpush1.bf16.msra.mxu0 %v1961
          %1975 = vmatprep.subr.bf16.mxu0 0
          %1976 = vmatpush1.bf16.msra.mxu0 %v1962
          %1977 = vmatprep.subr.bf16.mxu0 0
          %1978 = vmatpush1.bf16.msra.mxu0 %v1963
          %1979 = vmatprep.subr.bf16.mxu0 0
          %1980 = vmatpush1.bf16.msra.mxu0 %v1964
          %1981 = vmatprep.subr.bf16.mxu0 0
          %1982 = vmatpush1.bf16.msra.mxu0 0
          %1983 = vmatprep.subr.bf16.mxu0 0
          %1984 = vmatpush1.bf16.msra.mxu0 0
          %1985 = vmatprep.subr.bf16.mxu0 0
          %1986 = vmatpush1.bf16.msra.mxu0 0
          %1987 = vmatprep.subr.bf16.mxu0 0
          %1988 = vmatpush1.bf16.msra.mxu0 0
          %1989 = vmatprep.subr.bf16.mxu0 0
          %1990 = vmatpush1.bf16.msra.mxu0 0
          %1991 = vmatprep.subr.bf16.mxu0 0
          %1992 = vmatpush1.bf16.msra.mxu0 0
          %1993 = vmatprep.subr.bf16.mxu0 0
          %1994 = vmatpush1.bf16.msra.mxu0 0
          %1995 = vmatprep.subr.bf16.mxu0 0
          %1996 = vmatpush1.bf16.msra.mxu0 0
          %1997 = vmatprep.mubr.bf16.mxu0 0
          %1998 = vmatmul.mubr.bf16.gmra.mrb[0].mxu0 %v1933
          %v1999 = vpop.f32.mrb[0].mxu0
          %v2000 = vadd.f32 0.0, %v1999
          %v2001 = vpop.f32.mrb[0].mxu0
          %v2002 = vpop.f32.mrb[0].mxu0
          %v2003 = vadd.f32 0.0, %v2002
          %v2004 = vpop.f32.mrb[0].mxu0
          %2005 = vmatprep.mubr.bf16.mxu0 0
          %2006 = vmatmul.mubr.bf16.gmra.mrb[0].mxu0 %v1934
          %v2007 = vpop.f32.mrb[0].mxu0
          %v2008 = vadd.f32 0.0, %v2007
          %v2009 = vpop.f32.mrb[0].mxu0
          %v2010 = vpop.f32.mrb[0].mxu0
          %v2011 = vadd.f32 0.0, %v2010
          %v2012 = vpop.f32.mrb[0].mxu0
          %2013 = vmatprep.mubr.bf16.mxu0 0
          %2014 = vmatmul.mubr.bf16.gmra.mrb[0].mxu0 %v1935
          %v2015 = vpop.f32.mrb[0].mxu0
          %v2016 = vadd.f32 0.0, %v2015
          %v2017 = vpop.f32.mrb[0].mxu0
          %v2018 = vpop.f32.mrb[0].mxu0
          %v2019 = vadd.f32 0.0, %v2018
          %v2020 = vpop.f32.mrb[0].mxu0
          %2021 = vmatprep.mubr.bf16.mxu0 0
          %2022 = vmatmul.mubr.bf16.gmra.mrb[0].mxu0 %v1936
          %v2023 = vpop.f32.mrb[0].mxu0
          %v2024 = vadd.f32 0.0, %v2023
          %v2025 = vpop.f32.mrb[0].mxu0
          %v2026 = vpop.f32.mrb[0].mxu0
          %v2027 = vadd.f32 0.0, %v2026
          %v2028 = vpop.f32.mrb[0].mxu0
          %2029 = vmatprep.mubr.bf16.mxu0 0
          %2030 = vmatmul.mubr.bf16.gmra.mrb[0].mxu0 %v1937
          %v2031 = vpop.f32.mrb[0].mxu0
          %v2032 = vadd.f32 0.0, %v2031
          %v2033 = vpop.f32.mrb[0].mxu0
          %v2034 = vpop.f32.mrb[0].mxu0
          %v2035 = vadd.f32 0.0, %v2034
          %v2036 = vpop.f32.mrb[0].mxu0
          %2037 = vmatprep.mubr.bf16.mxu0 0
          %2038 = vmatmul.mubr.bf16.gmra.mrb[0].mxu0 %v1938
          %v2039 = vpop.f32.mrb[0].mxu0
          %v2040 = vadd.f32 0.0, %v2039
          %v2041 = vpop.f32.mrb[0].mxu0
          %v2042 = vpop.f32.mrb[0].mxu0
          %v2043 = vadd.f32 0.0, %v2042
          %v2044 = vpop.f32.mrb[0].mxu0
          %2045 = vmatprep.mubr.bf16.mxu0 0
          %2046 = vmatmul.mubr.bf16.gmra.mrb[0].mxu0 %v1939
          %v2047 = vpop.f32.mrb[0].mxu0
          %v2048 = vadd.f32 0.0, %v2047
          %v2049 = vpop.f32.mrb[0].mxu0
          %v2050 = vpop.f32.mrb[0].mxu0
          %v2051 = vadd.f32 0.0, %v2050
          %v2052 = vpop.f32.mrb[0].mxu0
          %2053 = vmatprep.mubr.bf16.mxu0 0
          %2054 = vmatmul.mubr.bf16.gmra.mrb[0].mxu0 %v1940
          %v2055 = vpop.f32.mrb[0].mxu0
          %v2056 = vadd.f32 0.0, %v2055
          %v2057 = vpop.f32.mrb[0].mxu0
          %v2058 = vpop.f32.mrb[0].mxu0
          %v2059 = vadd.f32 0.0, %v2058
          %v2060 = vpop.f32.mrb[0].mxu0
          %2061 = vdwg.mxu0
          %v2062 = vadd.f32 %v1941, %v2000
          %v2063 = vadd.f32 %v1942, %v2003
          %v2064 = vadd.f32 %v1943, %v2008
          %v2065 = vadd.f32 %v1944, %v2011
          %v2066 = vadd.f32 %v1945, %v2016
          %v2067 = vadd.f32 %v1946, %v2019
          %v2068 = vadd.f32 %v1947, %v2024
          %v2069 = vadd.f32 %v1948, %v2027
          %v2070 = vadd.f32 %v1949, %v2032
          %v2071 = vadd.f32 %v1950, %v2035
          %v2072 = vadd.f32 %v1951, %v2040
          %v2073 = vadd.f32 %v1952, %v2043
          %v2074 = vadd.f32 %v1953, %v2048
          %v2075 = vadd.f32 %v1954, %v2051
          %v2076 = vadd.f32 %v1955, %v2056
          %v2077 = vadd.f32 %v1956, %v2059
          %2078 = vst [vmem:[#allocation2] sm:$0xff] %v2062
          %2079 = vst [vmem:[#allocation2 + $0x8] sm:$0xff] %v2063
          %2080 = vst [vmem:[#allocation2 + $0x10] sm:$0xff] %v2064
          %2081 = vst [vmem:[#allocation2 + $0x18] sm:$0xff] %v2065
          %2082 = vst [vmem:[#allocation2 + $0x20] sm:$0xff] %v2066
          %2083 = vst [vmem:[#allocation2 + $0x28] sm:$0xff] %v2067
          %2084 = vst [vmem:[#allocation2 + $0x30] sm:$0xff] %v2068
          %2085 = vst [vmem:[#allocation2 + $0x38] sm:$0xff] %v2069
          %2086 = vst [vmem:[#allocation2 + $0x40] sm:$0xff] %v2070
          %2087 = vst [vmem:[#allocation2 + $0x48] sm:$0xff] %v2071
          %2088 = vst [vmem:[#allocation2 + $0x50] sm:$0xff] %v2072
          %2089 = vst [vmem:[#allocation2 + $0x58] sm:$0xff] %v2073
          %2090 = vst [vmem:[#allocation2 + $0x60] sm:$0xff] %v2074
          %2091 = vst [vmem:[#allocation2 + $0x68] sm:$0xff] %v2075
          %2092 = vst [vmem:[#allocation2 + $0x70] sm:$0xff] %v2076
          %2093 = vst [vmem:[#allocation2 + $0x78] sm:$0xff] %v2077
          // Predicated region
          $region125: #{tpu_custom_call.1} parent=123 // pred_check
            %p2094 = pneg %p775
          $region126: #{tpu_custom_call.1} parent=123 // pred_check_branch
            %2096 = sbr.rel (%p2094) target = $region128
          $region127: #{tpu_custom_call.1} parent=123 // pred_region
            %v2097 = vld [vmem:[#allocation2] sm:$0xff]
            %v2098 = vld [vmem:[#allocation2 + $0x8] sm:$0xff]
            %v2099 = vld [vmem:[#allocation2 + $0x10] sm:$0xff]
            %v2100 = vld [vmem:[#allocation2 + $0x18] sm:$0xff]
            %v2101 = vld [vmem:[#allocation2 + $0x20] sm:$0xff]
            %v2102 = vld [vmem:[#allocation2 + $0x28] sm:$0xff]
            %v2103 = vld [vmem:[#allocation2 + $0x30] sm:$0xff]
            %v2104 = vld [vmem:[#allocation2 + $0x38] sm:$0xff]
            %v2105 = vld [vmem:[#allocation2 + $0x40] sm:$0xff]
            %v2106 = vld [vmem:[#allocation2 + $0x48] sm:$0xff]
            %v2107 = vld [vmem:[#allocation2 + $0x50] sm:$0xff]
            %v2108 = vld [vmem:[#allocation2 + $0x58] sm:$0xff]
            %v2109 = vld [vmem:[#allocation2 + $0x60] sm:$0xff]
            %v2110 = vld [vmem:[#allocation2 + $0x68] sm:$0xff]
            %v2111 = vld [vmem:[#allocation2 + $0x70] sm:$0xff]
            %v2112 = vld [vmem:[#allocation2 + $0x78] sm:$0xff]
            %v2113 = vmax.f32 %v2097, 1.0
            %v2114 = vmax.f32 %v2098, 1.0
            %v2115 = vmax.f32 %v2099, 1.0
            %v2116 = vmax.f32 %v2100, 1.0
            %v2117 = vmax.f32 %v2101, 1.0
            %v2118 = vmax.f32 %v2102, 1.0
            %v2119 = vmax.f32 %v2103, 1.0
            %v2120 = vmax.f32 %v2104, 1.0
            %v2121 = vmax.f32 %v2105, 1.0
            %v2122 = vmax.f32 %v2106, 1.0
            %v2123 = vmax.f32 %v2107, 1.0
            %v2124 = vmax.f32 %v2108, 1.0
            %v2125 = vmax.f32 %v2109, 1.0
            %v2126 = vmax.f32 %v2110, 1.0
            %v2127 = vmax.f32 %v2111, 1.0
            %v2128 = vmax.f32 %v2112, 1.0
            %vm2129 = vcmp.lt.s32.totalorder %v1224, 8
            %v2130 = vsel %vm2129, 1, 0
            %v2131 = vcvt.s32.f32 %v2130
            %v2132 = vmul.f32 %v2097, %v2131
            %v2133 = vmul.f32 %v2098, %v2131
            %v2134 = vmul.f32 %v2099, %v2131
            %v2135 = vmul.f32 %v2100, %v2131
            %v2136 = vmul.f32 %v2101, %v2131
            %v2137 = vmul.f32 %v2102, %v2131
            %v2138 = vmul.f32 %v2103, %v2131
            %v2139 = vmul.f32 %v2104, %v2131
            %v2140 = vmul.f32 %v2105, %v2131
            %v2141 = vmul.f32 %v2106, %v2131
            %v2142 = vmul.f32 %v2107, %v2131
            %v2143 = vmul.f32 %v2108, %v2131
            %v2144 = vmul.f32 %v2109, %v2131
            %v2145 = vmul.f32 %v2110, %v2131
            %v2146 = vmul.f32 %v2111, %v2131
            %v2147 = vmul.f32 %v2112, %v2131
            %v2148 = vrcp.pop %v2113
            %v2149 = vrcp.pop %v2114
            %v2150 = vrcp.pop %v2115
            %v2151 = vrcp.pop %v2116
            %v2152 = vrcp.pop %v2117
            %v2153 = vrcp.pop %v2118
            %v2154 = vrcp.pop %v2119
            %v2155 = vrcp.pop %v2120
            %v2156 = vrcp.pop %v2121
            %v2157 = vrcp.pop %v2122
            %v2158 = vrcp.pop %v2123
            %v2159 = vrcp.pop %v2124
            %v2160 = vrcp.pop %v2125
            %v2161 = vrcp.pop %v2126
            %v2162 = vrcp.pop %v2127
            %v2163 = vrcp.pop %v2128
            %2165 = vset.pattern.permute.xlu0 8
            %2166 = vperm.xlu0 %2165, %v2148
            %v2167 = vpop.permute.xlu0 %2166
            %2170 = vset.pattern.permute.xlu0 8
            %2171 = vperm.xlu0 %2170, %v2149
            %v2172 = vpop.permute.xlu0 %2171
            %2175 = vset.pattern.permute.xlu0 8
            %2176 = vperm.xlu0 %2175, %v2150
            %v2177 = vpop.permute.xlu0 %2176
            %2180 = vset.pattern.permute.xlu0 8
            %2181 = vperm.xlu0 %2180, %v2151
            %v2182 = vpop.permute.xlu0 %2181
            %2185 = vset.pattern.permute.xlu0 8
            %2186 = vperm.xlu0 %2185, %v2152
            %v2187 = vpop.permute.xlu0 %2186
            %2190 = vset.pattern.permute.xlu0 8
            %2191 = vperm.xlu0 %2190, %v2153
            %v2192 = vpop.permute.xlu0 %2191
            %2195 = vset.pattern.permute.xlu0 8
            %2196 = vperm.xlu0 %2195, %v2154
            %v2197 = vpop.permute.xlu0 %2196
            %2200 = vset.pattern.permute.xlu0 8
            %2201 = vperm.xlu0 %2200, %v2155
            %v2202 = vpop.permute.xlu0 %2201
            %2205 = vset.pattern.permute.xlu0 8
            %2206 = vperm.xlu0 %2205, %v2156
            %v2207 = vpop.permute.xlu0 %2206
            %2210 = vset.pattern.permute.xlu0 8
            %2211 = vperm.xlu0 %2210, %v2157
            %v2212 = vpop.permute.xlu0 %2211
            %2215 = vset.pattern.permute.xlu0 8
            %2216 = vperm.xlu0 %2215, %v2158
            %v2217 = vpop.permute.xlu0 %2216
            %2220 = vset.pattern.permute.xlu0 8
            %2221 = vperm.xlu0 %2220, %v2159
            %v2222 = vpop.permute.xlu0 %2221
            %2225 = vset.pattern.permute.xlu0 8
            %2226 = vperm.xlu0 %2225, %v2160
            %v2227 = vpop.permute.xlu0 %2226
            %2230 = vset.pattern.permute.xlu0 8
            %2231 = vperm.xlu0 %2230, %v2161
            %v2232 = vpop.permute.xlu0 %2231
            %2235 = vset.pattern.permute.xlu0 8
            %2236 = vperm.xlu0 %2235, %v2162
            %v2237 = vpop.permute.xlu0 %2236
            %2240 = vset.pattern.permute.xlu0 8
            %2241 = vperm.xlu0 %2240, %v2163
            %v2242 = vpop.permute.xlu0 %2241
            %v2244 = vmul.f32 %v2132, %v2167
            %v2245 = vmul.f32 %v2133, %v2172
            %v2246 = vmul.f32 %v2134, %v2177
            %v2247 = vmul.f32 %v2135, %v2182
            %v2248 = vmul.f32 %v2136, %v2187
            %v2249 = vmul.f32 %v2137, %v2192
            %v2250 = vmul.f32 %v2138, %v2197
            %v2251 = vmul.f32 %v2139, %v2202
            %v2252 = vmul.f32 %v2140, %v2207
            %v2253 = vmul.f32 %v2141, %v2212
            %v2254 = vmul.f32 %v2142, %v2217
            %v2255 = vmul.f32 %v2143, %v2222
            %v2256 = vmul.f32 %v2144, %v2227
            %v2257 = vmul.f32 %v2145, %v2232
            %v2258 = vmul.f32 %v2146, %v2237
            %v2259 = vmul.f32 %v2147, %v2242
            %v2260 = vld [vmem:[%s4] sm:$0xf]
            %v2261 = vld [vmem:[%s4 + $0x4] sm:$0xf]
            %v2262 = vld [vmem:[%s4 + $0x8] sm:$0xf]
            %v2263 = vld [vmem:[%s4 + $0xc] sm:$0xf]
            %v2264 = vld [vmem:[%s4 + $0x10] sm:$0xf]
            %v2265 = vld [vmem:[%s4 + $0x14] sm:$0xf]
            %v2266 = vld [vmem:[%s4 + $0x18] sm:$0xf]
            %v2267 = vld [vmem:[%s4 + $0x1c] sm:$0xf]
            %v2268 = vld [vmem:[%s4 + $0x20] sm:$0xf]
            %v2269 = vld [vmem:[%s4 + $0x24] sm:$0xf]
            %v2270 = vld [vmem:[%s4 + $0x28] sm:$0xf]
            %v2271 = vld [vmem:[%s4 + $0x2c] sm:$0xf]
            %v2272 = vld [vmem:[%s4 + $0x30] sm:$0xf]
            %v2273 = vld [vmem:[%s4 + $0x34] sm:$0xf]
            %v2274 = vld [vmem:[%s4 + $0x38] sm:$0xf]
            %v2275 = vld [vmem:[%s4 + $0x3c] sm:$0xf]
            %v2276 = vld [vmem:[#allocation8] sm:$0xf]
            %v2277 = vld [vmem:[#allocation8 + $0x4] sm:$0xf]
            %v2278 = vld [vmem:[#allocation8 + $0x8] sm:$0xf]
            %v2279 = vld [vmem:[#allocation8 + $0xc] sm:$0xf]
            %v2280 = vld [vmem:[#allocation8 + $0x10] sm:$0xf]
            %v2281 = vld [vmem:[#allocation8 + $0x14] sm:$0xf]
            %v2282 = vld [vmem:[#allocation8 + $0x18] sm:$0xf]
            %v2283 = vld [vmem:[#allocation8 + $0x1c] sm:$0xf]
            %v2284 = vld [vmem:[#allocation8 + $0x20] sm:$0xf]
            %v2285 = vld [vmem:[#allocation8 + $0x24] sm:$0xf]
            %v2286 = vld [vmem:[#allocation8 + $0x28] sm:$0xf]
            %v2287 = vld [vmem:[#allocation8 + $0x2c] sm:$0xf]
            %v2288 = vld [vmem:[#allocation8 + $0x30] sm:$0xf]
            %v2289 = vld [vmem:[#allocation8 + $0x34] sm:$0xf]
            %v2290 = vld [vmem:[#allocation8 + $0x38] sm:$0xf]
            %v2291 = vld [vmem:[#allocation8 + $0x3c] sm:$0xf]
            %v2308 = vunpack.c.l.b16 %v2260
            %v2309 = vunpack.c.l.b16 %v2261
            %v2310 = vunpack.c.l.b16 %v2262
            %v2311 = vunpack.c.l.b16 %v2263
            %v2312 = vunpack.c.l.b16 %v2264
            %v2313 = vunpack.c.l.b16 %v2265
            %v2314 = vunpack.c.l.b16 %v2266
            %v2315 = vunpack.c.l.b16 %v2267
            %v2316 = vunpack.c.l.b16 %v2268
            %v2317 = vunpack.c.l.b16 %v2269
            %v2318 = vunpack.c.l.b16 %v2270
            %v2319 = vunpack.c.l.b16 %v2271
            %v2320 = vunpack.c.l.b16 %v2272
            %v2321 = vunpack.c.l.b16 %v2273
            %v2322 = vunpack.c.l.b16 %v2274
            %v2323 = vunpack.c.l.b16 %v2275
            %v2324 = vpack.c.b16 %v2309, %v2308
            %v2325 = vpack.c.b16 %v2311, %v2310
            %v2326 = vpack.c.b16 %v2313, %v2312
            %v2327 = vpack.c.b16 %v2315, %v2314
            %v2328 = vpack.c.b16 %v2317, %v2316
            %v2329 = vpack.c.b16 %v2319, %v2318
            %v2330 = vpack.c.b16 %v2321, %v2320
            %v2331 = vpack.c.b16 %v2323, %v2322
            %v2356 = vunpack.c.l.b16 %v2276
            %v2357 = vunpack.c.l.b16 %v2277
            %v2358 = vunpack.c.l.b16 %v2278
            %v2359 = vunpack.c.l.b16 %v2279
            %v2360 = vunpack.c.l.b16 %v2280
            %v2361 = vunpack.c.l.b16 %v2281
            %v2362 = vunpack.c.l.b16 %v2282
            %v2363 = vunpack.c.l.b16 %v2283
            %v2364 = vunpack.c.l.b16 %v2284
            %v2365 = vunpack.c.l.b16 %v2285
            %v2366 = vunpack.c.l.b16 %v2286
            %v2367 = vunpack.c.l.b16 %v2287
            %v2368 = vunpack.c.l.b16 %v2288
            %v2369 = vunpack.c.l.b16 %v2289
            %v2370 = vunpack.c.l.b16 %v2290
            %v2371 = vunpack.c.l.b16 %v2291
            %v2372 = vpack.c.b16 %v2357, %v2356
            %v2373 = vpack.c.b16 %v2359, %v2358
            %v2374 = vpack.c.b16 %v2361, %v2360
            %v2375 = vpack.c.b16 %v2363, %v2362
            %v2376 = vpack.c.b16 %v2365, %v2364
            %v2377 = vpack.c.b16 %v2367, %v2366
            %v2378 = vpack.c.b16 %v2369, %v2368
            %v2379 = vpack.c.b16 %v2371, %v2370
            %2388 = vmatprep.subr.bf16.mxu0 0
            %2389 = vmatpush1.bf16.msra.mxu0 %v2372
            %2390 = vmatprep.subr.bf16.mxu0 0
            %2391 = vmatpush1.bf16.msra.mxu0 %v2373
            %2392 = vmatprep.subr.bf16.mxu0 0
            %2393 = vmatpush1.bf16.msra.mxu0 %v2374
            %2394 = vmatprep.subr.bf16.mxu0 0
            %2395 = vmatpush1.bf16.msra.mxu0 %v2375
            %2396 = vmatprep.subr.bf16.mxu0 0
            %2397 = vmatpush1.bf16.msra.mxu0 %v2376
            %2398 = vmatprep.subr.bf16.mxu0 0
            %2399 = vmatpush1.bf16.msra.mxu0 %v2377
            %2400 = vmatprep.subr.bf16.mxu0 0
            %2401 = vmatpush1.bf16.msra.mxu0 %v2378
            %2402 = vmatprep.subr.bf16.mxu0 0
            %2403 = vmatpush1.bf16.msra.mxu0 %v2379
            %2404 = vmatprep.subr.bf16.mxu0 0
            %2405 = vmatpush1.bf16.msra.mxu0 0
            %2406 = vmatprep.subr.bf16.mxu0 0
            %2407 = vmatpush1.bf16.msra.mxu0 0
            %2408 = vmatprep.subr.bf16.mxu0 0
            %2409 = vmatpush1.bf16.msra.mxu0 0
            %2410 = vmatprep.subr.bf16.mxu0 0
            %2411 = vmatpush1.bf16.msra.mxu0 0
            %2412 = vmatprep.subr.bf16.mxu0 0
            %2413 = vmatpush1.bf16.msra.mxu0 0
            %2414 = vmatprep.subr.bf16.mxu0 0
            %2415 = vmatpush1.bf16.msra.mxu0 0
            %2416 = vmatprep.subr.bf16.mxu0 0
            %2417 = vmatpush1.bf16.msra.mxu0 0
            %2418 = vmatprep.subr.bf16.mxu0 0
            %2419 = vmatpush1.bf16.msra.mxu0 0
            %2420 = vmatprep.mubr.bf16.mxu0 0
            %2421 = vmatmul.mubr.bf16.gmra.mrb[0].mxu0 %v2324
            %v2422 = vpop.f32.mrb[0].mxu0
            %v2423 = vadd.f32 0.0, %v2422
            %v2424 = vpop.f32.mrb[0].mxu0
            %v2425 = vpop.f32.mrb[0].mxu0
            %v2426 = vadd.f32 0.0, %v2425
            %v2427 = vpop.f32.mrb[0].mxu0
            %2428 = vmatprep.mubr.bf16.mxu0 0
            %2429 = vmatmul.mubr.bf16.gmra.mrb[0].mxu0 %v2325
            %v2430 = vpop.f32.mrb[0].mxu0
            %v2431 = vadd.f32 0.0, %v2430
            %v2432 = vpop.f32.mrb[0].mxu0
            %v2433 = vpop.f32.mrb[0].mxu0
            %v2434 = vadd.f32 0.0, %v2433
            %v2435 = vpop.f32.mrb[0].mxu0
            %2436 = vmatprep.mubr.bf16.mxu0 0
            %2437 = vmatmul.mubr.bf16.gmra.mrb[0].mxu0 %v2326
            %v2438 = vpop.f32.mrb[0].mxu0
            %v2439 = vadd.f32 0.0, %v2438
            %v2440 = vpop.f32.mrb[0].mxu0
            %v2441 = vpop.f32.mrb[0].mxu0
            %v2442 = vadd.f32 0.0, %v2441
            %v2443 = vpop.f32.mrb[0].mxu0
            %2444 = vmatprep.mubr.bf16.mxu0 0
            %2445 = vmatmul.mubr.bf16.gmra.mrb[0].mxu0 %v2327
            %v2446 = vpop.f32.mrb[0].mxu0
            %v2447 = vadd.f32 0.0, %v2446
            %v2448 = vpop.f32.mrb[0].mxu0
            %v2449 = vpop.f32.mrb[0].mxu0
            %v2450 = vadd.f32 0.0, %v2449
            %v2451 = vpop.f32.mrb[0].mxu0
            %2452 = vmatprep.mubr.bf16.mxu0 0
            %2453 = vmatmul.mubr.bf16.gmra.mrb[0].mxu0 %v2328
            %v2454 = vpop.f32.mrb[0].mxu0
            %v2455 = vadd.f32 0.0, %v2454
            %v2456 = vpop.f32.mrb[0].mxu0
            %v2457 = vpop.f32.mrb[0].mxu0
            %v2458 = vadd.f32 0.0, %v2457
            %v2459 = vpop.f32.mrb[0].mxu0
            %2460 = vmatprep.mubr.bf16.mxu0 0
            %2461 = vmatmul.mubr.bf16.gmra.mrb[0].mxu0 %v2329
            %v2462 = vpop.f32.mrb[0].mxu0
            %v2463 = vadd.f32 0.0, %v2462
            %v2464 = vpop.f32.mrb[0].mxu0
            %v2465 = vpop.f32.mrb[0].mxu0
            %v2466 = vadd.f32 0.0, %v2465
            %v2467 = vpop.f32.mrb[0].mxu0
            %2468 = vmatprep.mubr.bf16.mxu0 0
            %2469 = vmatmul.mubr.bf16.gmra.mrb[0].mxu0 %v2330
            %v2470 = vpop.f32.mrb[0].mxu0
            %v2471 = vadd.f32 0.0, %v2470
            %v2472 = vpop.f32.mrb[0].mxu0
            %v2473 = vpop.f32.mrb[0].mxu0
            %v2474 = vadd.f32 0.0, %v2473
            %v2475 = vpop.f32.mrb[0].mxu0
            %2476 = vmatprep.mubr.bf16.mxu0 0
            %2477 = vmatmul.mubr.bf16.gmra.mrb[0].mxu0 %v2331
            %v2478 = vpop.f32.mrb[0].mxu0
            %v2479 = vadd.f32 0.0, %v2478
            %v2480 = vpop.f32.mrb[0].mxu0
            %v2481 = vpop.f32.mrb[0].mxu0
            %v2482 = vadd.f32 0.0, %v2481
            %v2483 = vpop.f32.mrb[0].mxu0
            %2484 = vdwg.mxu0
            %v2485 = vadd.f32 %v2244, %v2423
            %v2486 = vadd.f32 %v2245, %v2426
            %v2487 = vadd.f32 %v2246, %v2431
            %v2488 = vadd.f32 %v2247, %v2434
            %v2489 = vadd.f32 %v2248, %v2439
            %v2490 = vadd.f32 %v2249, %v2442
            %v2491 = vadd.f32 %v2250, %v2447
            %v2492 = vadd.f32 %v2251, %v2450
            %v2493 = vadd.f32 %v2252, %v2455
            %v2494 = vadd.f32 %v2253, %v2458
            %v2495 = vadd.f32 %v2254, %v2463
            %v2496 = vadd.f32 %v2255, %v2466
            %v2497 = vadd.f32 %v2256, %v2471
            %v2498 = vadd.f32 %v2257, %v2474
            %v2499 = vadd.f32 %v2258, %v2479
            %v2500 = vadd.f32 %v2259, %v2482
            %v2501 = vld [vmem:[%s11] sm:$0x1]
            %v2503 = vlaneseq
            %v2504 = vshrl.u32 %v2503, 7
            %v2505 = vsub.s32 0, %v2504
            %v2506 = vrot.slane %v2501, %v2505
            %v2508 = vadd.f32 %v2485, %v2506
            %v2509 = vadd.f32 %v2486, %v2506
            %v2510 = vadd.f32 %v2487, %v2506
            %v2511 = vadd.f32 %v2488, %v2506
            %v2512 = vadd.f32 %v2489, %v2506
            %v2513 = vadd.f32 %v2490, %v2506
            %v2514 = vadd.f32 %v2491, %v2506
            %v2515 = vadd.f32 %v2492, %v2506
            %v2516 = vadd.f32 %v2493, %v2506
            %v2517 = vadd.f32 %v2494, %v2506
            %v2518 = vadd.f32 %v2495, %v2506
            %v2519 = vadd.f32 %v2496, %v2506
            %v2520 = vadd.f32 %v2497, %v2506
            %v2521 = vadd.f32 %v2498, %v2506
            %v2522 = vadd.f32 %v2499, %v2506
            %v2523 = vadd.f32 %v2500, %v2506
            %v2524 = vpack.c.bf16 %v2509, %v2508
            %v2525 = vpack.c.bf16 %v2511, %v2510
            %v2526 = vpack.c.bf16 %v2513, %v2512
            %v2527 = vpack.c.bf16 %v2515, %v2514
            %v2528 = vpack.c.bf16 %v2517, %v2516
            %v2529 = vpack.c.bf16 %v2519, %v2518
            %v2530 = vpack.c.bf16 %v2521, %v2520
            %v2531 = vpack.c.bf16 %v2523, %v2522
            %v2532 = vld [vmem:[#allocation11] sm:$0xf]
            %v2533 = vld [vmem:[#allocation11 + $0x4] sm:$0xf]
            %v2534 = vld [vmem:[#allocation11 + $0x8] sm:$0xf]
            %v2535 = vld [vmem:[#allocation11 + $0xc] sm:$0xf]
            %v2536 = vld [vmem:[#allocation11 + $0x10] sm:$0xf]
            %v2537 = vld [vmem:[#allocation11 + $0x14] sm:$0xf]
            %v2538 = vld [vmem:[#allocation11 + $0x18] sm:$0xf]
            %v2539 = vld [vmem:[#allocation11 + $0x1c] sm:$0xf]
            %v2540 = vld [vmem:[#allocation11 + $0x20] sm:$0xf]
            %v2541 = vld [vmem:[#allocation11 + $0x24] sm:$0xf]
            %v2542 = vld [vmem:[#allocation11 + $0x28] sm:$0xf]
            %v2543 = vld [vmem:[#allocation11 + $0x2c] sm:$0xf]
            %v2544 = vld [vmem:[#allocation11 + $0x30] sm:$0xf]
            %v2545 = vld [vmem:[#allocation11 + $0x34] sm:$0xf]
            %v2546 = vld [vmem:[#allocation11 + $0x38] sm:$0xf]
            %v2547 = vld [vmem:[#allocation11 + $0x3c] sm:$0xf]
            %v2564 = vunpack.c.l.b16 %v2532
            %v2565 = vunpack.c.l.b16 %v2533
            %v2566 = vunpack.c.l.b16 %v2534
            %v2567 = vunpack.c.l.b16 %v2535
            %v2568 = vunpack.c.l.b16 %v2536
            %v2569 = vunpack.c.l.b16 %v2537
            %v2570 = vunpack.c.l.b16 %v2538
            %v2571 = vunpack.c.l.b16 %v2539
            %v2572 = vunpack.c.l.b16 %v2540
            %v2573 = vunpack.c.l.b16 %v2541
            %v2574 = vunpack.c.l.b16 %v2542
            %v2575 = vunpack.c.l.b16 %v2543
            %v2576 = vunpack.c.l.b16 %v2544
            %v2577 = vunpack.c.l.b16 %v2545
            %v2578 = vunpack.c.l.b16 %v2546
            %v2579 = vunpack.c.l.b16 %v2547
            %v2580 = vpack.c.b16 %v2565, %v2564
            %v2581 = vpack.c.b16 %v2567, %v2566
            %v2582 = vpack.c.b16 %v2569, %v2568
            %v2583 = vpack.c.b16 %v2571, %v2570
            %v2584 = vpack.c.b16 %v2573, %v2572
            %v2585 = vpack.c.b16 %v2575, %v2574
            %v2586 = vpack.c.b16 %v2577, %v2576
            %v2587 = vpack.c.b16 %v2579, %v2578
            %2596 = vmatprep.subr.bf16.mxu0 0
            %2597 = vmatpush1.bf16.msra.mxu0 %v2580
            %2598 = vmatprep.subr.bf16.mxu0 0
            %2599 = vmatpush1.bf16.msra.mxu0 %v2581
            %2600 = vmatprep.subr.bf16.mxu0 0
            %2601 = vmatpush1.bf16.msra.mxu0 %v2582
            %2602 = vmatprep.subr.bf16.mxu0 0
            %2603 = vmatpush1.bf16.msra.mxu0 %v2583
            %2604 = vmatprep.subr.bf16.mxu0 0
            %2605 = vmatpush1.bf16.msra.mxu0 %v2584
            %2606 = vmatprep.subr.bf16.mxu0 0
            %2607 = vmatpush1.bf16.msra.mxu0 %v2585
            %2608 = vmatprep.subr.bf16.mxu0 0
            %2609 = vmatpush1.bf16.msra.mxu0 %v2586
            %2610 = vmatprep.subr.bf16.mxu0 0
            %2611 = vmatpush1.bf16.msra.mxu0 %v2587
            %2612 = vmatprep.subr.bf16.mxu0 0
            %2613 = vmatpush1.bf16.msra.mxu0 0
            %2614 = vmatprep.subr.bf16.mxu0 0
            %2615 = vmatpush1.bf16.msra.mxu0 0
            %2616 = vmatprep.subr.bf16.mxu0 0
            %2617 = vmatpush1.bf16.msra.mxu0 0
            %2618 = vmatprep.subr.bf16.mxu0 0
            %2619 = vmatpush1.bf16.msra.mxu0 0
            %2620 = vmatprep.subr.bf16.mxu0 0
            %2621 = vmatpush1.bf16.msra.mxu0 0
            %2622 = vmatprep.subr.bf16.mxu0 0
            %2623 = vmatpush1.bf16.msra.mxu0 0
            %2624 = vmatprep.subr.bf16.mxu0 0
            %2625 = vmatpush1.bf16.msra.mxu0 0
            %2626 = vmatprep.subr.bf16.mxu0 0
            %2627 = vmatpush1.bf16.msra.mxu0 0
            %2628 = vmatprep.mubr.bf16.mxu0 0
            %2629 = vmatmul.mubr.bf16.gmra.mrb[0].mxu0 %v2524
            %v2630 = vpop.f32.mrb[0].mxu0
            %v2631 = vadd.f32 0.0, %v2630
            %v2632 = vpop.f32.mrb[0].mxu0
            %v2633 = vpop.f32.mrb[0].mxu0
            %v2634 = vadd.f32 0.0, %v2633
            %v2635 = vpop.f32.mrb[0].mxu0
            %2636 = vmatprep.mubr.bf16.mxu0 0
            %2637 = vmatmul.mubr.bf16.gmra.mrb[0].mxu0 %v2525
            %v2638 = vpop.f32.mrb[0].mxu0
            %v2639 = vadd.f32 0.0, %v2638
            %v2640 = vpop.f32.mrb[0].mxu0
            %v2641 = vpop.f32.mrb[0].mxu0
            %v2642 = vadd.f32 0.0, %v2641
            %v2643 = vpop.f32.mrb[0].mxu0
            %2644 = vmatprep.mubr.bf16.mxu0 0
            %2645 = vmatmul.mubr.bf16.gmra.mrb[0].mxu0 %v2526
            %v2646 = vpop.f32.mrb[0].mxu0
            %v2647 = vadd.f32 0.0, %v2646
            %v2648 = vpop.f32.mrb[0].mxu0
            %v2649 = vpop.f32.mrb[0].mxu0
            %v2650 = vadd.f32 0.0, %v2649
            %v2651 = vpop.f32.mrb[0].mxu0
            %2652 = vmatprep.mubr.bf16.mxu0 0
            %2653 = vmatmul.mubr.bf16.gmra.mrb[0].mxu0 %v2527
            %v2654 = vpop.f32.mrb[0].mxu0
            %v2655 = vadd.f32 0.0, %v2654
            %v2656 = vpop.f32.mrb[0].mxu0
            %v2657 = vpop.f32.mrb[0].mxu0
            %v2658 = vadd.f32 0.0, %v2657
            %v2659 = vpop.f32.mrb[0].mxu0
            %2660 = vmatprep.mubr.bf16.mxu0 0
            %2661 = vmatmul.mubr.bf16.gmra.mrb[0].mxu0 %v2528
            %v2662 = vpop.f32.mrb[0].mxu0
            %v2663 = vadd.f32 0.0, %v2662
            %v2664 = vpop.f32.mrb[0].mxu0
            %v2665 = vpop.f32.mrb[0].mxu0
            %v2666 = vadd.f32 0.0, %v2665
            %v2667 = vpop.f32.mrb[0].mxu0
            %2668 = vmatprep.mubr.bf16.mxu0 0
            %2669 = vmatmul.mubr.bf16.gmra.mrb[0].mxu0 %v2529
            %v2670 = vpop.f32.mrb[0].mxu0
            %v2671 = vadd.f32 0.0, %v2670
            %v2672 = vpop.f32.mrb[0].mxu0
            %v2673 = vpop.f32.mrb[0].mxu0
            %v2674 = vadd.f32 0.0, %v2673
            %v2675 = vpop.f32.mrb[0].mxu0
            %2676 = vmatprep.mubr.bf16.mxu0 0
            %2677 = vmatmul.mubr.bf16.gmra.mrb[0].mxu0 %v2530
            %v2678 = vpop.f32.mrb[0].mxu0
            %v2679 = vadd.f32 0.0, %v2678
            %v2680 = vpop.f32.mrb[0].mxu0
            %v2681 = vpop.f32.mrb[0].mxu0
            %v2682 = vadd.f32 0.0, %v2681
            %v2683 = vpop.f32.mrb[0].mxu0
            %2684 = vmatprep.mubr.bf16.mxu0 0
            %2685 = vmatmul.mubr.bf16.gmra.mrb[0].mxu0 %v2531
            %v2686 = vpop.f32.mrb[0].mxu0
            %v2687 = vadd.f32 0.0, %v2686
            %v2688 = vpop.f32.mrb[0].mxu0
            %v2689 = vpop.f32.mrb[0].mxu0
            %v2690 = vadd.f32 0.0, %v2689
            %v2691 = vpop.f32.mrb[0].mxu0
            %2692 = vdwg.mxu0
            %v2693 = vpack.c.bf16 %v2634, %v2631
            %v2694 = vpack.c.bf16 %v2642, %v2639
            %v2695 = vpack.c.bf16 %v2650, %v2647
            %v2696 = vpack.c.bf16 %v2658, %v2655
            %v2697 = vpack.c.bf16 %v2666, %v2663
            %v2698 = vpack.c.bf16 %v2674, %v2671
            %v2699 = vpack.c.bf16 %v2682, %v2679
            %v2700 = vpack.c.bf16 %v2690, %v2687
            %2701 = vst [vmem:[#allocation3] sm:$0xff] %v2693
            %2702 = vst [vmem:[#allocation3 + $0x8] sm:$0xff] %v2694
            %2703 = vst [vmem:[#allocation3 + $0x10] sm:$0xff] %v2695
            %2704 = vst [vmem:[#allocation3 + $0x18] sm:$0xff] %v2696
            %2705 = vst [vmem:[#allocation3 + $0x20] sm:$0xff] %v2697
            %2706 = vst [vmem:[#allocation3 + $0x28] sm:$0xff] %v2698
            %2707 = vst [vmem:[#allocation3 + $0x30] sm:$0xff] %v2699
            %2708 = vst [vmem:[#allocation3 + $0x38] sm:$0xff] %v2700
            %v2709 = vld [vmem:[#allocation13] sm:$0xf]
            %v2710 = vld [vmem:[#allocation13 + $0x4] sm:$0xf]
            %v2711 = vld [vmem:[#allocation13 + $0x8] sm:$0xf]
            %v2712 = vld [vmem:[#allocation13 + $0xc] sm:$0xf]
            %v2713 = vld [vmem:[#allocation13 + $0x10] sm:$0xf]
            %v2714 = vld [vmem:[#allocation13 + $0x14] sm:$0xf]
            %v2715 = vld [vmem:[#allocation13 + $0x18] sm:$0xf]
            %v2716 = vld [vmem:[#allocation13 + $0x1c] sm:$0xf]
            %v2717 = vld [vmem:[#allocation13 + $0x20] sm:$0xf]
            %v2718 = vld [vmem:[#allocation13 + $0x24] sm:$0xf]
            %v2719 = vld [vmem:[#allocation13 + $0x28] sm:$0xf]
            %v2720 = vld [vmem:[#allocation13 + $0x2c] sm:$0xf]
            %v2721 = vld [vmem:[#allocation13 + $0x30] sm:$0xf]
            %v2722 = vld [vmem:[#allocation13 + $0x34] sm:$0xf]
            %v2723 = vld [vmem:[#allocation13 + $0x38] sm:$0xf]
            %v2724 = vld [vmem:[#allocation13 + $0x3c] sm:$0xf]
            %v2741 = vunpack.c.l.b16 %v2709
            %v2742 = vunpack.c.l.b16 %v2710
            %v2743 = vunpack.c.l.b16 %v2711
            %v2744 = vunpack.c.l.b16 %v2712
            %v2745 = vunpack.c.l.b16 %v2713
            %v2746 = vunpack.c.l.b16 %v2714
            %v2747 = vunpack.c.l.b16 %v2715
            %v2748 = vunpack.c.l.b16 %v2716
            %v2749 = vunpack.c.l.b16 %v2717
            %v2750 = vunpack.c.l.b16 %v2718
            %v2751 = vunpack.c.l.b16 %v2719
            %v2752 = vunpack.c.l.b16 %v2720
            %v2753 = vunpack.c.l.b16 %v2721
            %v2754 = vunpack.c.l.b16 %v2722
            %v2755 = vunpack.c.l.b16 %v2723
            %v2756 = vunpack.c.l.b16 %v2724
            %v2757 = vpack.c.b16 %v2742, %v2741
            %v2758 = vpack.c.b16 %v2744, %v2743
            %v2759 = vpack.c.b16 %v2746, %v2745
            %v2760 = vpack.c.b16 %v2748, %v2747
            %v2761 = vpack.c.b16 %v2750, %v2749
            %v2762 = vpack.c.b16 %v2752, %v2751
            %v2763 = vpack.c.b16 %v2754, %v2753
            %v2764 = vpack.c.b16 %v2756, %v2755
            %2773 = vmatprep.subr.bf16.mxu0 0
            %2774 = vmatpush1.bf16.msra.mxu0 %v2757
            %2775 = vmatprep.subr.bf16.mxu0 0
            %2776 = vmatpush1.bf16.msra.mxu0 %v2758
            %2777 = vmatprep.subr.bf16.mxu0 0
            %2778 = vmatpush1.bf16.msra.mxu0 %v2759
            %2779 = vmatprep.subr.bf16.mxu0 0
            %2780 = vmatpush1.bf16.msra.mxu0 %v2760
            %2781 = vmatprep.subr.bf16.mxu0 0
            %2782 = vmatpush1.bf16.msra.mxu0 %v2761
            %2783 = vmatprep.subr.bf16.mxu0 0
            %2784 = vmatpush1.bf16.msra.mxu0 %v2762
            %2785 = vmatprep.subr.bf16.mxu0 0
            %2786 = vmatpush1.bf16.msra.mxu0 %v2763
            %2787 = vmatprep.subr.bf16.mxu0 0
            %2788 = vmatpush1.bf16.msra.mxu0 %v2764
            %2789 = vmatprep.subr.bf16.mxu0 0
            %2790 = vmatpush1.bf16.msra.mxu0 0
            %2791 = vmatprep.subr.bf16.mxu0 0
            %2792 = vmatpush1.bf16.msra.mxu0 0
            %2793 = vmatprep.subr.bf16.mxu0 0
            %2794 = vmatpush1.bf16.msra.mxu0 0
            %2795 = vmatprep.subr.bf16.mxu0 0
            %2796 = vmatpush1.bf16.msra.mxu0 0
            %2797 = vmatprep.subr.bf16.mxu0 0
            %2798 = vmatpush1.bf16.msra.mxu0 0
            %2799 = vmatprep.subr.bf16.mxu0 0
            %2800 = vmatpush1.bf16.msra.mxu0 0
            %2801 = vmatprep.subr.bf16.mxu0 0
            %2802 = vmatpush1.bf16.msra.mxu0 0
            %2803 = vmatprep.subr.bf16.mxu0 0
            %2804 = vmatpush1.bf16.msra.mxu0 0
            %2805 = vmatprep.mubr.bf16.mxu0 0
            %2806 = vmatmul.mubr.bf16.gmra.mrb[0].mxu0 %v2524
            %v2807 = vpop.f32.mrb[0].mxu0
            %v2808 = vadd.f32 0.0, %v2807
            %v2809 = vpop.f32.mrb[0].mxu0
            %v2810 = vpop.f32.mrb[0].mxu0
            %v2811 = vadd.f32 0.0, %v2810
            %v2812 = vpop.f32.mrb[0].mxu0
            %2813 = vmatprep.mubr.bf16.mxu0 0
            %2814 = vmatmul.mubr.bf16.gmra.mrb[0].mxu0 %v2525
            %v2815 = vpop.f32.mrb[0].mxu0
            %v2816 = vadd.f32 0.0, %v2815
            %v2817 = vpop.f32.mrb[0].mxu0
            %v2818 = vpop.f32.mrb[0].mxu0
            %v2819 = vadd.f32 0.0, %v2818
            %v2820 = vpop.f32.mrb[0].mxu0
            %2821 = vmatprep.mubr.bf16.mxu0 0
            %2822 = vmatmul.mubr.bf16.gmra.mrb[0].mxu0 %v2526
            %v2823 = vpop.f32.mrb[0].mxu0
            %v2824 = vadd.f32 0.0, %v2823
            %v2825 = vpop.f32.mrb[0].mxu0
            %v2826 = vpop.f32.mrb[0].mxu0
            %v2827 = vadd.f32 0.0, %v2826
            %v2828 = vpop.f32.mrb[0].mxu0
            %2829 = vmatprep.mubr.bf16.mxu0 0
            %2830 = vmatmul.mubr.bf16.gmra.mrb[0].mxu0 %v2527
            %v2831 = vpop.f32.mrb[0].mxu0
            %v2832 = vadd.f32 0.0, %v2831
            %v2833 = vpop.f32.mrb[0].mxu0
            %v2834 = vpop.f32.mrb[0].mxu0
            %v2835 = vadd.f32 0.0, %v2834
            %v2836 = vpop.f32.mrb[0].mxu0
            %2837 = vmatprep.mubr.bf16.mxu0 0
            %2838 = vmatmul.mubr.bf16.gmra.mrb[0].mxu0 %v2528
            %v2839 = vpop.f32.mrb[0].mxu0
            %v2840 = vadd.f32 0.0, %v2839
            %v2841 = vpop.f32.mrb[0].mxu0
            %v2842 = vpop.f32.mrb[0].mxu0
            %v2843 = vadd.f32 0.0, %v2842
            %v2844 = vpop.f32.mrb[0].mxu0
            %2845 = vmatprep.mubr.bf16.mxu0 0
            %2846 = vmatmul.mubr.bf16.gmra.mrb[0].mxu0 %v2529
            %v2847 = vpop.f32.mrb[0].mxu0
            %v2848 = vadd.f32 0.0, %v2847
            %v2849 = vpop.f32.mrb[0].mxu0
            %v2850 = vpop.f32.mrb[0].mxu0
            %v2851 = vadd.f32 0.0, %v2850
            %v2852 = vpop.f32.mrb[0].mxu0
            %2853 = vmatprep.mubr.bf16.mxu0 0
            %2854 = vmatmul.mubr.bf16.gmra.mrb[0].mxu0 %v2530
            %v2855 = vpop.f32.mrb[0].mxu0
            %v2856 = vadd.f32 0.0, %v2855
            %v2857 = vpop.f32.mrb[0].mxu0
            %v2858 = vpop.f32.mrb[0].mxu0
            %v2859 = vadd.f32 0.0, %v2858
            %v2860 = vpop.f32.mrb[0].mxu0
            %2861 = vmatprep.mubr.bf16.mxu0 0
            %2862 = vmatmul.mubr.bf16.gmra.mrb[0].mxu0 %v2531
            %v2863 = vpop.f32.mrb[0].mxu0
            %v2864 = vadd.f32 0.0, %v2863
            %v2865 = vpop.f32.mrb[0].mxu0
            %v2866 = vpop.f32.mrb[0].mxu0
            %v2867 = vadd.f32 0.0, %v2866
            %v2868 = vpop.f32.mrb[0].mxu0
            %2869 = vdwg.mxu0
            %v2870 = vpack.c.bf16 %v2811, %v2808
            %v2871 = vpack.c.bf16 %v2819, %v2816
            %v2872 = vpack.c.bf16 %v2827, %v2824
            %v2873 = vpack.c.bf16 %v2835, %v2832
            %v2874 = vpack.c.bf16 %v2843, %v2840
            %v2875 = vpack.c.bf16 %v2851, %v2848
            %v2876 = vpack.c.bf16 %v2859, %v2856
            %v2877 = vpack.c.bf16 %v2867, %v2864
            %2878 = vst [vmem:[#allocation4] sm:$0xff] %v2870
            %2879 = vst [vmem:[#allocation4 + $0x8] sm:$0xff] %v2871
            %2880 = vst [vmem:[#allocation4 + $0x10] sm:$0xff] %v2872
            %2881 = vst [vmem:[#allocation4 + $0x18] sm:$0xff] %v2873
            %2882 = vst [vmem:[#allocation4 + $0x20] sm:$0xff] %v2874
            %2883 = vst [vmem:[#allocation4 + $0x28] sm:$0xff] %v2875
            %2884 = vst [vmem:[#allocation4 + $0x30] sm:$0xff] %v2876
            %2885 = vst [vmem:[#allocation4 + $0x38] sm:$0xff] %v2877
          $region128: #{tpu_custom_call.1} parent=123 // pred_fallthru
            _
        $region124: #{tpu_custom_call.1} parent=91 // pred_fallthru
          _
        %p2886 = scmp.eq.s32.totalorder %s40, 1
        // Predicated region
        $region129: #{tpu_custom_call.1} parent=91 // pred_check
          %p2887 = pneg %p2886
        $region130: #{tpu_custom_call.1} parent=91 // pred_check_branch
          %2889 = sbr.rel (%p2887) target = $region132
        $region131: #{tpu_custom_call.1} parent=91 // pred_region
          %v2890 = vlaneseq
          %v2891 = vand.u32 %v2890, 127
          %v2892 = vld [vmem:[%s744] sm:$0xff]
          %v2893 = vld [vmem:[%s744 + $0x8] sm:$0xff]
          %v2894 = vld [vmem:[%s744 + $0x10] sm:$0xff]
          %v2895 = vld [vmem:[%s744 + $0x18] sm:$0xff]
          %v2896 = vld [vmem:[%s744 + $0x20] sm:$0xff]
          %v2897 = vld [vmem:[%s744 + $0x28] sm:$0xff]
          %v2898 = vld [vmem:[%s744 + $0x30] sm:$0xff]
          %v2899 = vld [vmem:[%s744 + $0x38] sm:$0xff]
          %v2900 = vld [vmem:[%s744 + $0x40] sm:$0xff]
          %v2901 = vld [vmem:[%s744 + $0x48] sm:$0xff]
          %v2902 = vld [vmem:[%s744 + $0x50] sm:$0xff]
          %v2903 = vld [vmem:[%s744 + $0x58] sm:$0xff]
          %v2904 = vld [vmem:[%s744 + $0x60] sm:$0xff]
          %v2905 = vld [vmem:[%s744 + $0x68] sm:$0xff]
          %v2906 = vld [vmem:[%s744 + $0x70] sm:$0xff]
          %v2907 = vld [vmem:[%s744 + $0x78] sm:$0xff]
          %2908 = vset.pattern.permute.xlu0 0
          %2909 = vperm.xlu0 %2908, %v2892
          %v2910 = vpop.permute.xlu0 %2909
          %2911 = vset.pattern.permute.xlu0 0
          %2912 = vperm.xlu0 %2911, %v2893
          %v2913 = vpop.permute.xlu0 %2912
          %2914 = vset.pattern.permute.xlu0 0
          %2915 = vperm.xlu0 %2914, %v2894
          %v2916 = vpop.permute.xlu0 %2915
          %2917 = vset.pattern.permute.xlu0 0
          %2918 = vperm.xlu0 %2917, %v2895
          %v2919 = vpop.permute.xlu0 %2918
          %2920 = vset.pattern.permute.xlu0 0
          %2921 = vperm.xlu0 %2920, %v2896
          %v2922 = vpop.permute.xlu0 %2921
          %2923 = vset.pattern.permute.xlu0 0
          %2924 = vperm.xlu0 %2923, %v2897
          %v2925 = vpop.permute.xlu0 %2924
          %2926 = vset.pattern.permute.xlu0 0
          %2927 = vperm.xlu0 %2926, %v2898
          %v2928 = vpop.permute.xlu0 %2927
          %2929 = vset.pattern.permute.xlu0 0
          %2930 = vperm.xlu0 %2929, %v2899
          %v2931 = vpop.permute.xlu0 %2930
          %2932 = vset.pattern.permute.xlu0 0
          %2933 = vperm.xlu0 %2932, %v2900
          %v2934 = vpop.permute.xlu0 %2933
          %2935 = vset.pattern.permute.xlu0 0
          %2936 = vperm.xlu0 %2935, %v2901
          %v2937 = vpop.permute.xlu0 %2936
          %2938 = vset.pattern.permute.xlu0 0
          %2939 = vperm.xlu0 %2938, %v2902
          %v2940 = vpop.permute.xlu0 %2939
          %2941 = vset.pattern.permute.xlu0 0
          %2942 = vperm.xlu0 %2941, %v2903
          %v2943 = vpop.permute.xlu0 %2942
          %2944 = vset.pattern.permute.xlu0 0
          %2945 = vperm.xlu0 %2944, %v2904
          %v2946 = vpop.permute.xlu0 %2945
          %2947 = vset.pattern.permute.xlu0 0
          %2948 = vperm.xlu0 %2947, %v2905
          %v2949 = vpop.permute.xlu0 %2948
          %2950 = vset.pattern.permute.xlu0 0
          %2951 = vperm.xlu0 %2950, %v2906
          %v2952 = vpop.permute.xlu0 %2951
          %2953 = vset.pattern.permute.xlu0 0
          %2954 = vperm.xlu0 %2953, %v2907
          %v2955 = vpop.permute.xlu0 %2954
          %vm2956 = vcmp.eq.s32.totalorder %v2891, %v2910
          %vm2957 = vcmp.eq.s32.totalorder %v2891, %v2913
          %vm2958 = vcmp.eq.s32.totalorder %v2891, %v2916
          %vm2959 = vcmp.eq.s32.totalorder %v2891, %v2919
          %vm2960 = vcmp.eq.s32.totalorder %v2891, %v2922
          %vm2961 = vcmp.eq.s32.totalorder %v2891, %v2925
          %vm2962 = vcmp.eq.s32.totalorder %v2891, %v2928
          %vm2963 = vcmp.eq.s32.totalorder %v2891, %v2931
          %vm2964 = vcmp.eq.s32.totalorder %v2891, %v2934
          %vm2965 = vcmp.eq.s32.totalorder %v2891, %v2937
          %vm2966 = vcmp.eq.s32.totalorder %v2891, %v2940
          %vm2967 = vcmp.eq.s32.totalorder %v2891, %v2943
          %vm2968 = vcmp.eq.s32.totalorder %v2891, %v2946
          %vm2969 = vcmp.eq.s32.totalorder %v2891, %v2949
          %vm2970 = vcmp.eq.s32.totalorder %v2891, %v2952
          %vm2971 = vcmp.eq.s32.totalorder %v2891, %v2955
          %v2972 = vsel %vm2956, 1, 0
          %v2973 = vsel %vm2957, 1, 0
          %v2974 = vsel %vm2958, 1, 0
          %v2975 = vsel %vm2959, 1, 0
          %v2976 = vsel %vm2960, 1, 0
          %v2977 = vsel %vm2961, 1, 0
          %v2978 = vsel %vm2962, 1, 0
          %v2979 = vsel %vm2963, 1, 0
          %v2980 = vsel %vm2964, 1, 0
          %v2981 = vsel %vm2965, 1, 0
          %v2982 = vsel %vm2966, 1, 0
          %v2983 = vsel %vm2967, 1, 0
          %v2984 = vsel %vm2968, 1, 0
          %v2985 = vsel %vm2969, 1, 0
          %v2986 = vsel %vm2970, 1, 0
          %v2987 = vsel %vm2971, 1, 0
          %v2988 = vcvt.s32.f32 %v2972
          %v2989 = vcvt.s32.f32 %v2973
          %v2990 = vcvt.s32.f32 %v2974
          %v2991 = vcvt.s32.f32 %v2975
          %v2992 = vcvt.s32.f32 %v2976
          %v2993 = vcvt.s32.f32 %v2977
          %v2994 = vcvt.s32.f32 %v2978
          %v2995 = vcvt.s32.f32 %v2979
          %v2996 = vcvt.s32.f32 %v2980
          %v2997 = vcvt.s32.f32 %v2981
          %v2998 = vcvt.s32.f32 %v2982
          %v2999 = vcvt.s32.f32 %v2983
          %v3000 = vcvt.s32.f32 %v2984
          %v3001 = vcvt.s32.f32 %v2985
          %v3002 = vcvt.s32.f32 %v2986
          %v3003 = vcvt.s32.f32 %v2987
          %v3004 = vpack.c.bf16 %v2989, %v2988
          %v3005 = vpack.c.bf16 %v2991, %v2990
          %v3006 = vpack.c.bf16 %v2993, %v2992
          %v3007 = vpack.c.bf16 %v2995, %v2994
          %v3008 = vpack.c.bf16 %v2997, %v2996
          %v3009 = vpack.c.bf16 %v2999, %v2998
          %v3010 = vpack.c.bf16 %v3001, %v3000
          %v3011 = vpack.c.bf16 %v3003, %v3002
          %v3012 = vld [vmem:[%s758] sm:$0xff]
          %v3013 = vld [vmem:[%s758 + $0x8] sm:$0xff]
          %v3014 = vld [vmem:[%s758 + $0x10] sm:$0xff]
          %v3015 = vld [vmem:[%s758 + $0x18] sm:$0xff]
          %v3016 = vld [vmem:[%s758 + $0x20] sm:$0xff]
          %v3017 = vld [vmem:[%s758 + $0x28] sm:$0xff]
          %v3018 = vld [vmem:[%s758 + $0x30] sm:$0xff]
          %v3019 = vld [vmem:[%s758 + $0x38] sm:$0xff]
          %v3020 = vld [vmem:[%s758 + $0x40] sm:$0xff]
          %v3021 = vld [vmem:[%s758 + $0x48] sm:$0xff]
          %v3022 = vld [vmem:[%s758 + $0x50] sm:$0xff]
          %v3023 = vld [vmem:[%s758 + $0x58] sm:$0xff]
          %v3024 = vld [vmem:[%s758 + $0x60] sm:$0xff]
          %v3025 = vld [vmem:[%s758 + $0x68] sm:$0xff]
          %v3026 = vld [vmem:[%s758 + $0x70] sm:$0xff]
          %v3027 = vld [vmem:[%s758 + $0x78] sm:$0xff]
          %3028 = vset.pattern.permute.xlu0 0
          %3029 = vperm.xlu0 %3028, %v3012
          %v3030 = vpop.permute.xlu0 %3029
          %3031 = vset.pattern.permute.xlu0 0
          %3032 = vperm.xlu0 %3031, %v3013
          %v3033 = vpop.permute.xlu0 %3032
          %3034 = vset.pattern.permute.xlu0 0
          %3035 = vperm.xlu0 %3034, %v3014
          %v3036 = vpop.permute.xlu0 %3035
          %3037 = vset.pattern.permute.xlu0 0
          %3038 = vperm.xlu0 %3037, %v3015
          %v3039 = vpop.permute.xlu0 %3038
          %3040 = vset.pattern.permute.xlu0 0
          %3041 = vperm.xlu0 %3040, %v3016
          %v3042 = vpop.permute.xlu0 %3041
          %3043 = vset.pattern.permute.xlu0 0
          %3044 = vperm.xlu0 %3043, %v3017
          %v3045 = vpop.permute.xlu0 %3044
          %3046 = vset.pattern.permute.xlu0 0
          %3047 = vperm.xlu0 %3046, %v3018
          %v3048 = vpop.permute.xlu0 %3047
          %3049 = vset.pattern.permute.xlu0 0
          %3050 = vperm.xlu0 %3049, %v3019
          %v3051 = vpop.permute.xlu0 %3050
          %3052 = vset.pattern.permute.xlu0 0
          %3053 = vperm.xlu0 %3052, %v3020
          %v3054 = vpop.permute.xlu0 %3053
          %3055 = vset.pattern.permute.xlu0 0
          %3056 = vperm.xlu0 %3055, %v3021
          %v3057 = vpop.permute.xlu0 %3056
          %3058 = vset.pattern.permute.xlu0 0
          %3059 = vperm.xlu0 %3058, %v3022
          %v3060 = vpop.permute.xlu0 %3059
          %3061 = vset.pattern.permute.xlu0 0
          %3062 = vperm.xlu0 %3061, %v3023
          %v3063 = vpop.permute.xlu0 %3062
          %3064 = vset.pattern.permute.xlu0 0
          %3065 = vperm.xlu0 %3064, %v3024
          %v3066 = vpop.permute.xlu0 %3065
          %3067 = vset.pattern.permute.xlu0 0
          %3068 = vperm.xlu0 %3067, %v3025
          %v3069 = vpop.permute.xlu0 %3068
          %3070 = vset.pattern.permute.xlu0 0
          %3071 = vperm.xlu0 %3070, %v3026
          %v3072 = vpop.permute.xlu0 %3071
          %3073 = vset.pattern.permute.xlu0 0
          %3074 = vperm.xlu0 %3073, %v3027
          %v3075 = vpop.permute.xlu0 %3074
          %vm3076 = vcmp.eq.s32.totalorder %v2891, %v3030
          %vm3077 = vcmp.eq.s32.totalorder %v2891, %v3033
          %vm3078 = vcmp.eq.s32.totalorder %v2891, %v3036
          %vm3079 = vcmp.eq.s32.totalorder %v2891, %v3039
          %vm3080 = vcmp.eq.s32.totalorder %v2891, %v3042
          %vm3081 = vcmp.eq.s32.totalorder %v2891, %v3045
          %vm3082 = vcmp.eq.s32.totalorder %v2891, %v3048
          %vm3083 = vcmp.eq.s32.totalorder %v2891, %v3051
          %vm3084 = vcmp.eq.s32.totalorder %v2891, %v3054
          %vm3085 = vcmp.eq.s32.totalorder %v2891, %v3057
          %vm3086 = vcmp.eq.s32.totalorder %v2891, %v3060
          %vm3087 = vcmp.eq.s32.totalorder %v2891, %v3063
          %vm3088 = vcmp.eq.s32.totalorder %v2891, %v3066
          %vm3089 = vcmp.eq.s32.totalorder %v2891, %v3069
          %vm3090 = vcmp.eq.s32.totalorder %v2891, %v3072
          %vm3091 = vcmp.eq.s32.totalorder %v2891, %v3075
          %v3092 = vsel %vm3076, 1, 0
          %v3093 = vsel %vm3077, 1, 0
          %v3094 = vsel %vm3078, 1, 0
          %v3095 = vsel %vm3079, 1, 0
          %v3096 = vsel %vm3080, 1, 0
          %v3097 = vsel %vm3081, 1, 0
          %v3098 = vsel %vm3082, 1, 0
          %v3099 = vsel %vm3083, 1, 0
          %v3100 = vsel %vm3084, 1, 0
          %v3101 = vsel %vm3085, 1, 0
          %v3102 = vsel %vm3086, 1, 0
          %v3103 = vsel %vm3087, 1, 0
          %v3104 = vsel %vm3088, 1, 0
          %v3105 = vsel %vm3089, 1, 0
          %v3106 = vsel %vm3090, 1, 0
          %v3107 = vsel %vm3091, 1, 0
          %v3108 = vcvt.s32.f32 %v3092
          %v3109 = vcvt.s32.f32 %v3093
          %v3110 = vcvt.s32.f32 %v3094
          %v3111 = vcvt.s32.f32 %v3095
          %v3112 = vcvt.s32.f32 %v3096
          %v3113 = vcvt.s32.f32 %v3097
          %v3114 = vcvt.s32.f32 %v3098
          %v3115 = vcvt.s32.f32 %v3099
          %v3116 = vcvt.s32.f32 %v3100
          %v3117 = vcvt.s32.f32 %v3101
          %v3118 = vcvt.s32.f32 %v3102
          %v3119 = vcvt.s32.f32 %v3103
          %v3120 = vcvt.s32.f32 %v3104
          %v3121 = vcvt.s32.f32 %v3105
          %v3122 = vcvt.s32.f32 %v3106
          %v3123 = vcvt.s32.f32 %v3107
          %v3124 = vpack.c.bf16 %v3109, %v3108
          %v3125 = vpack.c.bf16 %v3111, %v3110
          %v3126 = vpack.c.bf16 %v3113, %v3112
          %v3127 = vpack.c.bf16 %v3115, %v3114
          %v3128 = vpack.c.bf16 %v3117, %v3116
          %v3129 = vpack.c.bf16 %v3119, %v3118
          %v3130 = vpack.c.bf16 %v3121, %v3120
          %v3131 = vpack.c.bf16 %v3123, %v3122
          %v3132 = vld [vmem:[#allocation3] sm:$0xff]
          %v3133 = vld [vmem:[#allocation3 + $0x8] sm:$0xff]
          %v3134 = vld [vmem:[#allocation3 + $0x10] sm:$0xff]
          %v3135 = vld [vmem:[#allocation3 + $0x18] sm:$0xff]
          %v3136 = vld [vmem:[#allocation3 + $0x20] sm:$0xff]
          %v3137 = vld [vmem:[#allocation3 + $0x28] sm:$0xff]
          %v3138 = vld [vmem:[#allocation3 + $0x30] sm:$0xff]
          %v3139 = vld [vmem:[#allocation3 + $0x38] sm:$0xff]
          %v3140 = vld [vmem:[#allocation4] sm:$0xff]
          %v3141 = vld [vmem:[#allocation4 + $0x8] sm:$0xff]
          %v3142 = vld [vmem:[#allocation4 + $0x10] sm:$0xff]
          %v3143 = vld [vmem:[#allocation4 + $0x18] sm:$0xff]
          %v3144 = vld [vmem:[#allocation4 + $0x20] sm:$0xff]
          %v3145 = vld [vmem:[#allocation4 + $0x28] sm:$0xff]
          %v3146 = vld [vmem:[#allocation4 + $0x30] sm:$0xff]
          %v3147 = vld [vmem:[#allocation4 + $0x38] sm:$0xff]
          %3148 = vmatprep.subr.bf16.mxu0 0
          %3149 = vmatpush1.bf16.msra.mxu0 %v3140
          %3150 = vmatprep.subr.bf16.mxu0 0
          %3151 = vmatpush1.bf16.msra.mxu0 %v3141
          %3152 = vmatprep.subr.bf16.mxu0 0
          %3153 = vmatpush1.bf16.msra.mxu0 %v3142
          %3154 = vmatprep.subr.bf16.mxu0 0
          %3155 = vmatpush1.bf16.msra.mxu0 %v3143
          %3156 = vmatprep.subr.bf16.mxu0 0
          %3157 = vmatpush1.bf16.msra.mxu0 %v3144
          %3158 = vmatprep.subr.bf16.mxu0 0
          %3159 = vmatpush1.bf16.msra.mxu0 %v3145
          %3160 = vmatprep.subr.bf16.mxu0 0
          %3161 = vmatpush1.bf16.msra.mxu0 %v3146
          %3162 = vmatprep.subr.bf16.mxu0 0
          %3163 = vmatpush1.bf16.msra.mxu0 %v3147
          %3164 = vmatprep.subr.bf16.mxu0 0
          %3165 = vmatpush1.bf16.msra.mxu0 0
          %3166 = vmatprep.subr.bf16.mxu0 0
          %3167 = vmatpush1.bf16.msra.mxu0 0
          %3168 = vmatprep.subr.bf16.mxu0 0
          %3169 = vmatpush1.bf16.msra.mxu0 0
          %3170 = vmatprep.subr.bf16.mxu0 0
          %3171 = vmatpush1.bf16.msra.mxu0 0
          %3172 = vmatprep.subr.bf16.mxu0 0
          %3173 = vmatpush1.bf16.msra.mxu0 0
          %3174 = vmatprep.subr.bf16.mxu0 0
          %3175 = vmatpush1.bf16.msra.mxu0 0
          %3176 = vmatprep.subr.bf16.mxu0 0
          %3177 = vmatpush1.bf16.msra.mxu0 0
          %3178 = vmatprep.subr.bf16.mxu0 0
          %3179 = vmatpush1.bf16.msra.mxu0 0
          %3180 = vmatprep.mubr.bf16.mxu0 0
          %3181 = vmatmul.mubr.bf16.gmra.mrb[0].mxu0 %v3124
          %v3182 = vpop.f32.mrb[0].mxu0
          %v3183 = vadd.f32 0.0, %v3182
          %v3184 = vpop.f32.mrb[0].mxu0
          %v3185 = vpop.f32.mrb[0].mxu0
          %v3186 = vadd.f32 0.0, %v3185
          %v3187 = vpop.f32.mrb[0].mxu0
          %3188 = vmatprep.mubr.bf16.mxu0 0
          %3189 = vmatmul.mubr.bf16.gmra.mrb[0].mxu0 %v3125
          %v3190 = vpop.f32.mrb[0].mxu0
          %v3191 = vadd.f32 0.0, %v3190
          %v3192 = vpop.f32.mrb[0].mxu0
          %v3193 = vpop.f32.mrb[0].mxu0
          %v3194 = vadd.f32 0.0, %v3193
          %v3195 = vpop.f32.mrb[0].mxu0
          %3196 = vmatprep.mubr.bf16.mxu0 0
          %3197 = vmatmul.mubr.bf16.gmra.mrb[0].mxu0 %v3126
          %v3198 = vpop.f32.mrb[0].mxu0
          %v3199 = vadd.f32 0.0, %v3198
          %v3200 = vpop.f32.mrb[0].mxu0
          %v3201 = vpop.f32.mrb[0].mxu0
          %v3202 = vadd.f32 0.0, %v3201
          %v3203 = vpop.f32.mrb[0].mxu0
          %3204 = vmatprep.mubr.bf16.mxu0 0
          %3205 = vmatmul.mubr.bf16.gmra.mrb[0].mxu0 %v3127
          %v3206 = vpop.f32.mrb[0].mxu0
          %v3207 = vadd.f32 0.0, %v3206
          %v3208 = vpop.f32.mrb[0].mxu0
          %v3209 = vpop.f32.mrb[0].mxu0
          %v3210 = vadd.f32 0.0, %v3209
          %v3211 = vpop.f32.mrb[0].mxu0
          %3212 = vmatprep.mubr.bf16.mxu0 0
          %3213 = vmatmul.mubr.bf16.gmra.mrb[0].mxu0 %v3128
          %v3214 = vpop.f32.mrb[0].mxu0
          %v3215 = vadd.f32 0.0, %v3214
          %v3216 = vpop.f32.mrb[0].mxu0
          %v3217 = vpop.f32.mrb[0].mxu0
          %v3218 = vadd.f32 0.0, %v3217
          %v3219 = vpop.f32.mrb[0].mxu0
          %3220 = vmatprep.mubr.bf16.mxu0 0
          %3221 = vmatmul.mubr.bf16.gmra.mrb[0].mxu0 %v3129
          %v3222 = vpop.f32.mrb[0].mxu0
          %v3223 = vadd.f32 0.0, %v3222
          %v3224 = vpop.f32.mrb[0].mxu0
          %v3225 = vpop.f32.mrb[0].mxu0
          %v3226 = vadd.f32 0.0, %v3225
          %v3227 = vpop.f32.mrb[0].mxu0
          %3228 = vmatprep.mubr.bf16.mxu0 0
          %3229 = vmatmul.mubr.bf16.gmra.mrb[0].mxu0 %v3130
          %v3230 = vpop.f32.mrb[0].mxu0
          %v3231 = vadd.f32 0.0, %v3230
          %v3232 = vpop.f32.mrb[0].mxu0
          %v3233 = vpop.f32.mrb[0].mxu0
          %v3234 = vadd.f32 0.0, %v3233
          %v3235 = vpop.f32.mrb[0].mxu0
          %3236 = vmatprep.mubr.bf16.mxu0 0
          %3237 = vmatmul.mubr.bf16.gmra.mrb[0].mxu0 %v3131
          %v3238 = vpop.f32.mrb[0].mxu0
          %v3239 = vadd.f32 0.0, %v3238
          %v3240 = vpop.f32.mrb[0].mxu0
          %v3241 = vpop.f32.mrb[0].mxu0
          %v3242 = vadd.f32 0.0, %v3241
          %v3243 = vpop.f32.mrb[0].mxu0
          %3244 = vdwg.mxu0
          %3245 = vmatprep.subr.bf16.mxu0 0
          %3246 = vmatpush1.bf16.msra.mxu0 %v3132
          %3247 = vmatprep.subr.bf16.mxu0 0
          %3248 = vmatpush1.bf16.msra.mxu0 %v3133
          %3249 = vmatprep.subr.bf16.mxu0 0
          %3250 = vmatpush1.bf16.msra.mxu0 %v3134
          %3251 = vmatprep.subr.bf16.mxu0 0
          %3252 = vmatpush1.bf16.msra.mxu0 %v3135
          %3253 = vmatprep.subr.bf16.mxu0 0
          %3254 = vmatpush1.bf16.msra.mxu0 %v3136
          %3255 = vmatprep.subr.bf16.mxu0 0
          %3256 = vmatpush1.bf16.msra.mxu0 %v3137
          %3257 = vmatprep.subr.bf16.mxu0 0
          %3258 = vmatpush1.bf16.msra.mxu0 %v3138
          %3259 = vmatprep.subr.bf16.mxu0 0
          %3260 = vmatpush1.bf16.msra.mxu0 %v3139
          %3261 = vmatprep.subr.bf16.mxu0 0
          %3262 = vmatpush1.bf16.msra.mxu0 0
          %3263 = vmatprep.subr.bf16.mxu0 0
          %3264 = vmatpush1.bf16.msra.mxu0 0
          %3265 = vmatprep.subr.bf16.mxu0 0
          %3266 = vmatpush1.bf16.msra.mxu0 0
          %3267 = vmatprep.subr.bf16.mxu0 0
          %3268 = vmatpush1.bf16.msra.mxu0 0
          %3269 = vmatprep.subr.bf16.mxu0 0
          %3270 = vmatpush1.bf16.msra.mxu0 0
          %3271 = vmatprep.subr.bf16.mxu0 0
          %3272 = vmatpush1.bf16.msra.mxu0 0
          %3273 = vmatprep.subr.bf16.mxu0 0
          %3274 = vmatpush1.bf16.msra.mxu0 0
          %3275 = vmatprep.subr.bf16.mxu0 0
          %3276 = vmatpush1.bf16.msra.mxu0 0
          %3277 = vmatprep.mubr.bf16.mxu0 0
          %3278 = vmatmul.mubr.bf16.gmra.mrb[0].mxu0 %v3004
          %v3279 = vpop.f32.mrb[0].mxu0
          %v3280 = vadd.f32 %v3183, %v3279
          %v3281 = vpop.f32.mrb[0].mxu0
          %v3282 = vpop.f32.mrb[0].mxu0
          %v3283 = vadd.f32 %v3186, %v3282
          %v3284 = vpop.f32.mrb[0].mxu0
          %3285 = vmatprep.mubr.bf16.mxu0 0
          %3286 = vmatmul.mubr.bf16.gmra.mrb[0].mxu0 %v3005
          %v3287 = vpop.f32.mrb[0].mxu0
          %v3288 = vadd.f32 %v3191, %v3287
          %v3289 = vpop.f32.mrb[0].mxu0
          %v3290 = vpop.f32.mrb[0].mxu0
          %v3291 = vadd.f32 %v3194, %v3290
          %v3292 = vpop.f32.mrb[0].mxu0
          %3293 = vmatprep.mubr.bf16.mxu0 0
          %3294 = vmatmul.mubr.bf16.gmra.mrb[0].mxu0 %v3006
          %v3295 = vpop.f32.mrb[0].mxu0
          %v3296 = vadd.f32 %v3199, %v3295
          %v3297 = vpop.f32.mrb[0].mxu0
          %v3298 = vpop.f32.mrb[0].mxu0
          %v3299 = vadd.f32 %v3202, %v3298
          %v3300 = vpop.f32.mrb[0].mxu0
          %3301 = vmatprep.mubr.bf16.mxu0 0
          %3302 = vmatmul.mubr.bf16.gmra.mrb[0].mxu0 %v3007
          %v3303 = vpop.f32.mrb[0].mxu0
          %v3304 = vadd.f32 %v3207, %v3303
          %v3305 = vpop.f32.mrb[0].mxu0
          %v3306 = vpop.f32.mrb[0].mxu0
          %v3307 = vadd.f32 %v3210, %v3306
          %v3308 = vpop.f32.mrb[0].mxu0
          %3309 = vmatprep.mubr.bf16.mxu0 0
          %3310 = vmatmul.mubr.bf16.gmra.mrb[0].mxu0 %v3008
          %v3311 = vpop.f32.mrb[0].mxu0
          %v3312 = vadd.f32 %v3215, %v3311
          %v3313 = vpop.f32.mrb[0].mxu0
          %v3314 = vpop.f32.mrb[0].mxu0
          %v3315 = vadd.f32 %v3218, %v3314
          %v3316 = vpop.f32.mrb[0].mxu0
          %3317 = vmatprep.mubr.bf16.mxu0 0
          %3318 = vmatmul.mubr.bf16.gmra.mrb[0].mxu0 %v3009
          %v3319 = vpop.f32.mrb[0].mxu0
          %v3320 = vadd.f32 %v3223, %v3319
          %v3321 = vpop.f32.mrb[0].mxu0
          %v3322 = vpop.f32.mrb[0].mxu0
          %v3323 = vadd.f32 %v3226, %v3322
          %v3324 = vpop.f32.mrb[0].mxu0
          %3325 = vmatprep.mubr.bf16.mxu0 0
          %3326 = vmatmul.mubr.bf16.gmra.mrb[0].mxu0 %v3010
          %v3327 = vpop.f32.mrb[0].mxu0
          %v3328 = vadd.f32 %v3231, %v3327
          %v3329 = vpop.f32.mrb[0].mxu0
          %v3330 = vpop.f32.mrb[0].mxu0
          %v3331 = vadd.f32 %v3234, %v3330
          %v3332 = vpop.f32.mrb[0].mxu0
          %3333 = vmatprep.mubr.bf16.mxu0 0
          %3334 = vmatmul.mubr.bf16.gmra.mrb[0].mxu0 %v3011
          %v3335 = vpop.f32.mrb[0].mxu0
          %v3336 = vadd.f32 %v3239, %v3335
          %v3337 = vpop.f32.mrb[0].mxu0
          %v3338 = vpop.f32.mrb[0].mxu0
          %v3339 = vadd.f32 %v3242, %v3338
          %v3340 = vpop.f32.mrb[0].mxu0
          %3341 = vdwg.mxu0
          %v3342 = vld [vmem:[%s15] sm:$0x1]
          %v3344 = vlaneseq
          %v3345 = vshrl.u32 %v3344, 7
          %v3346 = vsub.s32 0, %v3345
          %v3347 = vrot.slane %v3342, %v3346
          %v3349 = vadd.f32 %v3280, %v3347
          %v3350 = vadd.f32 %v3283, %v3347
          %v3351 = vadd.f32 %v3288, %v3347
          %v3352 = vadd.f32 %v3291, %v3347
          %v3353 = vadd.f32 %v3296, %v3347
          %v3354 = vadd.f32 %v3299, %v3347
          %v3355 = vadd.f32 %v3304, %v3347
          %v3356 = vadd.f32 %v3307, %v3347
          %v3357 = vadd.f32 %v3312, %v3347
          %v3358 = vadd.f32 %v3315, %v3347
          %v3359 = vadd.f32 %v3320, %v3347
          %v3360 = vadd.f32 %v3323, %v3347
          %v3361 = vadd.f32 %v3328, %v3347
          %v3362 = vadd.f32 %v3331, %v3347
          %v3363 = vadd.f32 %v3336, %v3347
          %v3364 = vadd.f32 %v3339, %v3347
          %v3365 = vmax.f32 %v3349, 0.0
          %v3366 = vmax.f32 %v3350, 0.0
          %v3367 = vmax.f32 %v3351, 0.0
          %v3368 = vmax.f32 %v3352, 0.0
          %v3369 = vmax.f32 %v3353, 0.0
          %v3370 = vmax.f32 %v3354, 0.0
          %v3371 = vmax.f32 %v3355, 0.0
          %v3372 = vmax.f32 %v3356, 0.0
          %v3373 = vmax.f32 %v3357, 0.0
          %v3374 = vmax.f32 %v3358, 0.0
          %v3375 = vmax.f32 %v3359, 0.0
          %v3376 = vmax.f32 %v3360, 0.0
          %v3377 = vmax.f32 %v3361, 0.0
          %v3378 = vmax.f32 %v3362, 0.0
          %v3379 = vmax.f32 %v3363, 0.0
          %v3380 = vmax.f32 %v3364, 0.0
          %v3381 = vpack.c.bf16 %v3366, %v3365
          %v3382 = vpack.c.bf16 %v3368, %v3367
          %v3383 = vpack.c.bf16 %v3370, %v3369
          %v3384 = vpack.c.bf16 %v3372, %v3371
          %v3385 = vpack.c.bf16 %v3374, %v3373
          %v3386 = vpack.c.bf16 %v3376, %v3375
          %v3387 = vpack.c.bf16 %v3378, %v3377
          %v3388 = vpack.c.bf16 %v3380, %v3379
          %v3389 = vld [vmem:[#allocation14] sm:$0xf]
          %v3390 = vld [vmem:[#allocation14 + $0x4] sm:$0xf]
          %v3391 = vld [vmem:[#allocation14 + $0x8] sm:$0xf]
          %v3392 = vld [vmem:[#allocation14 + $0xc] sm:$0xf]
          %v3393 = vld [vmem:[#allocation14 + $0x10] sm:$0xf]
          %v3394 = vld [vmem:[#allocation14 + $0x14] sm:$0xf]
          %v3395 = vld [vmem:[#allocation14 + $0x18] sm:$0xf]
          %v3396 = vld [vmem:[#allocation14 + $0x1c] sm:$0xf]
          %v3397 = vld [vmem:[#allocation14 + $0x20] sm:$0xf]
          %v3398 = vld [vmem:[#allocation14 + $0x24] sm:$0xf]
          %v3399 = vld [vmem:[#allocation14 + $0x28] sm:$0xf]
          %v3400 = vld [vmem:[#allocation14 + $0x2c] sm:$0xf]
          %v3401 = vld [vmem:[#allocation14 + $0x30] sm:$0xf]
          %v3402 = vld [vmem:[#allocation14 + $0x34] sm:$0xf]
          %v3403 = vld [vmem:[#allocation14 + $0x38] sm:$0xf]
          %v3404 = vld [vmem:[#allocation14 + $0x3c] sm:$0xf]
          %v3405 = vld [vmem:[%s17] sm:$0x1]
          %v3407 = vlaneseq
          %v3408 = vshrl.u32 %v3407, 7
          %v3409 = vsub.s32 0, %v3408
          %v3410 = vrot.slane %v3405, %v3409
          %v3428 = vunpack.c.l.b16 %v3389
          %v3429 = vunpack.c.l.b16 %v3390
          %v3430 = vunpack.c.l.b16 %v3391
          %v3431 = vunpack.c.l.b16 %v3392
          %v3432 = vunpack.c.l.b16 %v3393
          %v3433 = vunpack.c.l.b16 %v3394
          %v3434 = vunpack.c.l.b16 %v3395
          %v3435 = vunpack.c.l.b16 %v3396
          %v3436 = vunpack.c.l.b16 %v3397
          %v3437 = vunpack.c.l.b16 %v3398
          %v3438 = vunpack.c.l.b16 %v3399
          %v3439 = vunpack.c.l.b16 %v3400
          %v3440 = vunpack.c.l.b16 %v3401
          %v3441 = vunpack.c.l.b16 %v3402
          %v3442 = vunpack.c.l.b16 %v3403
          %v3443 = vunpack.c.l.b16 %v3404
          %v3444 = vpack.c.b16 %v3429, %v3428
          %v3445 = vpack.c.b16 %v3431, %v3430
          %v3446 = vpack.c.b16 %v3433, %v3432
          %v3447 = vpack.c.b16 %v3435, %v3434
          %v3448 = vpack.c.b16 %v3437, %v3436
          %v3449 = vpack.c.b16 %v3439, %v3438
          %v3450 = vpack.c.b16 %v3441, %v3440
          %v3451 = vpack.c.b16 %v3443, %v3442
          %3460 = vmatprep.subr.bf16.mxu0 0
          %3461 = vmatpush1.bf16.msra.mxu0 %v3444
          %3462 = vmatprep.subr.bf16.mxu0 0
          %3463 = vmatpush1.bf16.msra.mxu0 %v3445
          %3464 = vmatprep.subr.bf16.mxu0 0
          %3465 = vmatpush1.bf16.msra.mxu0 %v3446
          %3466 = vmatprep.subr.bf16.mxu0 0
          %3467 = vmatpush1.bf16.msra.mxu0 %v3447
          %3468 = vmatprep.subr.bf16.mxu0 0
          %3469 = vmatpush1.bf16.msra.mxu0 %v3448
          %3470 = vmatprep.subr.bf16.mxu0 0
          %3471 = vmatpush1.bf16.msra.mxu0 %v3449
          %3472 = vmatprep.subr.bf16.mxu0 0
          %3473 = vmatpush1.bf16.msra.mxu0 %v3450
          %3474 = vmatprep.subr.bf16.mxu0 0
          %3475 = vmatpush1.bf16.msra.mxu0 %v3451
          %3476 = vmatprep.subr.bf16.mxu0 0
          %3477 = vmatpush1.bf16.msra.mxu0 0
          %3478 = vmatprep.subr.bf16.mxu0 0
          %3479 = vmatpush1.bf16.msra.mxu0 0
          %3480 = vmatprep.subr.bf16.mxu0 0
          %3481 = vmatpush1.bf16.msra.mxu0 0
          %3482 = vmatprep.subr.bf16.mxu0 0
          %3483 = vmatpush1.bf16.msra.mxu0 0
          %3484 = vmatprep.subr.bf16.mxu0 0
          %3485 = vmatpush1.bf16.msra.mxu0 0
          %3486 = vmatprep.subr.bf16.mxu0 0
          %3487 = vmatpush1.bf16.msra.mxu0 0
          %3488 = vmatprep.subr.bf16.mxu0 0
          %3489 = vmatpush1.bf16.msra.mxu0 0
          %3490 = vmatprep.subr.bf16.mxu0 0
          %3491 = vmatpush1.bf16.msra.mxu0 0
          %3492 = vmatprep.mubr.bf16.mxu0 0
          %3493 = vmatmul.mubr.bf16.gmra.mrb[0].mxu0 %v3381
          %v3494 = vpop.f32.mrb[0].mxu0
          %v3495 = vadd.f32 %v3410, %v3494
          %v3496 = vpop.f32.mrb[0].mxu0
          %v3497 = vpop.f32.mrb[0].mxu0
          %v3498 = vadd.f32 %v3410, %v3497
          %v3499 = vpop.f32.mrb[0].mxu0
          %3500 = vmatprep.mubr.bf16.mxu0 0
          %3501 = vmatmul.mubr.bf16.gmra.mrb[0].mxu0 %v3382
          %v3502 = vpop.f32.mrb[0].mxu0
          %v3503 = vadd.f32 %v3410, %v3502
          %v3504 = vpop.f32.mrb[0].mxu0
          %v3505 = vpop.f32.mrb[0].mxu0
          %v3506 = vadd.f32 %v3410, %v3505
          %v3507 = vpop.f32.mrb[0].mxu0
          %3508 = vmatprep.mubr.bf16.mxu0 0
          %3509 = vmatmul.mubr.bf16.gmra.mrb[0].mxu0 %v3383
          %v3510 = vpop.f32.mrb[0].mxu0
          %v3511 = vadd.f32 %v3410, %v3510
          %v3512 = vpop.f32.mrb[0].mxu0
          %v3513 = vpop.f32.mrb[0].mxu0
          %v3514 = vadd.f32 %v3410, %v3513
          %v3515 = vpop.f32.mrb[0].mxu0
          %3516 = vmatprep.mubr.bf16.mxu0 0
          %3517 = vmatmul.mubr.bf16.gmra.mrb[0].mxu0 %v3384
          %v3518 = vpop.f32.mrb[0].mxu0
          %v3519 = vadd.f32 %v3410, %v3518
          %v3520 = vpop.f32.mrb[0].mxu0
          %v3521 = vpop.f32.mrb[0].mxu0
          %v3522 = vadd.f32 %v3410, %v3521
          %v3523 = vpop.f32.mrb[0].mxu0
          %3524 = vmatprep.mubr.bf16.mxu0 0
          %3525 = vmatmul.mubr.bf16.gmra.mrb[0].mxu0 %v3385
          %v3526 = vpop.f32.mrb[0].mxu0
          %v3527 = vadd.f32 %v3410, %v3526
          %v3528 = vpop.f32.mrb[0].mxu0
          %v3529 = vpop.f32.mrb[0].mxu0
          %v3530 = vadd.f32 %v3410, %v3529
          %v3531 = vpop.f32.mrb[0].mxu0
          %3532 = vmatprep.mubr.bf16.mxu0 0
          %3533 = vmatmul.mubr.bf16.gmra.mrb[0].mxu0 %v3386
          %v3534 = vpop.f32.mrb[0].mxu0
          %v3535 = vadd.f32 %v3410, %v3534
          %v3536 = vpop.f32.mrb[0].mxu0
          %v3537 = vpop.f32.mrb[0].mxu0
          %v3538 = vadd.f32 %v3410, %v3537
          %v3539 = vpop.f32.mrb[0].mxu0
          %3540 = vmatprep.mubr.bf16.mxu0 0
          %3541 = vmatmul.mubr.bf16.gmra.mrb[0].mxu0 %v3387
          %v3542 = vpop.f32.mrb[0].mxu0
          %v3543 = vadd.f32 %v3410, %v3542
          %v3544 = vpop.f32.mrb[0].mxu0
          %v3545 = vpop.f32.mrb[0].mxu0
          %v3546 = vadd.f32 %v3410, %v3545
          %v3547 = vpop.f32.mrb[0].mxu0
          %3548 = vmatprep.mubr.bf16.mxu0 0
          %3549 = vmatmul.mubr.bf16.gmra.mrb[0].mxu0 %v3388
          %v3550 = vpop.f32.mrb[0].mxu0
          %v3551 = vadd.f32 %v3410, %v3550
          %v3552 = vpop.f32.mrb[0].mxu0
          %v3553 = vpop.f32.mrb[0].mxu0
          %v3554 = vadd.f32 %v3410, %v3553
          %v3555 = vpop.f32.mrb[0].mxu0
          %3556 = vdwg.mxu0
          %3557 = vst [vmem:[%s739] sm:$0xff] %v3495
          %3558 = vst [vmem:[%s739 + $0x8] sm:$0xff] %v3498
          %3559 = vst [vmem:[%s739 + $0x10] sm:$0xff] %v3503
          %3560 = vst [vmem:[%s739 + $0x18] sm:$0xff] %v3506
          %3561 = vst [vmem:[%s739 + $0x20] sm:$0xff] %v3511
          %3562 = vst [vmem:[%s739 + $0x28] sm:$0xff] %v3514
          %3563 = vst [vmem:[%s739 + $0x30] sm:$0xff] %v3519
          %3564 = vst [vmem:[%s739 + $0x38] sm:$0xff] %v3522
          %3565 = vst [vmem:[%s739 + $0x40] sm:$0xff] %v3527
          %3566 = vst [vmem:[%s739 + $0x48] sm:$0xff] %v3530
          %3567 = vst [vmem:[%s739 + $0x50] sm:$0xff] %v3535
          %3568 = vst [vmem:[%s739 + $0x58] sm:$0xff] %v3538
          %3569 = vst [vmem:[%s739 + $0x60] sm:$0xff] %v3543
          %3570 = vst [vmem:[%s739 + $0x68] sm:$0xff] %v3546
          %3571 = vst [vmem:[%s739 + $0x70] sm:$0xff] %v3551
          %3572 = vst [vmem:[%s739 + $0x78] sm:$0xff] %v3554
        $region132: #{tpu_custom_call.1} parent=91 // pred_fallthru
          _
        %s3573 = sand.u32 %s466, 1
        %s3574 = scalar_lea.sflag [#allocation7], %s3573
        %s3575 = sand.u32 %s466, 1
        %s3576 = smul.addr %s3575, 128
        %s3577 = scalar_lea.vmem [#allocation16], %s3576
        // Predicated region
        $region133: #{tpu_custom_call.1} parent=91 // pred_check
          %p3578 = pneg %p476
        $region134: #{tpu_custom_call.1} parent=91 // pred_check_branch
          %3580 = sbr.rel (%p3578) target = $region136
        $region135: #{tpu_custom_call.1} parent=91 // pred_region
          %s3581 = smul.u32 %s41, %s40
          %s3582 = smul.u32 16, %s3581
          %s3584 = ssub.s32 2048, 2048
          %3585 = vsyncadd %s3574, %s3584
          %s3586 = smul.addr %s3582, 128
          %s3587 = scalar_lea.hbm %s18, %s3586
          %s3588 = sshll.u32 %s3577, 4
          %s3589 = int_to_ptr.vmem [resolvable:$true] %s3588
          %3594 = dma.vmem_to_hbm [thread:$0]  %s3589, 2048, %s3587, %s3574, 128, 128, 8
        $region136: #{tpu_custom_call.1} parent=91 // pred_fallthru
          _
      $region92: #{tpu_custom_call.1} parent=5 // pred_fallthru
        _
      %p3595 = scmp.le.s32.totalorder 2, %s31
      // Predicated region
      $region137: #{tpu_custom_call.1} parent=5 // pred_check
        %p3596 = pneg %p3595
      $region138: #{tpu_custom_call.1} parent=5 // pred_check_branch
        %3598 = sbr.rel (%p3596) target = $region140
      $region139: #{tpu_custom_call.1} parent=5 // pred_region
        %s3599 = ssub.s32 %s31, 2
        // Predicated region
        $region141: #{tpu_custom_call.1} parent=139 // pred_check
          %p3600 = pneg %p482
        $region142: #{tpu_custom_call.1} parent=139 // pred_check_branch
          %3602 = sbr.rel (%p3600) target = $region144
        $region143: #{tpu_custom_call.1} parent=139 // pred_region
          %s3603 = sand.u32 %s467, 1
          %s3604 = scalar_lea.sflag [#allocation7], %s3603
          %s3605 = sand.u32 %s467, 1
          %s3606 = smul.addr %s3605, 128
          %s3607 = scalar_lea.vmem [#allocation16], %s3606
          %3608 = dma.done %s3604, 2048
        $region144: #{tpu_custom_call.1} parent=139 // pred_fallthru
          _
      $region140: #{tpu_custom_call.1} parent=5 // pred_fallthru
        _
    $region6: #{tpu_custom_call.1} parent=1 // loop_footer
      %s35 = sadd.s32 1, %s31
    $region7: #{tpu_custom_call.1} parent=1 // loop_footer_branch
      %30 = sbr.rel target = $region3
    $region8: #{tpu_custom_call.1} parent=1 // loop_exit
      _
    %3609 = vsyncpa [#allocation6], 1
    %s3610 = scalar_lea.sflag [#allocation6], 1
    %3611 = vsyncpa %s3610, 1
    %3612 = vsyncpa [#allocation9], 1
    %3613 = vsyncpa [#allocation12], 1
    %3614 = vsyncpa [#allocation15], 1
    %3615 = vsyncpa [#allocation7], 1
    %s3616 = scalar_lea.sflag [#allocation7], 1
    %3617 = vsyncpa %s3616, 1

</llo_original>
